<compile_context>
chip_gen: v5e
topology: v5e:2x2
jax: 0.10.0
libtpu: 0.0.40
codegen_flags: <defaults>
</compile_context>

<pallas_src>
import math

import jax
import jax.numpy as jnp
from jax.experimental import pallas as pl
from jax.experimental.pallas import tpu as pltpu

LEAKY_SLOPE = 0.01                 # F.leaky_relu default
_WEIGHT_DB_BUDGET = 16 << 20       # single-buffer weights if doubling them exceeds this


def text_graph_kernel(x_ref, adj_ref, mlp_w_ref, mlp_b_ref, gw_ref, gb_ref, o_ref):
    Tb, S, E = x_ref.shape
    M = Tb * S

    # Flatten the packed graphs so every weight matmul runs with a full MXU M-dim.
    h = x_ref[...].reshape(M, E).astype(jnp.bfloat16)

    # project_emb: Linear -> SiLU (x4) -> Linear.  bf16 operands, f32 accumulate,
    # single cast back per layer (accumulator must be f32 anyway).
    for i in range(4):
        z = (jnp.dot(h, mlp_w_ref[i], preferred_element_type=jnp.float32)
             + mlp_b_ref[i][None, :])
        h = (z * jax.nn.sigmoid(z)).astype(jnp.bfloat16)            # SiLU
    t = (jnp.dot(h, mlp_w_ref[4], preferred_element_type=jnp.float32)
         + mlp_b_ref[4][None, :])

    # logmap0(expmap0(t)) == t, so the tangent features every GCN layer consumes
    # (graph_node is loop-invariant -- the module quirk) are just the MLP output.
    t16 = t.astype(jnp.bfloat16)

    # Neighbor 'sum' aggregation for ALL packed graphs as one well-shaped bf16
    # matmul against the block-diagonal A^T (zero off-diagonal blocks keep the
    # graphs independent; the wasted FLOPs are free at this size).
    agg = jnp.dot(adj_ref[0], t16, preferred_element_type=jnp.float32)

    # Only GCN layer 3 reaches the output; hyperbolic_ReLU + final logmap0 reduce
    # to a plain leaky_relu in tangent space.  One fused K=2E matmul.
    cat = jnp.concatenate([t16, agg.astype(jnp.bfloat16)], axis=-1)  # (M, 2E)
    y = jnp.dot(cat, gw_ref[...], preferred_element_type=jnp.float32) + gb_ref[...]
    y = jnp.where(y >= 0, y, LEAKY_SLOPE * y)                        # leaky_relu
    o_ref[...] = y.reshape(Tb, S, E)


def _choose_tb(B, S, target_m=256):
    """Graphs per grid step: fill the MXU M-dim (M = Tb*S >= 256) per step, keep
    M a multiple of 8 sublanes, and only produce a multi-step grid when every
    step still gets M >= target_m (the v7x megacore case)."""
    tb = min(B, max(1, -(-target_m // S)))         # cdiv(target_m, S), capped at B
    step = 8 // math.gcd(S, 8)                     # keep Tb*S % 8 == 0
    tb = -(-tb // step) * step
    return min(tb, -(-B // step) * step)


def text_graph_forward(tokens, edge, params):
    tok_emb = params["token_emb"]                  # (V, E) f32
    pos_emb = params["pos_emb"]                    # (77, E) f32
    B, S = tokens.shape
    E = tok_emb.shape[1]

    # Glue: embedding gathers + positional add (eval-mode dropout == identity).
    x = (jnp.take(tok_emb, tokens, axis=0) + pos_emb[None, :S, :]).astype(jnp.float32)

    # Binarize + transpose the adjacency here (fuses with the cast, no extra HBM
    # round trip); 0/1 values lose nothing in bf16.
    adjT = jnp.swapaxes((edge != 0).astype(jnp.bfloat16), 1, 2)      # per-graph A^T

    Tb = _choose_tb(B, S)
    Bp = -(-B // Tb) * Tb
    if Bp != B:                                    # pad batch to a multiple of Tb
        x = jnp.pad(x, ((0, Bp - B), (0, 0), (0, 0)))
        adjT = jnp.pad(adjT, ((0, Bp - B), (0, 0), (0, 0)))
    G = Bp // Tb
    M = Tb * S

    # Block-diagonal A^T per grid step so one (M, M) @ (M, E) matmul aggregates
    # all Tb packed graphs at once.
    eye = jnp.eye(Tb, dtype=jnp.bfloat16)
    adj_blk = jnp.einsum("bc,gbij->gbicj", eye,
                         adjT.reshape(G, Tb, S, S)).reshape(G, M, M)

    mlp_w, mlp_b = params["mlp_w"], params["mlp_b"]
    gcn_w3 = params["gcn_w"][-1]                   # (2E, E): layers 0-2 never reach the output
    gcn_b3 = params["gcn_b"][-1:]                  # (1, E)

    w_bytes = mlp_w.size * mlp_w.dtype.itemsize + gcn_w3.size * gcn_w3.dtype.itemsize

    def w_spec(shape, index_map):
        # Grid-invariant weights: single-buffer only when double-buffering them
        # would stress VMEM (v7x has 64 MiB); a no-op at small E.
        if 2 * w_bytes > _WEIGHT_DB_BUDGET:
            return pl.BlockSpec(shape, index_map, pipeline_mode=pl.Buffered(1))
        return pl.BlockSpec(shape, index_map)

    out = pl.pallas_call(
        text_graph_kernel,
        out_shape=jax.ShapeDtypeStruct((Bp, S, E), jnp.float32),
        grid_spec=pltpu.PrefetchScalarGridSpec(
            num_scalar_prefetch=0,
            grid=(G,),
            in_specs=[
                pl.BlockSpec((Tb, S, E), lambda b: (b, 0, 0)),     # packed features (f32)
                pl.BlockSpec((1, M, M), lambda b: (b, 0, 0)),      # block-diag A^T (bf16)
                w_spec((5, E, E), lambda b: (0, 0, 0)),            # MLP weights (bf16)
                pl.BlockSpec((5, E), lambda b: (0, 0)),            # MLP biases (f32)
                w_spec((2 * E, E), lambda b: (0, 0)),              # GCN layer-3 weight (bf16)
                pl.BlockSpec((1, E), lambda b: (0, 0)),            # GCN layer-3 bias (f32)
            ],
            out_specs=pl.BlockSpec((Tb, S, E), lambda b: (b, 0, 0)),
        ),
        compiler_params=pltpu.CompilerParams(
            dimension_semantics=("parallel",)),
    )(x, adj_blk, mlp_w, mlp_b, gcn_w3, gcn_b3)
    return out[:B]


def init_params(key, num_tokens, n_embed):
    ks = jax.random.split(key, 7)
    lim = 1.0 / float(n_embed) ** 0.5
    p = {}
    p["token_emb"] = 0.02 * jax.random.normal(ks[0], (num_tokens, n_embed), jnp.float32)
    p["pos_emb"] = 0.02 * jax.random.normal(ks[1], (77, n_embed), jnp.float32)
    # Matmul-side weights stored in bf16 (native MXU dtype, half the HBM bytes).
    p["mlp_w"] = jax.random.uniform(ks[2], (5, n_embed, n_embed),
                                    jnp.float32, -lim, lim).astype(jnp.bfloat16)
    p["mlp_b"] = jax.random.uniform(ks[3], (5, n_embed), jnp.float32, -lim, lim)
    wr = jax.random.uniform(ks[4], (4, n_embed, n_embed), jnp.float32, -lim, lim)
    wn = jax.random.uniform(ks[5], (4, n_embed, n_embed), jnp.float32, -lim, lim)
    # Pre-concatenate [W_root; W_nbr] -> one K=2E matmul per GCN layer.
    p["gcn_w"] = jnp.concatenate([wr, wn], axis=1).astype(jnp.bfloat16)   # (4, 2E, E)
    p["gcn_b"] = jax.random.uniform(ks[6], (4, n_embed), jnp.float32, -lim, lim)
    return p


if __name__ == "__main__":
    B, S, E = 32, 8, 128          # batch, seq (<= 77), n_embed
    NUM_TOKENS = 100
    key = jax.random.PRNGKey(0)
    k_tok, k_edge, k_par = jax.random.split(key, 3)

    tokens = jax.random.randint(k_tok, (B, S), 0, NUM_TOKENS)
    edge = (jax.random.uniform(k_edge, (B, S, S)) < 0.3).astype(jnp.float32)
    params = init_params(k_par, NUM_TOKENS, E)

    out = text_graph_forward(tokens, edge, params)
    out = jax.block_until_ready(out)
    assert out.shape == (B, S, E) and out.dtype == jnp.float32
    assert bool(jnp.all(jnp.isfinite(out)))
    print("KERNEL_OK")
</pallas_src>

<mosaic_0001>
module attributes {stable_mosaic.version = 11 : i64} {
  func.func @text_graph_kernel(%arg0: i32, %arg1: memref<32x8x128xf32, #tpu.memory_space<vmem>>, %arg2: memref<1x256x256xbf16, #tpu.memory_space<vmem>>, %arg3: memref<5x128x128xbf16, #tpu.memory_space<vmem>>, %arg4: memref<5x128xf32, #tpu.memory_space<vmem>>, %arg5: memref<256x128xbf16, #tpu.memory_space<vmem>>, %arg6: memref<1x128xf32, #tpu.memory_space<vmem>>, %arg7: memref<32x8x128xf32, #tpu.memory_space<vmem>>) attributes {dimension_semantics = [#tpu.dimension_semantics<parallel>], iteration_bounds = array<i64: 1>, scalar_prefetch = 0 : i64, scratch_operands = 0 : i64, tpu.core_type = #tpu.core_type<tc>, window_params = [{transform_indices = @transform_0, window_bounds = array<i64: 32, 8, 128>}, {transform_indices = @transform_1, window_bounds = array<i64: 1, 256, 256>}, {pipeline_mode = #tpu.pipeline_mode<synchronous>, transform_indices = @transform_2, window_bounds = array<i64: 5, 128, 128>}, {pipeline_mode = #tpu.pipeline_mode<synchronous>, transform_indices = @transform_3, window_bounds = array<i64: 5, 128>}, {pipeline_mode = #tpu.pipeline_mode<synchronous>, transform_indices = @transform_4, window_bounds = array<i64: 256, 128>}, {pipeline_mode = #tpu.pipeline_mode<synchronous>, transform_indices = @transform_5, window_bounds = array<i64: 1, 128>}, {transform_indices = @transform_6, window_bounds = array<i64: 32, 8, 128>}]} {
    %c0 = arith.constant 0 : index
    %c0_0 = arith.constant 0 : index
    %c0_1 = arith.constant 0 : index
    %0 = vector.load %arg1[%c0, %c0_0, %c0_1] : memref<32x8x128xf32, #tpu.memory_space<vmem>>, vector<32x8x128xf32>
    %1 = vector.shape_cast %0 : vector<32x8x128xf32> to vector<256x128xf32>
    %2 = arith.truncf %1 : vector<256x128xf32> to vector<256x128xbf16>
    %c0_2 = arith.constant 0 : index
    %c0_3 = arith.constant 0 : index
    %c0_4 = arith.constant 0 : index
    %3 = vector.load %arg3[%c0_2, %c0_3, %c0_4] : memref<5x128x128xbf16, #tpu.memory_space<vmem>>, vector<1x128x128xbf16>
    %4 = vector.shape_cast %3 : vector<1x128x128xbf16> to vector<128x128xbf16>
    %cst = arith.constant dense<0.000000e+00> : vector<256x128xf32>
    %5 = tpu.matmul %2, %4, %cst {dimension_numbers = #tpu.dot_dimension_numbers<[1], [0], [0], [1], [0, 0, 1, 1], [], []>} : vector<256x128xbf16>, vector<128x128xbf16>, vector<256x128xf32> -> vector<256x128xf32>
    %c0_5 = arith.constant 0 : index
    %c0_6 = arith.constant 0 : index
    %6 = vector.load %arg4[%c0_5, %c0_6] : memref<5x128xf32, #tpu.memory_space<vmem>>, vector<1x128xf32>
    %7 = vector.shape_cast %6 : vector<1x128xf32> to vector<128xf32>
    %8 = vector.shape_cast %7 : vector<128xf32> to vector<1x128xf32>
    %9 = vector.broadcast %8 : vector<1x128xf32> to vector<256x128xf32>
    %10 = arith.addf %5, %9 : vector<256x128xf32>
    %11 = arith.negf %10 : vector<256x128xf32>
    %12 = math.exp %11 : vector<256x128xf32>
    %cst_7 = arith.constant 1.000000e+00 : f32
    %13 = vector.broadcast %cst_7 : f32 to vector<256x128xf32>
    %14 = arith.addf %13, %12 : vector<256x128xf32>
    %15 = arith.divf %13, %14 : vector<256x128xf32>
    %16 = arith.mulf %10, %15 : vector<256x128xf32>
    %17 = arith.truncf %16 : vector<256x128xf32> to vector<256x128xbf16>
    %c1 = arith.constant 1 : index
    %c0_8 = arith.constant 0 : index
    %c0_9 = arith.constant 0 : index
    %18 = vector.load %arg3[%c1, %c0_8, %c0_9] : memref<5x128x128xbf16, #tpu.memory_space<vmem>>, vector<1x128x128xbf16>
    %19 = vector.shape_cast %18 : vector<1x128x128xbf16> to vector<128x128xbf16>
    %cst_10 = arith.constant dense<0.000000e+00> : vector<256x128xf32>
    %20 = tpu.matmul %17, %19, %cst_10 {dimension_numbers = #tpu.dot_dimension_numbers<[1], [0], [0], [1], [0, 0, 1, 1], [], []>} : vector<256x128xbf16>, vector<128x128xbf16>, vector<256x128xf32> -> vector<256x128xf32>
    %c1_11 = arith.constant 1 : index
    %c0_12 = arith.constant 0 : index
    %21 = vector.load %arg4[%c1_11, %c0_12] : memref<5x128xf32, #tpu.memory_space<vmem>>, vector<1x128xf32>
    %22 = vector.shape_cast %21 : vector<1x128xf32> to vector<128xf32>
    %23 = vector.shape_cast %22 : vector<128xf32> to vector<1x128xf32>
    %24 = vector.broadcast %23 : vector<1x128xf32> to vector<256x128xf32>
    %25 = arith.addf %20, %24 : vector<256x128xf32>
    %26 = arith.negf %25 : vector<256x128xf32>
    %27 = math.exp %26 : vector<256x128xf32>
    %cst_13 = arith.constant 1.000000e+00 : f32
    %28 = vector.broadcast %cst_13 : f32 to vector<256x128xf32>
    %29 = arith.addf %28, %27 : vector<256x128xf32>
    %30 = arith.divf %28, %29 : vector<256x128xf32>
    %31 = arith.mulf %25, %30 : vector<256x128xf32>
    %32 = arith.truncf %31 : vector<256x128xf32> to vector<256x128xbf16>
    %c2 = arith.constant 2 : index
    %c0_14 = arith.constant 0 : index
    %c0_15 = arith.constant 0 : index
    %33 = vector.load %arg3[%c2, %c0_14, %c0_15] : memref<5x128x128xbf16, #tpu.memory_space<vmem>>, vector<1x128x128xbf16>
    %34 = vector.shape_cast %33 : vector<1x128x128xbf16> to vector<128x128xbf16>
    %cst_16 = arith.constant dense<0.000000e+00> : vector<256x128xf32>
    %35 = tpu.matmul %32, %34, %cst_16 {dimension_numbers = #tpu.dot_dimension_numbers<[1], [0], [0], [1], [0, 0, 1, 1], [], []>} : vector<256x128xbf16>, vector<128x128xbf16>, vector<256x128xf32> -> vector<256x128xf32>
    %c2_17 = arith.constant 2 : index
    %c0_18 = arith.constant 0 : index
    %36 = vector.load %arg4[%c2_17, %c0_18] : memref<5x128xf32, #tpu.memory_space<vmem>>, vector<1x128xf32>
    %37 = vector.shape_cast %36 : vector<1x128xf32> to vector<128xf32>
    %38 = vector.shape_cast %37 : vector<128xf32> to vector<1x128xf32>
    %39 = vector.broadcast %38 : vector<1x128xf32> to vector<256x128xf32>
    %40 = arith.addf %35, %39 : vector<256x128xf32>
    %41 = arith.negf %40 : vector<256x128xf32>
    %42 = math.exp %41 : vector<256x128xf32>
    %cst_19 = arith.constant 1.000000e+00 : f32
    %43 = vector.broadcast %cst_19 : f32 to vector<256x128xf32>
    %44 = arith.addf %43, %42 : vector<256x128xf32>
    %45 = arith.divf %43, %44 : vector<256x128xf32>
    %46 = arith.mulf %40, %45 : vector<256x128xf32>
    %47 = arith.truncf %46 : vector<256x128xf32> to vector<256x128xbf16>
    %c3 = arith.constant 3 : index
    %c0_20 = arith.constant 0 : index
    %c0_21 = arith.constant 0 : index
    %48 = vector.load %arg3[%c3, %c0_20, %c0_21] : memref<5x128x128xbf16, #tpu.memory_space<vmem>>, vector<1x128x128xbf16>
    %49 = vector.shape_cast %48 : vector<1x128x128xbf16> to vector<128x128xbf16>
    %cst_22 = arith.constant dense<0.000000e+00> : vector<256x128xf32>
    %50 = tpu.matmul %47, %49, %cst_22 {dimension_numbers = #tpu.dot_dimension_numbers<[1], [0], [0], [1], [0, 0, 1, 1], [], []>} : vector<256x128xbf16>, vector<128x128xbf16>, vector<256x128xf32> -> vector<256x128xf32>
    %c3_23 = arith.constant 3 : index
    %c0_24 = arith.constant 0 : index
    %51 = vector.load %arg4[%c3_23, %c0_24] : memref<5x128xf32, #tpu.memory_space<vmem>>, vector<1x128xf32>
    %52 = vector.shape_cast %51 : vector<1x128xf32> to vector<128xf32>
    %53 = vector.shape_cast %52 : vector<128xf32> to vector<1x128xf32>
    %54 = vector.broadcast %53 : vector<1x128xf32> to vector<256x128xf32>
    %55 = arith.addf %50, %54 : vector<256x128xf32>
    %56 = arith.negf %55 : vector<256x128xf32>
    %57 = math.exp %56 : vector<256x128xf32>
    %cst_25 = arith.constant 1.000000e+00 : f32
    %58 = vector.broadcast %cst_25 : f32 to vector<256x128xf32>
    %59 = arith.addf %58, %57 : vector<256x128xf32>
    %60 = arith.divf %58, %59 : vector<256x128xf32>
    %61 = arith.mulf %55, %60 : vector<256x128xf32>
    %62 = arith.truncf %61 : vector<256x128xf32> to vector<256x128xbf16>
    %c4 = arith.constant 4 : index
    %c0_26 = arith.constant 0 : index
    %c0_27 = arith.constant 0 : index
    %63 = vector.load %arg3[%c4, %c0_26, %c0_27] : memref<5x128x128xbf16, #tpu.memory_space<vmem>>, vector<1x128x128xbf16>
    %64 = vector.shape_cast %63 : vector<1x128x128xbf16> to vector<128x128xbf16>
    %cst_28 = arith.constant dense<0.000000e+00> : vector<256x128xf32>
    %65 = tpu.matmul %62, %64, %cst_28 {dimension_numbers = #tpu.dot_dimension_numbers<[1], [0], [0], [1], [0, 0, 1, 1], [], []>} : vector<256x128xbf16>, vector<128x128xbf16>, vector<256x128xf32> -> vector<256x128xf32>
    %c4_29 = arith.constant 4 : index
    %c0_30 = arith.constant 0 : index
    %66 = vector.load %arg4[%c4_29, %c0_30] : memref<5x128xf32, #tpu.memory_space<vmem>>, vector<1x128xf32>
    %67 = vector.shape_cast %66 : vector<1x128xf32> to vector<128xf32>
    %68 = vector.shape_cast %67 : vector<128xf32> to vector<1x128xf32>
    %69 = vector.broadcast %68 : vector<1x128xf32> to vector<256x128xf32>
    %70 = arith.addf %65, %69 : vector<256x128xf32>
    %71 = arith.truncf %70 : vector<256x128xf32> to vector<256x128xbf16>
    %c0_31 = arith.constant 0 : index
    %c0_32 = arith.constant 0 : index
    %c0_33 = arith.constant 0 : index
    %72 = vector.load %arg2[%c0_31, %c0_32, %c0_33] : memref<1x256x256xbf16, #tpu.memory_space<vmem>>, vector<1x256x256xbf16>
    %73 = vector.shape_cast %72 : vector<1x256x256xbf16> to vector<256x256xbf16>
    %cst_34 = arith.constant dense<0.000000e+00> : vector<256x128xf32>
    %74 = tpu.matmul %73, %71, %cst_34 {dimension_numbers = #tpu.dot_dimension_numbers<[1], [0], [0], [1], [0, 0, 1, 1], [], []>} : vector<256x256xbf16>, vector<256x128xbf16>, vector<256x128xf32> -> vector<256x128xf32>
    %75 = arith.truncf %74 : vector<256x128xf32> to vector<256x128xbf16>
    %76 = tpu.concatenate %71, %75 in 1 : vector<256x128xbf16>, vector<256x128xbf16> -> vector<256x256xbf16>
    %c0_35 = arith.constant 0 : index
    %c0_36 = arith.constant 0 : index
    %77 = vector.load %arg5[%c0_35, %c0_36] : memref<256x128xbf16, #tpu.memory_space<vmem>>, vector<256x128xbf16>
    %cst_37 = arith.constant dense<0.000000e+00> : vector<256x128xf32>
    %78 = tpu.matmul %76, %77, %cst_37 {dimension_numbers = #tpu.dot_dimension_numbers<[1], [0], [0], [1], [0, 0, 1, 1], [], []>} : vector<256x256xbf16>, vector<256x128xbf16>, vector<256x128xf32> -> vector<256x128xf32>
    %c0_38 = arith.constant 0 : index
    %c0_39 = arith.constant 0 : index
    %79 = vector.load %arg6[%c0_38, %c0_39] : memref<1x128xf32, #tpu.memory_space<vmem>>, vector<1x128xf32>
    %80 = vector.broadcast %79 : vector<1x128xf32> to vector<256x128xf32>
    %81 = arith.addf %78, %80 : vector<256x128xf32>
    %cst_40 = arith.constant 0.000000e+00 : f32
    %82 = vector.broadcast %cst_40 : f32 to vector<256x128xf32>
    %83 = arith.cmpf oge, %81, %82 : vector<256x128xf32>
    %cst_41 = arith.constant 0.00999999977 : f32
    %84 = vector.broadcast %cst_41 : f32 to vector<256x128xf32>
    %85 = arith.mulf %84, %81 : vector<256x128xf32>
    %86 = arith.select %83, %81, %85 : vector<256x128xi1>, vector<256x128xf32>
    %87 = vector.shape_cast %86 : vector<256x128xf32> to vector<32x8x128xf32>
    %c0_42 = arith.constant 0 : index
    %c0_43 = arith.constant 0 : index
    %c0_44 = arith.constant 0 : index
    %88 = vector.load %arg7[%c0_42, %c0_43, %c0_44] : memref<32x8x128xf32, #tpu.memory_space<vmem>>, vector<32x8x128xf32>
    tpu.vector_store %arg7[%c0_42, %c0_43, %c0_44], %87 {strides = array<i32>} : memref<32x8x128xf32, #tpu.memory_space<vmem>>, vector<32x8x128xf32>,
    return
  }
  func.func @transform_0(%arg0: i32) -> (i32, i32, i32) {
    %c0_i32 = arith.constant 0 : i32
    %c0_i32_0 = arith.constant 0 : i32
    %c0_i32_1 = arith.constant 0 : i32
    return %arg0, %c0_i32, %c0_i32_0 : i32, i32, i32
  }
  func.func @transform_1(%arg0: i32) -> (i32, i32, i32) {
    %c0_i32 = arith.constant 0 : i32
    %c0_i32_0 = arith.constant 0 : i32
    %c0_i32_1 = arith.constant 0 : i32
    return %arg0, %c0_i32, %c0_i32_0 : i32, i32, i32
  }
  func.func @transform_2(%arg0: i32) -> (i32, i32, i32) {
    %c0_i32 = arith.constant 0 : i32
    %c0_i32_0 = arith.constant 0 : i32
    %c0_i32_1 = arith.constant 0 : i32
    %c0_i32_2 = arith.constant 0 : i32
    return %c0_i32, %c0_i32_0, %c0_i32_1 : i32, i32, i32
  }
  func.func @transform_3(%arg0: i32) -> (i32, i32) {
    %c0_i32 = arith.constant 0 : i32
    %c0_i32_0 = arith.constant 0 : i32
    %c0_i32_1 = arith.constant 0 : i32
    return %c0_i32, %c0_i32_0 : i32, i32
  }
  func.func @transform_4(%arg0: i32) -> (i32, i32) {
    %c0_i32 = arith.constant 0 : i32
    %c0_i32_0 = arith.constant 0 : i32
    %c0_i32_1 = arith.constant 0 : i32
    return %c0_i32, %c0_i32_0 : i32, i32
  }
  func.func @transform_5(%arg0: i32) -> (i32, i32) {
    %c0_i32 = arith.constant 0 : i32
    %c0_i32_0 = arith.constant 0 : i32
    %c0_i32_1 = arith.constant 0 : i32
    return %c0_i32, %c0_i32_0 : i32, i32
  }
  func.func @transform_6(%arg0: i32) -> (i32, i32, i32) {
    %c0_i32 = arith.constant 0 : i32
    %c0_i32_0 = arith.constant 0 : i32
    %c0_i32_1 = arith.constant 0 : i32
    return %arg0, %c0_i32, %c0_i32_0 : i32, i32, i32
  }
}

</mosaic_0001>

<llo_original>
// kernel: tpu_custom_call.1
$region0: #{tpu_custom_call.1}
  #allocation0 [shape = 'u32[]', space=smem, size = 0x4, offset = 0x4, fixed_abs, tag = 'smem constant byte address 0x4 - core index']
  #allocation1 [shape = 'u32[72,128]{1,0:T(1,128)}', space=vmem, size = 0x9000, scoped, tag = 'internal scratch']
  %s0 = inlined_call_operand.hbm [shape: f32[32,8,128], index: 0, kind: input, shape index: {}]
  %s1 = inlined_call_operand.hbm [shape: bf16[1,256,256], index: 1, kind: input, shape index: {}]
  %s2 = inlined_call_operand.hbm [shape: bf16[5,128,128], index: 2, kind: input, shape index: {}]
  %s3 = inlined_call_operand.hbm [shape: f32[5,128], index: 3, kind: input, shape index: {}]
  %s4 = inlined_call_operand.hbm [shape: bf16[256,128], index: 4, kind: input, shape index: {}]
  %s5 = inlined_call_operand.vmem [shape: f32[1,128], index: 5, kind: input, shape index: {}]
  %s6 = inlined_call_operand.hbm [shape: f32[32,8,128], index: 6, kind: output, shape index: {}]
  %s7 = sld [smem:[#allocation0]]
  $region54: #{tpu_custom_call.1} parent=0
    _
  %s9 = ssub.s32 1, %s7
  %s10 = scalar_select 0, %s9, %s7
  $region1: #{tpu_custom_call.1} parent=0
    #allocation2 [shape = 'u8[131072]{0}', space=vmem, size = 0x20000, scoped, tag = 'input window, operand 0, single buffered']
    #allocation3 [shape = 's32[1]{0}', space=sflag, size = 0x4, scoped, tag = 'scoped memory for tpu_custom_call.1']
    #allocation4 [shape = 's32[1]{0}', space=sflag, size = 0x4, scoped, tag = 'scoped memory for tpu_custom_call.1']
    #allocation5 [shape = 'u8[131072]{0}', space=vmem, size = 0x20000, scoped, tag = 'input window, operand 1, single buffered']
    #allocation6 [shape = 's32[1]{0}', space=sflag, size = 0x4, scoped, tag = 'scoped memory for tpu_custom_call.1']
    #allocation7 [shape = 'u8[163840]{0}', space=vmem, size = 0x28000, scoped, tag = 'input window, operand 2, single buffered']
    #allocation8 [shape = 'u8[4096]{0}', space=vmem, size = 0x1000, scoped, tag = 'input window, operand 3, single buffered']
    #allocation9 [shape = 's32[1]{0}', space=sflag, size = 0x4, scoped, tag = 'scoped memory for tpu_custom_call.1']
    #allocation10 [shape = 'u8[65536]{0}', space=vmem, size = 0x10000, scoped, tag = 'input window, operand 4, single buffered']
    #allocation11 [shape = 'u8[131072]{0}', space=vmem, size = 0x20000, scoped, tag = 'output window, operand 0, single buffered']
    %11 = vsyncpa [#allocation3], 0
    %12 = vsyncpa [#allocation6], 0
    %13 = vsyncpa [#allocation9], 0
    %14 = vsyncpa [#allocation4], 0
    // Predicated region
    $region2: #{tpu_custom_call.1} parent=1 // pred_check
      _
    $region3: #{tpu_custom_call.1} parent=1 // pred_check_branch
      %16 = sbr.rel (0) target = $region5
    $region4: #{tpu_custom_call.1} parent=1 // pred_region
      %18 = vsyncadd [#allocation3], 0
      %s19 = sshll.u32 %s0, 4
      %s20 = int_to_ptr.hbm [resolvable:$true] %s19
      %s21 = sshll.u32 [#allocation2], 4
      %s22 = int_to_ptr.vmem [resolvable:$true] %s21
      %27 = dma.hbm_to_vmem [thread:$0]  %s20, 4096, %s22, [#allocation3], 128, 128, 8
    $region5: #{tpu_custom_call.1} parent=1 // pred_fallthru
      _
    // Predicated region
    $region6: #{tpu_custom_call.1} parent=1 // pred_check
      _
    $region7: #{tpu_custom_call.1} parent=1 // pred_check_branch
      %29 = sbr.rel (0) target = $region9
    $region8: #{tpu_custom_call.1} parent=1 // pred_region
      %31 = vsyncadd [#allocation6], 0
      %s32 = sshll.u32 %s1, 4
      %s33 = int_to_ptr.hbm [resolvable:$true] %s32
      %s34 = sshll.u32 [#allocation5], 4
      %s35 = int_to_ptr.vmem [resolvable:$true] %s34
      %40 = dma.hbm_to_vmem [thread:$0]  %s33, 4096, %s35, [#allocation6], 128, 128, 8
    $region9: #{tpu_custom_call.1} parent=1 // pred_fallthru
      _
    // Predicated region
    $region10: #{tpu_custom_call.1} parent=1 // pred_check
      _
    $region11: #{tpu_custom_call.1} parent=1 // pred_check_branch
      %42 = sbr.rel (0) target = $region13
    $region12: #{tpu_custom_call.1} parent=1 // pred_region
      %44 = vsyncadd [#allocation6], 0
      %s45 = sshll.u32 %s2, 4
      %s46 = int_to_ptr.hbm [resolvable:$true] %s45
      %s47 = sshll.u32 [#allocation7], 4
      %s48 = int_to_ptr.vmem [resolvable:$true] %s47
      %53 = dma.hbm_to_vmem [thread:$0]  %s46, 5120, %s48, [#allocation6], 64, 64, 4
    $region13: #{tpu_custom_call.1} parent=1 // pred_fallthru
      _
    // Predicated region
    $region14: #{tpu_custom_call.1} parent=1 // pred_check
      _
    $region15: #{tpu_custom_call.1} parent=1 // pred_check_branch
      %55 = sbr.rel (0) target = $region17
    $region16: #{tpu_custom_call.1} parent=1 // pred_region
      %57 = vsyncadd [#allocation9], 0
      %s59 = sshll.u32 %s3, 4
      %s60 = int_to_ptr.hbm [resolvable:$true] %s59
      %s61 = sshll.u32 [#allocation8], 4
      %s62 = int_to_ptr.vmem [resolvable:$true] %s61
      %64 = dma.hbm_to_vmem [thread:$0]  %s60, 128, %s62, [#allocation9]
    $region17: #{tpu_custom_call.1} parent=1 // pred_fallthru
      _
    // Predicated region
    $region18: #{tpu_custom_call.1} parent=1 // pred_check
      _
    $region19: #{tpu_custom_call.1} parent=1 // pred_check_branch
      %66 = sbr.rel (0) target = $region21
    $region20: #{tpu_custom_call.1} parent=1 // pred_region
      %68 = vsyncadd [#allocation9], 0
      %s69 = sshll.u32 %s4, 4
      %s70 = int_to_ptr.hbm [resolvable:$true] %s69
      %s71 = sshll.u32 [#allocation10], 4
      %s72 = int_to_ptr.vmem [resolvable:$true] %s71
      %77 = dma.hbm_to_vmem [thread:$0]  %s70, 2048, %s72, [#allocation9], 64, 64, 4
    $region21: #{tpu_custom_call.1} parent=1 // pred_fallthru
      _
    // Predicated region
    $region22: #{tpu_custom_call.1} parent=1 // pred_check
      _
    $region23: #{tpu_custom_call.1} parent=1 // pred_check_branch
      %79 = sbr.rel (0) target = $region25
    $region24: #{tpu_custom_call.1} parent=1 // pred_region
      _
    $region25: #{tpu_custom_call.1} parent=1 // pred_fallthru
      _
    // Predicated region
    $region26: #{tpu_custom_call.1} parent=1 // pred_check
      _
    $region27: #{tpu_custom_call.1} parent=1 // pred_check_branch
      %81 = sbr.rel (0) target = $region29
    $region28: #{tpu_custom_call.1} parent=1 // pred_region
      %83 = dma.done [#allocation3], 4096
    $region29: #{tpu_custom_call.1} parent=1 // pred_fallthru
      _
    // Predicated region
    $region30: #{tpu_custom_call.1} parent=1 // pred_check
      _
    $region31: #{tpu_custom_call.1} parent=1 // pred_check_branch
      %85 = sbr.rel (0) target = $region33
    $region32: #{tpu_custom_call.1} parent=1 // pred_region
      %87 = dma.done [#allocation6], 4096
    $region33: #{tpu_custom_call.1} parent=1 // pred_fallthru
      _
    // Predicated region
    $region34: #{tpu_custom_call.1} parent=1 // pred_check
      _
    $region35: #{tpu_custom_call.1} parent=1 // pred_check_branch
      %89 = sbr.rel (0) target = $region37
    $region36: #{tpu_custom_call.1} parent=1 // pred_region
      %91 = dma.done [#allocation6], 5120
    $region37: #{tpu_custom_call.1} parent=1 // pred_fallthru
      _
    // Predicated region
    $region38: #{tpu_custom_call.1} parent=1 // pred_check
      _
    $region39: #{tpu_custom_call.1} parent=1 // pred_check_branch
      %93 = sbr.rel (0) target = $region41
    $region40: #{tpu_custom_call.1} parent=1 // pred_region
      %95 = dma.done [#allocation9], 128
    $region41: #{tpu_custom_call.1} parent=1 // pred_fallthru
      _
    // Predicated region
    $region42: #{tpu_custom_call.1} parent=1 // pred_check
      _
    $region43: #{tpu_custom_call.1} parent=1 // pred_check_branch
      %97 = sbr.rel (0) target = $region45
    $region44: #{tpu_custom_call.1} parent=1 // pred_region
      %99 = dma.done [#allocation9], 2048
    $region45: #{tpu_custom_call.1} parent=1 // pred_fallthru
      _
    %v100 = vld [vmem:[#allocation2] sm:$0xff]
    %v101 = vld [vmem:[#allocation2 + $0x8] sm:$0xff]
    %v102 = vld [vmem:[#allocation2 + $0x10] sm:$0xff]
    %v103 = vld [vmem:[#allocation2 + $0x18] sm:$0xff]
    %v104 = vld [vmem:[#allocation2 + $0x20] sm:$0xff]
    %v105 = vld [vmem:[#allocation2 + $0x28] sm:$0xff]
    %v106 = vld [vmem:[#allocation2 + $0x30] sm:$0xff]
    %v107 = vld [vmem:[#allocation2 + $0x38] sm:$0xff]
    %v108 = vld [vmem:[#allocation2 + $0x40] sm:$0xff]
    %v109 = vld [vmem:[#allocation2 + $0x48] sm:$0xff]
    %v110 = vld [vmem:[#allocation2 + $0x50] sm:$0xff]
    %v111 = vld [vmem:[#allocation2 + $0x58] sm:$0xff]
    %v112 = vld [vmem:[#allocation2 + $0x60] sm:$0xff]
    %v113 = vld [vmem:[#allocation2 + $0x68] sm:$0xff]
    %v114 = vld [vmem:[#allocation2 + $0x70] sm:$0xff]
    %v115 = vld [vmem:[#allocation2 + $0x78] sm:$0xff]
    %v116 = vld [vmem:[#allocation2 + $0x80] sm:$0xff]
    %v117 = vld [vmem:[#allocation2 + $0x88] sm:$0xff]
    %v118 = vld [vmem:[#allocation2 + $0x90] sm:$0xff]
    %v119 = vld [vmem:[#allocation2 + $0x98] sm:$0xff]
    %v120 = vld [vmem:[#allocation2 + $0xa0] sm:$0xff]
    %v121 = vld [vmem:[#allocation2 + $0xa8] sm:$0xff]
    %v122 = vld [vmem:[#allocation2 + $0xb0] sm:$0xff]
    %v123 = vld [vmem:[#allocation2 + $0xb8] sm:$0xff]
    %v124 = vld [vmem:[#allocation2 + $0xc0] sm:$0xff]
    %v125 = vld [vmem:[#allocation2 + $0xc8] sm:$0xff]
    %v126 = vld [vmem:[#allocation2 + $0xd0] sm:$0xff]
    %v127 = vld [vmem:[#allocation2 + $0xd8] sm:$0xff]
    %v128 = vld [vmem:[#allocation2 + $0xe0] sm:$0xff]
    %v129 = vld [vmem:[#allocation2 + $0xe8] sm:$0xff]
    %v130 = vld [vmem:[#allocation2 + $0xf0] sm:$0xff]
    %v131 = vld [vmem:[#allocation2 + $0xf8] sm:$0xff]
    %v132 = vpack.c.bf16 %v101, %v100
    %v133 = vpack.c.bf16 %v103, %v102
    %v134 = vpack.c.bf16 %v105, %v104
    %v135 = vpack.c.bf16 %v107, %v106
    %v136 = vpack.c.bf16 %v109, %v108
    %v137 = vpack.c.bf16 %v111, %v110
    %v138 = vpack.c.bf16 %v113, %v112
    %v139 = vpack.c.bf16 %v115, %v114
    %v140 = vpack.c.bf16 %v117, %v116
    %v141 = vpack.c.bf16 %v119, %v118
    %v142 = vpack.c.bf16 %v121, %v120
    %v143 = vpack.c.bf16 %v123, %v122
    %v144 = vpack.c.bf16 %v125, %v124
    %v145 = vpack.c.bf16 %v127, %v126
    %v146 = vpack.c.bf16 %v129, %v128
    %v147 = vpack.c.bf16 %v131, %v130
    %v148 = vld [vmem:[#allocation7] sm:$0xf]
    %v149 = vld [vmem:[#allocation7 + $0x4] sm:$0xf]
    %v150 = vld [vmem:[#allocation7 + $0x8] sm:$0xf]
    %v151 = vld [vmem:[#allocation7 + $0xc] sm:$0xf]
    %v152 = vld [vmem:[#allocation7 + $0x10] sm:$0xf]
    %v153 = vld [vmem:[#allocation7 + $0x14] sm:$0xf]
    %v154 = vld [vmem:[#allocation7 + $0x18] sm:$0xf]
    %v155 = vld [vmem:[#allocation7 + $0x1c] sm:$0xf]
    %v156 = vld [vmem:[#allocation7 + $0x20] sm:$0xf]
    %v157 = vld [vmem:[#allocation7 + $0x24] sm:$0xf]
    %v158 = vld [vmem:[#allocation7 + $0x28] sm:$0xf]
    %v159 = vld [vmem:[#allocation7 + $0x2c] sm:$0xf]
    %v160 = vld [vmem:[#allocation7 + $0x30] sm:$0xf]
    %v161 = vld [vmem:[#allocation7 + $0x34] sm:$0xf]
    %v162 = vld [vmem:[#allocation7 + $0x38] sm:$0xf]
    %v163 = vld [vmem:[#allocation7 + $0x3c] sm:$0xf]
    %v164 = vld [vmem:[#allocation8] sm:$0x1]
    %v165 = vperm.slane %v164, 0
    %v182 = vunpack.c.l.b16 %v148
    %v183 = vunpack.c.l.b16 %v149
    %v184 = vunpack.c.l.b16 %v150
    %v185 = vunpack.c.l.b16 %v151
    %v186 = vunpack.c.l.b16 %v152
    %v187 = vunpack.c.l.b16 %v153
    %v188 = vunpack.c.l.b16 %v154
    %v189 = vunpack.c.l.b16 %v155
    %v190 = vunpack.c.l.b16 %v156
    %v191 = vunpack.c.l.b16 %v157
    %v192 = vunpack.c.l.b16 %v158
    %v193 = vunpack.c.l.b16 %v159
    %v194 = vunpack.c.l.b16 %v160
    %v195 = vunpack.c.l.b16 %v161
    %v196 = vunpack.c.l.b16 %v162
    %v197 = vunpack.c.l.b16 %v163
    %v198 = vpack.c.b16 %v183, %v182
    %v199 = vpack.c.b16 %v185, %v184
    %v200 = vpack.c.b16 %v187, %v186
    %v201 = vpack.c.b16 %v189, %v188
    %v202 = vpack.c.b16 %v191, %v190
    %v203 = vpack.c.b16 %v193, %v192
    %v204 = vpack.c.b16 %v195, %v194
    %v205 = vpack.c.b16 %v197, %v196
    %214 = vmatpush.bf16.msra.mxu0 %v205
    %215 = vmatpush.bf16.msra.mxu0 %v204
    %216 = vmatpush.bf16.msra.mxu0 %v203
    %217 = vmatpush.bf16.msra.mxu0 %v202
    %218 = vmatpush.bf16.msra.mxu0 %v201
    %219 = vmatpush.bf16.msra.mxu0 %v200
    %220 = vmatpush.bf16.msra.mxu0 %v199
    %221 = vmatpush.bf16.msra.mxu0 %v198
    %222 = vmatmul.bf16.gmra.mxu0 %v132
    %v223 = vpop.f32.mrf.mxu0
    %v224 = vadd.f32 %v165, %v223
    %v225 = vpop.f32.mrf.mxu0
    %v226 = vadd.f32 %v165, %v225
    %227 = vmatmul.bf16.gmra.mxu0 %v133
    %v228 = vpop.f32.mrf.mxu0
    %v229 = vadd.f32 %v165, %v228
    %v230 = vpop.f32.mrf.mxu0
    %v231 = vadd.f32 %v165, %v230
    %232 = vmatmul.bf16.gmra.mxu0 %v134
    %v233 = vpop.f32.mrf.mxu0
    %v234 = vadd.f32 %v165, %v233
    %v235 = vpop.f32.mrf.mxu0
    %v236 = vadd.f32 %v165, %v235
    %237 = vmatmul.bf16.gmra.mxu0 %v135
    %v238 = vpop.f32.mrf.mxu0
    %v239 = vadd.f32 %v165, %v238
    %v240 = vpop.f32.mrf.mxu0
    %v241 = vadd.f32 %v165, %v240
    %242 = vmatmul.bf16.gmra.mxu0 %v136
    %v243 = vpop.f32.mrf.mxu0
    %v244 = vadd.f32 %v165, %v243
    %v245 = vpop.f32.mrf.mxu0
    %v246 = vadd.f32 %v165, %v245
    %247 = vmatmul.bf16.gmra.mxu0 %v137
    %v248 = vpop.f32.mrf.mxu0
    %v249 = vadd.f32 %v165, %v248
    %v250 = vpop.f32.mrf.mxu0
    %v251 = vadd.f32 %v165, %v250
    %252 = vmatmul.bf16.gmra.mxu0 %v138
    %v253 = vpop.f32.mrf.mxu0
    %v254 = vadd.f32 %v165, %v253
    %v255 = vpop.f32.mrf.mxu0
    %v256 = vadd.f32 %v165, %v255
    %257 = vmatmul.bf16.gmra.mxu0 %v139
    %v258 = vpop.f32.mrf.mxu0
    %v259 = vadd.f32 %v165, %v258
    %v260 = vpop.f32.mrf.mxu0
    %v261 = vadd.f32 %v165, %v260
    %262 = vmatmul.bf16.gmra.mxu0 %v140
    %v263 = vpop.f32.mrf.mxu0
    %v264 = vadd.f32 %v165, %v263
    %v265 = vpop.f32.mrf.mxu0
    %v266 = vadd.f32 %v165, %v265
    %267 = vmatmul.bf16.gmra.mxu0 %v141
    %v268 = vpop.f32.mrf.mxu0
    %v269 = vadd.f32 %v165, %v268
    %v270 = vpop.f32.mrf.mxu0
    %v271 = vadd.f32 %v165, %v270
    %272 = vmatmul.bf16.gmra.mxu0 %v142
    %v273 = vpop.f32.mrf.mxu0
    %v274 = vadd.f32 %v165, %v273
    %v275 = vpop.f32.mrf.mxu0
    %v276 = vadd.f32 %v165, %v275
    %277 = vmatmul.bf16.gmra.mxu0 %v143
    %v278 = vpop.f32.mrf.mxu0
    %v279 = vadd.f32 %v165, %v278
    %v280 = vpop.f32.mrf.mxu0
    %v281 = vadd.f32 %v165, %v280
    %282 = vmatmul.bf16.gmra.mxu0 %v144
    %v283 = vpop.f32.mrf.mxu0
    %v284 = vadd.f32 %v165, %v283
    %v285 = vpop.f32.mrf.mxu0
    %v286 = vadd.f32 %v165, %v285
    %287 = vmatmul.bf16.gmra.mxu0 %v145
    %v288 = vpop.f32.mrf.mxu0
    %v289 = vadd.f32 %v165, %v288
    %v290 = vpop.f32.mrf.mxu0
    %v291 = vadd.f32 %v165, %v290
    %292 = vmatmul.bf16.gmra.mxu0 %v146
    %v293 = vpop.f32.mrf.mxu0
    %v294 = vadd.f32 %v165, %v293
    %v295 = vpop.f32.mrf.mxu0
    %v296 = vadd.f32 %v165, %v295
    %297 = vmatmul.bf16.gmra.mxu0 %v147
    %v298 = vpop.f32.mrf.mxu0
    %v299 = vadd.f32 %v165, %v298
    %v300 = vpop.f32.mrf.mxu0
    %v301 = vadd.f32 %v165, %v300
    %302 = vdwg.mxu0
    %v303 = vxor.u32 %v224, 2147483648
    %v304 = vxor.u32 %v226, 2147483648
    %v305 = vxor.u32 %v229, 2147483648
    %v306 = vxor.u32 %v231, 2147483648
    %v307 = vxor.u32 %v234, 2147483648
    %v308 = vxor.u32 %v236, 2147483648
    %v309 = vxor.u32 %v239, 2147483648
    %v310 = vxor.u32 %v241, 2147483648
    %v311 = vxor.u32 %v244, 2147483648
    %v312 = vxor.u32 %v246, 2147483648
    %v313 = vxor.u32 %v249, 2147483648
    %v314 = vxor.u32 %v251, 2147483648
    %v315 = vxor.u32 %v254, 2147483648
    %v316 = vxor.u32 %v256, 2147483648
    %v317 = vxor.u32 %v259, 2147483648
    %v318 = vxor.u32 %v261, 2147483648
    %v319 = vxor.u32 %v264, 2147483648
    %v320 = vxor.u32 %v266, 2147483648
    %v321 = vxor.u32 %v269, 2147483648
    %v322 = vxor.u32 %v271, 2147483648
    %v323 = vxor.u32 %v274, 2147483648
    %v324 = vxor.u32 %v276, 2147483648
    %v325 = vxor.u32 %v279, 2147483648
    %v326 = vxor.u32 %v281, 2147483648
    %v327 = vxor.u32 %v284, 2147483648
    %v328 = vxor.u32 %v286, 2147483648
    %v329 = vxor.u32 %v289, 2147483648
    %v330 = vxor.u32 %v291, 2147483648
    %v331 = vxor.u32 %v294, 2147483648
    %v332 = vxor.u32 %v296, 2147483648
    %v333 = vxor.u32 %v299, 2147483648
    %v334 = vxor.u32 %v301, 2147483648
    %v335 = vmul.f32 %v303, 1.442695
    %v336 = vpow.pop %v335
    %v337 = vmul.f32 %v304, 1.442695
    %v338 = vpow.pop %v337
    %v339 = vmul.f32 %v305, 1.442695
    %v340 = vpow.pop %v339
    %v341 = vmul.f32 %v306, 1.442695
    %v342 = vpow.pop %v341
    %v343 = vmul.f32 %v307, 1.442695
    %v344 = vpow.pop %v343
    %v345 = vmul.f32 %v308, 1.442695
    %v346 = vpow.pop %v345
    %v347 = vmul.f32 %v309, 1.442695
    %v348 = vpow.pop %v347
    %v349 = vmul.f32 %v310, 1.442695
    %v350 = vpow.pop %v349
    %v351 = vmul.f32 %v311, 1.442695
    %v352 = vpow.pop %v351
    %v353 = vmul.f32 %v312, 1.442695
    %v354 = vpow.pop %v353
    %v355 = vmul.f32 %v313, 1.442695
    %v356 = vpow.pop %v355
    %v357 = vmul.f32 %v314, 1.442695
    %v358 = vpow.pop %v357
    %v359 = vmul.f32 %v315, 1.442695
    %v360 = vpow.pop %v359
    %v361 = vmul.f32 %v316, 1.442695
    %v362 = vpow.pop %v361
    %v363 = vmul.f32 %v317, 1.442695
    %v364 = vpow.pop %v363
    %v365 = vmul.f32 %v318, 1.442695
    %v366 = vpow.pop %v365
    %v367 = vmul.f32 %v319, 1.442695
    %v368 = vpow.pop %v367
    %v369 = vmul.f32 %v320, 1.442695
    %v370 = vpow.pop %v369
    %v371 = vmul.f32 %v321, 1.442695
    %v372 = vpow.pop %v371
    %v373 = vmul.f32 %v322, 1.442695
    %v374 = vpow.pop %v373
    %v375 = vmul.f32 %v323, 1.442695
    %v376 = vpow.pop %v375
    %v377 = vmul.f32 %v324, 1.442695
    %v378 = vpow.pop %v377
    %v379 = vmul.f32 %v325, 1.442695
    %v380 = vpow.pop %v379
    %v381 = vmul.f32 %v326, 1.442695
    %v382 = vpow.pop %v381
    %v383 = vmul.f32 %v327, 1.442695
    %v384 = vpow.pop %v383
    %v385 = vmul.f32 %v328, 1.442695
    %v386 = vpow.pop %v385
    %v387 = vmul.f32 %v329, 1.442695
    %v388 = vpow.pop %v387
    %v389 = vmul.f32 %v330, 1.442695
    %v390 = vpow.pop %v389
    %v391 = vmul.f32 %v331, 1.442695
    %v392 = vpow.pop %v391
    %v393 = vmul.f32 %v332, 1.442695
    %v394 = vpow.pop %v393
    %v395 = vmul.f32 %v333, 1.442695
    %v396 = vpow.pop %v395
    %v397 = vmul.f32 %v334, 1.442695
    %v398 = vpow.pop %v397
    %v399 = vadd.f32 %v336, 1.0
    %v400 = vadd.f32 %v338, 1.0
    %v401 = vadd.f32 %v340, 1.0
    %v402 = vadd.f32 %v342, 1.0
    %v403 = vadd.f32 %v344, 1.0
    %v404 = vadd.f32 %v346, 1.0
    %v405 = vadd.f32 %v348, 1.0
    %v406 = vadd.f32 %v350, 1.0
    %v407 = vadd.f32 %v352, 1.0
    %v408 = vadd.f32 %v354, 1.0
    %v409 = vadd.f32 %v356, 1.0
    %v410 = vadd.f32 %v358, 1.0
    %v411 = vadd.f32 %v360, 1.0
    %v412 = vadd.f32 %v362, 1.0
    %v413 = vadd.f32 %v364, 1.0
    %v414 = vadd.f32 %v366, 1.0
    %v415 = vadd.f32 %v368, 1.0
    %v416 = vadd.f32 %v370, 1.0
    %v417 = vadd.f32 %v372, 1.0
    %v418 = vadd.f32 %v374, 1.0
    %v419 = vadd.f32 %v376, 1.0
    %v420 = vadd.f32 %v378, 1.0
    %v421 = vadd.f32 %v380, 1.0
    %v422 = vadd.f32 %v382, 1.0
    %v423 = vadd.f32 %v384, 1.0
    %v424 = vadd.f32 %v386, 1.0
    %v425 = vadd.f32 %v388, 1.0
    %v426 = vadd.f32 %v390, 1.0
    %v427 = vadd.f32 %v392, 1.0
    %v428 = vadd.f32 %v394, 1.0
    %v429 = vadd.f32 %v396, 1.0
    %v430 = vadd.f32 %v398, 1.0
    %v431 = vrcp.pop %v399
    %v432 = vmul.f32 %v399, %v431
    %v433 = vsub.f32 1.0, %v432
    %v434 = vmul.f32 %v431, %v433
    %v435 = vadd.f32 %v431, %v434
    %vm436 = vweird.f32 %v399
    %vm437 = vweird.f32 %v431
    %vm438 = vmor %vm436, %vm437
    %v439 = vsel %vm438, %v431, %v435
    %v440 = vand.u32 2147483647, %v399
    %vm441 = vcmp.eq.f32.partialorder %v440, 8.507059e+37
    %v442 = vand.u32 %v399, 2147483648
    %v443 = vor.u32 1.1754944e-38, %v442
    %v444 = vsel %vm441, %v443, %v439
    %v445 = vmul.f32 1.0, %v444
    %v446 = vrcp.pop %v400
    %v447 = vmul.f32 %v400, %v446
    %v448 = vsub.f32 1.0, %v447
    %v449 = vmul.f32 %v446, %v448
    %v450 = vadd.f32 %v446, %v449
    %vm451 = vweird.f32 %v400
    %vm452 = vweird.f32 %v446
    %vm453 = vmor %vm451, %vm452
    %v454 = vsel %vm453, %v446, %v450
    %v455 = vand.u32 2147483647, %v400
    %vm456 = vcmp.eq.f32.partialorder %v455, 8.507059e+37
    %v457 = vand.u32 %v400, 2147483648
    %v458 = vor.u32 1.1754944e-38, %v457
    %v459 = vsel %vm456, %v458, %v454
    %v460 = vmul.f32 1.0, %v459
    %v461 = vrcp.pop %v401
    %v462 = vmul.f32 %v401, %v461
    %v463 = vsub.f32 1.0, %v462
    %v464 = vmul.f32 %v461, %v463
    %v465 = vadd.f32 %v461, %v464
    %vm466 = vweird.f32 %v401
    %vm467 = vweird.f32 %v461
    %vm468 = vmor %vm466, %vm467
    %v469 = vsel %vm468, %v461, %v465
    %v470 = vand.u32 2147483647, %v401
    %vm471 = vcmp.eq.f32.partialorder %v470, 8.507059e+37
    %v472 = vand.u32 %v401, 2147483648
    %v473 = vor.u32 1.1754944e-38, %v472
    %v474 = vsel %vm471, %v473, %v469
    %v475 = vmul.f32 1.0, %v474
    %v476 = vrcp.pop %v402
    %v477 = vmul.f32 %v402, %v476
    %v478 = vsub.f32 1.0, %v477
    %v479 = vmul.f32 %v476, %v478
    %v480 = vadd.f32 %v476, %v479
    %vm481 = vweird.f32 %v402
    %vm482 = vweird.f32 %v476
    %vm483 = vmor %vm481, %vm482
    %v484 = vsel %vm483, %v476, %v480
    %v485 = vand.u32 2147483647, %v402
    %vm486 = vcmp.eq.f32.partialorder %v485, 8.507059e+37
    %v487 = vand.u32 %v402, 2147483648
    %v488 = vor.u32 1.1754944e-38, %v487
    %v489 = vsel %vm486, %v488, %v484
    %v490 = vmul.f32 1.0, %v489
    %v491 = vrcp.pop %v403
    %v492 = vmul.f32 %v403, %v491
    %v493 = vsub.f32 1.0, %v492
    %v494 = vmul.f32 %v491, %v493
    %v495 = vadd.f32 %v491, %v494
    %vm496 = vweird.f32 %v403
    %vm497 = vweird.f32 %v491
    %vm498 = vmor %vm496, %vm497
    %v499 = vsel %vm498, %v491, %v495
    %v500 = vand.u32 2147483647, %v403
    %vm501 = vcmp.eq.f32.partialorder %v500, 8.507059e+37
    %v502 = vand.u32 %v403, 2147483648
    %v503 = vor.u32 1.1754944e-38, %v502
    %v504 = vsel %vm501, %v503, %v499
    %v505 = vmul.f32 1.0, %v504
    %v506 = vrcp.pop %v404
    %v507 = vmul.f32 %v404, %v506
    %v508 = vsub.f32 1.0, %v507
    %v509 = vmul.f32 %v506, %v508
    %v510 = vadd.f32 %v506, %v509
    %vm511 = vweird.f32 %v404
    %vm512 = vweird.f32 %v506
    %vm513 = vmor %vm511, %vm512
    %v514 = vsel %vm513, %v506, %v510
    %v515 = vand.u32 2147483647, %v404
    %vm516 = vcmp.eq.f32.partialorder %v515, 8.507059e+37
    %v517 = vand.u32 %v404, 2147483648
    %v518 = vor.u32 1.1754944e-38, %v517
    %v519 = vsel %vm516, %v518, %v514
    %v520 = vmul.f32 1.0, %v519
    %v521 = vrcp.pop %v405
    %v522 = vmul.f32 %v405, %v521
    %v523 = vsub.f32 1.0, %v522
    %v524 = vmul.f32 %v521, %v523
    %v525 = vadd.f32 %v521, %v524
    %vm526 = vweird.f32 %v405
    %vm527 = vweird.f32 %v521
    %vm528 = vmor %vm526, %vm527
    %v529 = vsel %vm528, %v521, %v525
    %v530 = vand.u32 2147483647, %v405
    %vm531 = vcmp.eq.f32.partialorder %v530, 8.507059e+37
    %v532 = vand.u32 %v405, 2147483648
    %v533 = vor.u32 1.1754944e-38, %v532
    %v534 = vsel %vm531, %v533, %v529
    %v535 = vmul.f32 1.0, %v534
    %v536 = vrcp.pop %v406
    %v537 = vmul.f32 %v406, %v536
    %v538 = vsub.f32 1.0, %v537
    %v539 = vmul.f32 %v536, %v538
    %v540 = vadd.f32 %v536, %v539
    %vm541 = vweird.f32 %v406
    %vm542 = vweird.f32 %v536
    %vm543 = vmor %vm541, %vm542
    %v544 = vsel %vm543, %v536, %v540
    %v545 = vand.u32 2147483647, %v406
    %vm546 = vcmp.eq.f32.partialorder %v545, 8.507059e+37
    %v547 = vand.u32 %v406, 2147483648
    %v548 = vor.u32 1.1754944e-38, %v547
    %v549 = vsel %vm546, %v548, %v544
    %v550 = vmul.f32 1.0, %v549
    %v551 = vrcp.pop %v407
    %v552 = vmul.f32 %v407, %v551
    %v553 = vsub.f32 1.0, %v552
    %v554 = vmul.f32 %v551, %v553
    %v555 = vadd.f32 %v551, %v554
    %vm556 = vweird.f32 %v407
    %vm557 = vweird.f32 %v551
    %vm558 = vmor %vm556, %vm557
    %v559 = vsel %vm558, %v551, %v555
    %v560 = vand.u32 2147483647, %v407
    %vm561 = vcmp.eq.f32.partialorder %v560, 8.507059e+37
    %v562 = vand.u32 %v407, 2147483648
    %v563 = vor.u32 1.1754944e-38, %v562
    %v564 = vsel %vm561, %v563, %v559
    %v565 = vmul.f32 1.0, %v564
    %v566 = vrcp.pop %v408
    %v567 = vmul.f32 %v408, %v566
    %v568 = vsub.f32 1.0, %v567
    %v569 = vmul.f32 %v566, %v568
    %v570 = vadd.f32 %v566, %v569
    %vm571 = vweird.f32 %v408
    %vm572 = vweird.f32 %v566
    %vm573 = vmor %vm571, %vm572
    %v574 = vsel %vm573, %v566, %v570
    %v575 = vand.u32 2147483647, %v408
    %vm576 = vcmp.eq.f32.partialorder %v575, 8.507059e+37
    %v577 = vand.u32 %v408, 2147483648
    %v578 = vor.u32 1.1754944e-38, %v577
    %v579 = vsel %vm576, %v578, %v574
    %v580 = vmul.f32 1.0, %v579
    %v581 = vrcp.pop %v409
    %v582 = vmul.f32 %v409, %v581
    %v583 = vsub.f32 1.0, %v582
    %v584 = vmul.f32 %v581, %v583
    %v585 = vadd.f32 %v581, %v584
    %vm586 = vweird.f32 %v409
    %vm587 = vweird.f32 %v581
    %vm588 = vmor %vm586, %vm587
    %v589 = vsel %vm588, %v581, %v585
    %v590 = vand.u32 2147483647, %v409
    %vm591 = vcmp.eq.f32.partialorder %v590, 8.507059e+37
    %v592 = vand.u32 %v409, 2147483648
    %v593 = vor.u32 1.1754944e-38, %v592
    %v594 = vsel %vm591, %v593, %v589
    %v595 = vmul.f32 1.0, %v594
    %v596 = vrcp.pop %v410
    %v597 = vmul.f32 %v410, %v596
    %v598 = vsub.f32 1.0, %v597
    %v599 = vmul.f32 %v596, %v598
    %v600 = vadd.f32 %v596, %v599
    %vm601 = vweird.f32 %v410
    %vm602 = vweird.f32 %v596
    %vm603 = vmor %vm601, %vm602
    %v604 = vsel %vm603, %v596, %v600
    %v605 = vand.u32 2147483647, %v410
    %vm606 = vcmp.eq.f32.partialorder %v605, 8.507059e+37
    %v607 = vand.u32 %v410, 2147483648
    %v608 = vor.u32 1.1754944e-38, %v607
    %v609 = vsel %vm606, %v608, %v604
    %v610 = vmul.f32 1.0, %v609
    %v611 = vrcp.pop %v411
    %v612 = vmul.f32 %v411, %v611
    %v613 = vsub.f32 1.0, %v612
    %v614 = vmul.f32 %v611, %v613
    %v615 = vadd.f32 %v611, %v614
    %vm616 = vweird.f32 %v411
    %vm617 = vweird.f32 %v611
    %vm618 = vmor %vm616, %vm617
    %v619 = vsel %vm618, %v611, %v615
    %v620 = vand.u32 2147483647, %v411
    %vm621 = vcmp.eq.f32.partialorder %v620, 8.507059e+37
    %v622 = vand.u32 %v411, 2147483648
    %v623 = vor.u32 1.1754944e-38, %v622
    %v624 = vsel %vm621, %v623, %v619
    %v625 = vmul.f32 1.0, %v624
    %v626 = vrcp.pop %v412
    %v627 = vmul.f32 %v412, %v626
    %v628 = vsub.f32 1.0, %v627
    %v629 = vmul.f32 %v626, %v628
    %v630 = vadd.f32 %v626, %v629
    %vm631 = vweird.f32 %v412
    %vm632 = vweird.f32 %v626
    %vm633 = vmor %vm631, %vm632
    %v634 = vsel %vm633, %v626, %v630
    %v635 = vand.u32 2147483647, %v412
    %vm636 = vcmp.eq.f32.partialorder %v635, 8.507059e+37
    %v637 = vand.u32 %v412, 2147483648
    %v638 = vor.u32 1.1754944e-38, %v637
    %v639 = vsel %vm636, %v638, %v634
    %v640 = vmul.f32 1.0, %v639
    %v641 = vrcp.pop %v413
    %v642 = vmul.f32 %v413, %v641
    %v643 = vsub.f32 1.0, %v642
    %v644 = vmul.f32 %v641, %v643
    %v645 = vadd.f32 %v641, %v644
    %vm646 = vweird.f32 %v413
    %vm647 = vweird.f32 %v641
    %vm648 = vmor %vm646, %vm647
    %v649 = vsel %vm648, %v641, %v645
    %v650 = vand.u32 2147483647, %v413
    %vm651 = vcmp.eq.f32.partialorder %v650, 8.507059e+37
    %v652 = vand.u32 %v413, 2147483648
    %v653 = vor.u32 1.1754944e-38, %v652
    %v654 = vsel %vm651, %v653, %v649
    %v655 = vmul.f32 1.0, %v654
    %v656 = vrcp.pop %v414
    %v657 = vmul.f32 %v414, %v656
    %v658 = vsub.f32 1.0, %v657
    %v659 = vmul.f32 %v656, %v658
    %v660 = vadd.f32 %v656, %v659
    %vm661 = vweird.f32 %v414
    %vm662 = vweird.f32 %v656
    %vm663 = vmor %vm661, %vm662
    %v664 = vsel %vm663, %v656, %v660
    %v665 = vand.u32 2147483647, %v414
    %vm666 = vcmp.eq.f32.partialorder %v665, 8.507059e+37
    %v667 = vand.u32 %v414, 2147483648
    %v668 = vor.u32 1.1754944e-38, %v667
    %v669 = vsel %vm666, %v668, %v664
    %v670 = vmul.f32 1.0, %v669
    %v671 = vrcp.pop %v415
    %v672 = vmul.f32 %v415, %v671
    %v673 = vsub.f32 1.0, %v672
    %v674 = vmul.f32 %v671, %v673
    %v675 = vadd.f32 %v671, %v674
    %vm676 = vweird.f32 %v415
    %vm677 = vweird.f32 %v671
    %vm678 = vmor %vm676, %vm677
    %v679 = vsel %vm678, %v671, %v675
    %v680 = vand.u32 2147483647, %v415
    %vm681 = vcmp.eq.f32.partialorder %v680, 8.507059e+37
    %v682 = vand.u32 %v415, 2147483648
    %v683 = vor.u32 1.1754944e-38, %v682
    %v684 = vsel %vm681, %v683, %v679
    %v685 = vmul.f32 1.0, %v684
    %v686 = vrcp.pop %v416
    %v687 = vmul.f32 %v416, %v686
    %v688 = vsub.f32 1.0, %v687
    %v689 = vmul.f32 %v686, %v688
    %v690 = vadd.f32 %v686, %v689
    %vm691 = vweird.f32 %v416
    %vm692 = vweird.f32 %v686
    %vm693 = vmor %vm691, %vm692
    %v694 = vsel %vm693, %v686, %v690
    %v695 = vand.u32 2147483647, %v416
    %vm696 = vcmp.eq.f32.partialorder %v695, 8.507059e+37
    %v697 = vand.u32 %v416, 2147483648
    %v698 = vor.u32 1.1754944e-38, %v697
    %v699 = vsel %vm696, %v698, %v694
    %v700 = vmul.f32 1.0, %v699
    %v701 = vrcp.pop %v417
    %v702 = vmul.f32 %v417, %v701
    %v703 = vsub.f32 1.0, %v702
    %v704 = vmul.f32 %v701, %v703
    %v705 = vadd.f32 %v701, %v704
    %vm706 = vweird.f32 %v417
    %vm707 = vweird.f32 %v701
    %vm708 = vmor %vm706, %vm707
    %v709 = vsel %vm708, %v701, %v705
    %v710 = vand.u32 2147483647, %v417
    %vm711 = vcmp.eq.f32.partialorder %v710, 8.507059e+37
    %v712 = vand.u32 %v417, 2147483648
    %v713 = vor.u32 1.1754944e-38, %v712
    %v714 = vsel %vm711, %v713, %v709
    %v715 = vmul.f32 1.0, %v714
    %v716 = vrcp.pop %v418
    %v717 = vmul.f32 %v418, %v716
    %v718 = vsub.f32 1.0, %v717
    %v719 = vmul.f32 %v716, %v718
    %v720 = vadd.f32 %v716, %v719
    %vm721 = vweird.f32 %v418
    %vm722 = vweird.f32 %v716
    %vm723 = vmor %vm721, %vm722
    %v724 = vsel %vm723, %v716, %v720
    %v725 = vand.u32 2147483647, %v418
    %vm726 = vcmp.eq.f32.partialorder %v725, 8.507059e+37
    %v727 = vand.u32 %v418, 2147483648
    %v728 = vor.u32 1.1754944e-38, %v727
    %v729 = vsel %vm726, %v728, %v724
    %v730 = vmul.f32 1.0, %v729
    %v731 = vrcp.pop %v419
    %v732 = vmul.f32 %v419, %v731
    %v733 = vsub.f32 1.0, %v732
    %v734 = vmul.f32 %v731, %v733
    %v735 = vadd.f32 %v731, %v734
    %vm736 = vweird.f32 %v419
    %vm737 = vweird.f32 %v731
    %vm738 = vmor %vm736, %vm737
    %v739 = vsel %vm738, %v731, %v735
    %v740 = vand.u32 2147483647, %v419
    %vm741 = vcmp.eq.f32.partialorder %v740, 8.507059e+37
    %v742 = vand.u32 %v419, 2147483648
    %v743 = vor.u32 1.1754944e-38, %v742
    %v744 = vsel %vm741, %v743, %v739
    %v745 = vmul.f32 1.0, %v744
    %v746 = vrcp.pop %v420
    %v747 = vmul.f32 %v420, %v746
    %v748 = vsub.f32 1.0, %v747
    %v749 = vmul.f32 %v746, %v748
    %v750 = vadd.f32 %v746, %v749
    %vm751 = vweird.f32 %v420
    %vm752 = vweird.f32 %v746
    %vm753 = vmor %vm751, %vm752
    %v754 = vsel %vm753, %v746, %v750
    %v755 = vand.u32 2147483647, %v420
    %vm756 = vcmp.eq.f32.partialorder %v755, 8.507059e+37
    %v757 = vand.u32 %v420, 2147483648
    %v758 = vor.u32 1.1754944e-38, %v757
    %v759 = vsel %vm756, %v758, %v754
    %v760 = vmul.f32 1.0, %v759
    %v761 = vrcp.pop %v421
    %v762 = vmul.f32 %v421, %v761
    %v763 = vsub.f32 1.0, %v762
    %v764 = vmul.f32 %v761, %v763
    %v765 = vadd.f32 %v761, %v764
    %vm766 = vweird.f32 %v421
    %vm767 = vweird.f32 %v761
    %vm768 = vmor %vm766, %vm767
    %v769 = vsel %vm768, %v761, %v765
    %v770 = vand.u32 2147483647, %v421
    %vm771 = vcmp.eq.f32.partialorder %v770, 8.507059e+37
    %v772 = vand.u32 %v421, 2147483648
    %v773 = vor.u32 1.1754944e-38, %v772
    %v774 = vsel %vm771, %v773, %v769
    %v775 = vmul.f32 1.0, %v774
    %v776 = vrcp.pop %v422
    %v777 = vmul.f32 %v422, %v776
    %v778 = vsub.f32 1.0, %v777
    %v779 = vmul.f32 %v776, %v778
    %v780 = vadd.f32 %v776, %v779
    %vm781 = vweird.f32 %v422
    %vm782 = vweird.f32 %v776
    %vm783 = vmor %vm781, %vm782
    %v784 = vsel %vm783, %v776, %v780
    %v785 = vand.u32 2147483647, %v422
    %vm786 = vcmp.eq.f32.partialorder %v785, 8.507059e+37
    %v787 = vand.u32 %v422, 2147483648
    %v788 = vor.u32 1.1754944e-38, %v787
    %v789 = vsel %vm786, %v788, %v784
    %v790 = vmul.f32 1.0, %v789
    %v791 = vrcp.pop %v423
    %v792 = vmul.f32 %v423, %v791
    %v793 = vsub.f32 1.0, %v792
    %v794 = vmul.f32 %v791, %v793
    %v795 = vadd.f32 %v791, %v794
    %vm796 = vweird.f32 %v423
    %vm797 = vweird.f32 %v791
    %vm798 = vmor %vm796, %vm797
    %v799 = vsel %vm798, %v791, %v795
    %v800 = vand.u32 2147483647, %v423
    %vm801 = vcmp.eq.f32.partialorder %v800, 8.507059e+37
    %v802 = vand.u32 %v423, 2147483648
    %v803 = vor.u32 1.1754944e-38, %v802
    %v804 = vsel %vm801, %v803, %v799
    %v805 = vmul.f32 1.0, %v804
    %v806 = vrcp.pop %v424
    %v807 = vmul.f32 %v424, %v806
    %v808 = vsub.f32 1.0, %v807
    %v809 = vmul.f32 %v806, %v808
    %v810 = vadd.f32 %v806, %v809
    %vm811 = vweird.f32 %v424
    %vm812 = vweird.f32 %v806
    %vm813 = vmor %vm811, %vm812
    %v814 = vsel %vm813, %v806, %v810
    %v815 = vand.u32 2147483647, %v424
    %vm816 = vcmp.eq.f32.partialorder %v815, 8.507059e+37
    %v817 = vand.u32 %v424, 2147483648
    %v818 = vor.u32 1.1754944e-38, %v817
    %v819 = vsel %vm816, %v818, %v814
    %v820 = vmul.f32 1.0, %v819
    %v821 = vrcp.pop %v425
    %v822 = vmul.f32 %v425, %v821
    %v823 = vsub.f32 1.0, %v822
    %v824 = vmul.f32 %v821, %v823
    %v825 = vadd.f32 %v821, %v824
    %vm826 = vweird.f32 %v425
    %vm827 = vweird.f32 %v821
    %vm828 = vmor %vm826, %vm827
    %v829 = vsel %vm828, %v821, %v825
    %v830 = vand.u32 2147483647, %v425
    %vm831 = vcmp.eq.f32.partialorder %v830, 8.507059e+37
    %v832 = vand.u32 %v425, 2147483648
    %v833 = vor.u32 1.1754944e-38, %v832
    %v834 = vsel %vm831, %v833, %v829
    %v835 = vmul.f32 1.0, %v834
    %v836 = vrcp.pop %v426
    %v837 = vmul.f32 %v426, %v836
    %v838 = vsub.f32 1.0, %v837
    %v839 = vmul.f32 %v836, %v838
    %v840 = vadd.f32 %v836, %v839
    %vm841 = vweird.f32 %v426
    %vm842 = vweird.f32 %v836
    %vm843 = vmor %vm841, %vm842
    %v844 = vsel %vm843, %v836, %v840
    %v845 = vand.u32 2147483647, %v426
    %vm846 = vcmp.eq.f32.partialorder %v845, 8.507059e+37
    %v847 = vand.u32 %v426, 2147483648
    %v848 = vor.u32 1.1754944e-38, %v847
    %v849 = vsel %vm846, %v848, %v844
    %v850 = vmul.f32 1.0, %v849
    %v851 = vrcp.pop %v427
    %v852 = vmul.f32 %v427, %v851
    %v853 = vsub.f32 1.0, %v852
    %v854 = vmul.f32 %v851, %v853
    %v855 = vadd.f32 %v851, %v854
    %vm856 = vweird.f32 %v427
    %vm857 = vweird.f32 %v851
    %vm858 = vmor %vm856, %vm857
    %v859 = vsel %vm858, %v851, %v855
    %v860 = vand.u32 2147483647, %v427
    %vm861 = vcmp.eq.f32.partialorder %v860, 8.507059e+37
    %v862 = vand.u32 %v427, 2147483648
    %v863 = vor.u32 1.1754944e-38, %v862
    %v864 = vsel %vm861, %v863, %v859
    %v865 = vmul.f32 1.0, %v864
    %v866 = vrcp.pop %v428
    %v867 = vmul.f32 %v428, %v866
    %v868 = vsub.f32 1.0, %v867
    %v869 = vmul.f32 %v866, %v868
    %v870 = vadd.f32 %v866, %v869
    %vm871 = vweird.f32 %v428
    %vm872 = vweird.f32 %v866
    %vm873 = vmor %vm871, %vm872
    %v874 = vsel %vm873, %v866, %v870
    %v875 = vand.u32 2147483647, %v428
    %vm876 = vcmp.eq.f32.partialorder %v875, 8.507059e+37
    %v877 = vand.u32 %v428, 2147483648
    %v878 = vor.u32 1.1754944e-38, %v877
    %v879 = vsel %vm876, %v878, %v874
    %v880 = vmul.f32 1.0, %v879
    %v881 = vrcp.pop %v429
    %v882 = vmul.f32 %v429, %v881
    %v883 = vsub.f32 1.0, %v882
    %v884 = vmul.f32 %v881, %v883
    %v885 = vadd.f32 %v881, %v884
    %vm886 = vweird.f32 %v429
    %vm887 = vweird.f32 %v881
    %vm888 = vmor %vm886, %vm887
    %v889 = vsel %vm888, %v881, %v885
    %v890 = vand.u32 2147483647, %v429
    %vm891 = vcmp.eq.f32.partialorder %v890, 8.507059e+37
    %v892 = vand.u32 %v429, 2147483648
    %v893 = vor.u32 1.1754944e-38, %v892
    %v894 = vsel %vm891, %v893, %v889
    %v895 = vmul.f32 1.0, %v894
    %v896 = vrcp.pop %v430
    %v897 = vmul.f32 %v430, %v896
    %v898 = vsub.f32 1.0, %v897
    %v899 = vmul.f32 %v896, %v898
    %v900 = vadd.f32 %v896, %v899
    %vm901 = vweird.f32 %v430
    %vm902 = vweird.f32 %v896
    %vm903 = vmor %vm901, %vm902
    %v904 = vsel %vm903, %v896, %v900
    %v905 = vand.u32 2147483647, %v430
    %vm906 = vcmp.eq.f32.partialorder %v905, 8.507059e+37
    %v907 = vand.u32 %v430, 2147483648
    %v908 = vor.u32 1.1754944e-38, %v907
    %v909 = vsel %vm906, %v908, %v904
    %v910 = vmul.f32 1.0, %v909
    %v911 = vmul.f32 %v224, %v445
    %v912 = vmul.f32 %v226, %v460
    %v913 = vmul.f32 %v229, %v475
    %v914 = vmul.f32 %v231, %v490
    %v915 = vmul.f32 %v234, %v505
    %v916 = vmul.f32 %v236, %v520
    %v917 = vmul.f32 %v239, %v535
    %v918 = vmul.f32 %v241, %v550
    %v919 = vmul.f32 %v244, %v565
    %v920 = vmul.f32 %v246, %v580
    %v921 = vmul.f32 %v249, %v595
    %v922 = vmul.f32 %v251, %v610
    %v923 = vmul.f32 %v254, %v625
    %v924 = vmul.f32 %v256, %v640
    %v925 = vmul.f32 %v259, %v655
    %v926 = vmul.f32 %v261, %v670
    %v927 = vmul.f32 %v264, %v685
    %v928 = vmul.f32 %v266, %v700
    %v929 = vmul.f32 %v269, %v715
    %v930 = vmul.f32 %v271, %v730
    %v931 = vmul.f32 %v274, %v745
    %v932 = vmul.f32 %v276, %v760
    %v933 = vmul.f32 %v279, %v775
    %v934 = vmul.f32 %v281, %v790
    %v935 = vmul.f32 %v284, %v805
    %v936 = vmul.f32 %v286, %v820
    %v937 = vmul.f32 %v289, %v835
    %v938 = vmul.f32 %v291, %v850
    %v939 = vmul.f32 %v294, %v865
    %v940 = vmul.f32 %v296, %v880
    %v941 = vmul.f32 %v299, %v895
    %v942 = vmul.f32 %v301, %v910
    %v943 = vpack.c.bf16 %v912, %v911
    %v944 = vpack.c.bf16 %v914, %v913
    %v945 = vpack.c.bf16 %v916, %v915
    %v946 = vpack.c.bf16 %v918, %v917
    %v947 = vpack.c.bf16 %v920, %v919
    %v948 = vpack.c.bf16 %v922, %v921
    %v949 = vpack.c.bf16 %v924, %v923
    %v950 = vpack.c.bf16 %v926, %v925
    %v951 = vpack.c.bf16 %v928, %v927
    %v952 = vpack.c.bf16 %v930, %v929
    %v953 = vpack.c.bf16 %v932, %v931
    %v954 = vpack.c.bf16 %v934, %v933
    %v955 = vpack.c.bf16 %v936, %v935
    %v956 = vpack.c.bf16 %v938, %v937
    %v957 = vpack.c.bf16 %v940, %v939
    %v958 = vpack.c.bf16 %v942, %v941
    %s959 = scalar_lea.vmem [#allocation7], 64
    %v960 = vld [vmem:[%s959] sm:$0xf]
    %v961 = vld [vmem:[%s959 + $0x4] sm:$0xf]
    %v962 = vld [vmem:[%s959 + $0x8] sm:$0xf]
    %v963 = vld [vmem:[%s959 + $0xc] sm:$0xf]
    %v964 = vld [vmem:[%s959 + $0x10] sm:$0xf]
    %v965 = vld [vmem:[%s959 + $0x14] sm:$0xf]
    %v966 = vld [vmem:[%s959 + $0x18] sm:$0xf]
    %v967 = vld [vmem:[%s959 + $0x1c] sm:$0xf]
    %v968 = vld [vmem:[%s959 + $0x20] sm:$0xf]
    %v969 = vld [vmem:[%s959 + $0x24] sm:$0xf]
    %v970 = vld [vmem:[%s959 + $0x28] sm:$0xf]
    %v971 = vld [vmem:[%s959 + $0x2c] sm:$0xf]
    %v972 = vld [vmem:[%s959 + $0x30] sm:$0xf]
    %v973 = vld [vmem:[%s959 + $0x34] sm:$0xf]
    %v974 = vld [vmem:[%s959 + $0x38] sm:$0xf]
    %v975 = vld [vmem:[%s959 + $0x3c] sm:$0xf]
    %v976 = vld [vmem:[#allocation8 + $0x1] sm:$0x1]
    %v977 = vperm.slane %v976, 0
    %v994 = vunpack.c.l.b16 %v960
    %v995 = vunpack.c.l.b16 %v961
    %v996 = vunpack.c.l.b16 %v962
    %v997 = vunpack.c.l.b16 %v963
    %v998 = vunpack.c.l.b16 %v964
    %v999 = vunpack.c.l.b16 %v965
    %v1000 = vunpack.c.l.b16 %v966
    %v1001 = vunpack.c.l.b16 %v967
    %v1002 = vunpack.c.l.b16 %v968
    %v1003 = vunpack.c.l.b16 %v969
    %v1004 = vunpack.c.l.b16 %v970
    %v1005 = vunpack.c.l.b16 %v971
    %v1006 = vunpack.c.l.b16 %v972
    %v1007 = vunpack.c.l.b16 %v973
    %v1008 = vunpack.c.l.b16 %v974
    %v1009 = vunpack.c.l.b16 %v975
    %v1010 = vpack.c.b16 %v995, %v994
    %v1011 = vpack.c.b16 %v997, %v996
    %v1012 = vpack.c.b16 %v999, %v998
    %v1013 = vpack.c.b16 %v1001, %v1000
    %v1014 = vpack.c.b16 %v1003, %v1002
    %v1015 = vpack.c.b16 %v1005, %v1004
    %v1016 = vpack.c.b16 %v1007, %v1006
    %v1017 = vpack.c.b16 %v1009, %v1008
    %1026 = vmatpush.bf16.msra.mxu0 %v1017
    %1027 = vmatpush.bf16.msra.mxu0 %v1016
    %1028 = vmatpush.bf16.msra.mxu0 %v1015
    %1029 = vmatpush.bf16.msra.mxu0 %v1014
    %1030 = vmatpush.bf16.msra.mxu0 %v1013
    %1031 = vmatpush.bf16.msra.mxu0 %v1012
    %1032 = vmatpush.bf16.msra.mxu0 %v1011
    %1033 = vmatpush.bf16.msra.mxu0 %v1010
    %1034 = vmatmul.bf16.gmra.mxu0 %v943
    %v1035 = vpop.f32.mrf.mxu0
    %v1036 = vadd.f32 %v977, %v1035
    %v1037 = vpop.f32.mrf.mxu0
    %v1038 = vadd.f32 %v977, %v1037
    %1039 = vmatmul.bf16.gmra.mxu0 %v944
    %v1040 = vpop.f32.mrf.mxu0
    %v1041 = vadd.f32 %v977, %v1040
    %v1042 = vpop.f32.mrf.mxu0
    %v1043 = vadd.f32 %v977, %v1042
    %1044 = vmatmul.bf16.gmra.mxu0 %v945
    %v1045 = vpop.f32.mrf.mxu0
    %v1046 = vadd.f32 %v977, %v1045
    %v1047 = vpop.f32.mrf.mxu0
    %v1048 = vadd.f32 %v977, %v1047
    %1049 = vmatmul.bf16.gmra.mxu0 %v946
    %v1050 = vpop.f32.mrf.mxu0
    %v1051 = vadd.f32 %v977, %v1050
    %v1052 = vpop.f32.mrf.mxu0
    %v1053 = vadd.f32 %v977, %v1052
    %1054 = vmatmul.bf16.gmra.mxu0 %v947
    %v1055 = vpop.f32.mrf.mxu0
    %v1056 = vadd.f32 %v977, %v1055
    %v1057 = vpop.f32.mrf.mxu0
    %v1058 = vadd.f32 %v977, %v1057
    %1059 = vmatmul.bf16.gmra.mxu0 %v948
    %v1060 = vpop.f32.mrf.mxu0
    %v1061 = vadd.f32 %v977, %v1060
    %v1062 = vpop.f32.mrf.mxu0
    %v1063 = vadd.f32 %v977, %v1062
    %1064 = vmatmul.bf16.gmra.mxu0 %v949
    %v1065 = vpop.f32.mrf.mxu0
    %v1066 = vadd.f32 %v977, %v1065
    %v1067 = vpop.f32.mrf.mxu0
    %v1068 = vadd.f32 %v977, %v1067
    %1069 = vmatmul.bf16.gmra.mxu0 %v950
    %v1070 = vpop.f32.mrf.mxu0
    %v1071 = vadd.f32 %v977, %v1070
    %v1072 = vpop.f32.mrf.mxu0
    %v1073 = vadd.f32 %v977, %v1072
    %1074 = vmatmul.bf16.gmra.mxu0 %v951
    %v1075 = vpop.f32.mrf.mxu0
    %v1076 = vadd.f32 %v977, %v1075
    %v1077 = vpop.f32.mrf.mxu0
    %v1078 = vadd.f32 %v977, %v1077
    %1079 = vmatmul.bf16.gmra.mxu0 %v952
    %v1080 = vpop.f32.mrf.mxu0
    %v1081 = vadd.f32 %v977, %v1080
    %v1082 = vpop.f32.mrf.mxu0
    %v1083 = vadd.f32 %v977, %v1082
    %1084 = vmatmul.bf16.gmra.mxu0 %v953
    %v1085 = vpop.f32.mrf.mxu0
    %v1086 = vadd.f32 %v977, %v1085
    %v1087 = vpop.f32.mrf.mxu0
    %v1088 = vadd.f32 %v977, %v1087
    %1089 = vmatmul.bf16.gmra.mxu0 %v954
    %v1090 = vpop.f32.mrf.mxu0
    %v1091 = vadd.f32 %v977, %v1090
    %v1092 = vpop.f32.mrf.mxu0
    %v1093 = vadd.f32 %v977, %v1092
    %1094 = vmatmul.bf16.gmra.mxu0 %v955
    %v1095 = vpop.f32.mrf.mxu0
    %v1096 = vadd.f32 %v977, %v1095
    %v1097 = vpop.f32.mrf.mxu0
    %v1098 = vadd.f32 %v977, %v1097
    %1099 = vmatmul.bf16.gmra.mxu0 %v956
    %v1100 = vpop.f32.mrf.mxu0
    %v1101 = vadd.f32 %v977, %v1100
    %v1102 = vpop.f32.mrf.mxu0
    %v1103 = vadd.f32 %v977, %v1102
    %1104 = vmatmul.bf16.gmra.mxu0 %v957
    %v1105 = vpop.f32.mrf.mxu0
    %v1106 = vadd.f32 %v977, %v1105
    %v1107 = vpop.f32.mrf.mxu0
    %v1108 = vadd.f32 %v977, %v1107
    %1109 = vmatmul.bf16.gmra.mxu0 %v958
    %v1110 = vpop.f32.mrf.mxu0
    %v1111 = vadd.f32 %v977, %v1110
    %v1112 = vpop.f32.mrf.mxu0
    %v1113 = vadd.f32 %v977, %v1112
    %1114 = vdwg.mxu0
    %v1115 = vxor.u32 %v1036, 2147483648
    %v1116 = vxor.u32 %v1038, 2147483648
    %v1117 = vxor.u32 %v1041, 2147483648
    %v1118 = vxor.u32 %v1043, 2147483648
    %v1119 = vxor.u32 %v1046, 2147483648
    %v1120 = vxor.u32 %v1048, 2147483648
    %v1121 = vxor.u32 %v1051, 2147483648
    %v1122 = vxor.u32 %v1053, 2147483648
    %v1123 = vxor.u32 %v1056, 2147483648
    %v1124 = vxor.u32 %v1058, 2147483648
    %v1125 = vxor.u32 %v1061, 2147483648
    %v1126 = vxor.u32 %v1063, 2147483648
    %v1127 = vxor.u32 %v1066, 2147483648
    %v1128 = vxor.u32 %v1068, 2147483648
    %v1129 = vxor.u32 %v1071, 2147483648
    %v1130 = vxor.u32 %v1073, 2147483648
    %v1131 = vxor.u32 %v1076, 2147483648
    %v1132 = vxor.u32 %v1078, 2147483648
    %v1133 = vxor.u32 %v1081, 2147483648
    %v1134 = vxor.u32 %v1083, 2147483648
    %v1135 = vxor.u32 %v1086, 2147483648
    %v1136 = vxor.u32 %v1088, 2147483648
    %v1137 = vxor.u32 %v1091, 2147483648
    %v1138 = vxor.u32 %v1093, 2147483648
    %v1139 = vxor.u32 %v1096, 2147483648
    %v1140 = vxor.u32 %v1098, 2147483648
    %v1141 = vxor.u32 %v1101, 2147483648
    %v1142 = vxor.u32 %v1103, 2147483648
    %v1143 = vxor.u32 %v1106, 2147483648
    %v1144 = vxor.u32 %v1108, 2147483648
    %v1145 = vxor.u32 %v1111, 2147483648
    %v1146 = vxor.u32 %v1113, 2147483648
    %v1147 = vmul.f32 %v1115, 1.442695
    %v1148 = vpow.pop %v1147
    %v1149 = vmul.f32 %v1116, 1.442695
    %v1150 = vpow.pop %v1149
    %v1151 = vmul.f32 %v1117, 1.442695
    %v1152 = vpow.pop %v1151
    %v1153 = vmul.f32 %v1118, 1.442695
    %v1154 = vpow.pop %v1153
    %v1155 = vmul.f32 %v1119, 1.442695
    %v1156 = vpow.pop %v1155
    %v1157 = vmul.f32 %v1120, 1.442695
    %v1158 = vpow.pop %v1157
    %v1159 = vmul.f32 %v1121, 1.442695
    %v1160 = vpow.pop %v1159
    %v1161 = vmul.f32 %v1122, 1.442695
    %v1162 = vpow.pop %v1161
    %v1163 = vmul.f32 %v1123, 1.442695
    %v1164 = vpow.pop %v1163
    %v1165 = vmul.f32 %v1124, 1.442695
    %v1166 = vpow.pop %v1165
    %v1167 = vmul.f32 %v1125, 1.442695
    %v1168 = vpow.pop %v1167
    %v1169 = vmul.f32 %v1126, 1.442695
    %v1170 = vpow.pop %v1169
    %v1171 = vmul.f32 %v1127, 1.442695
    %v1172 = vpow.pop %v1171
    %v1173 = vmul.f32 %v1128, 1.442695
    %v1174 = vpow.pop %v1173
    %v1175 = vmul.f32 %v1129, 1.442695
    %v1176 = vpow.pop %v1175
    %v1177 = vmul.f32 %v1130, 1.442695
    %v1178 = vpow.pop %v1177
    %v1179 = vmul.f32 %v1131, 1.442695
    %v1180 = vpow.pop %v1179
    %v1181 = vmul.f32 %v1132, 1.442695
    %v1182 = vpow.pop %v1181
    %v1183 = vmul.f32 %v1133, 1.442695
    %v1184 = vpow.pop %v1183
    %v1185 = vmul.f32 %v1134, 1.442695
    %v1186 = vpow.pop %v1185
    %v1187 = vmul.f32 %v1135, 1.442695
    %v1188 = vpow.pop %v1187
    %v1189 = vmul.f32 %v1136, 1.442695
    %v1190 = vpow.pop %v1189
    %v1191 = vmul.f32 %v1137, 1.442695
    %v1192 = vpow.pop %v1191
    %v1193 = vmul.f32 %v1138, 1.442695
    %v1194 = vpow.pop %v1193
    %v1195 = vmul.f32 %v1139, 1.442695
    %v1196 = vpow.pop %v1195
    %v1197 = vmul.f32 %v1140, 1.442695
    %v1198 = vpow.pop %v1197
    %v1199 = vmul.f32 %v1141, 1.442695
    %v1200 = vpow.pop %v1199
    %v1201 = vmul.f32 %v1142, 1.442695
    %v1202 = vpow.pop %v1201
    %v1203 = vmul.f32 %v1143, 1.442695
    %v1204 = vpow.pop %v1203
    %v1205 = vmul.f32 %v1144, 1.442695
    %v1206 = vpow.pop %v1205
    %v1207 = vmul.f32 %v1145, 1.442695
    %v1208 = vpow.pop %v1207
    %v1209 = vmul.f32 %v1146, 1.442695
    %v1210 = vpow.pop %v1209
    %v1211 = vadd.f32 %v1148, 1.0
    %v1212 = vadd.f32 %v1150, 1.0
    %v1213 = vadd.f32 %v1152, 1.0
    %v1214 = vadd.f32 %v1154, 1.0
    %v1215 = vadd.f32 %v1156, 1.0
    %v1216 = vadd.f32 %v1158, 1.0
    %v1217 = vadd.f32 %v1160, 1.0
    %v1218 = vadd.f32 %v1162, 1.0
    %v1219 = vadd.f32 %v1164, 1.0
    %v1220 = vadd.f32 %v1166, 1.0
    %v1221 = vadd.f32 %v1168, 1.0
    %v1222 = vadd.f32 %v1170, 1.0
    %v1223 = vadd.f32 %v1172, 1.0
    %v1224 = vadd.f32 %v1174, 1.0
    %v1225 = vadd.f32 %v1176, 1.0
    %v1226 = vadd.f32 %v1178, 1.0
    %v1227 = vadd.f32 %v1180, 1.0
    %v1228 = vadd.f32 %v1182, 1.0
    %v1229 = vadd.f32 %v1184, 1.0
    %v1230 = vadd.f32 %v1186, 1.0
    %v1231 = vadd.f32 %v1188, 1.0
    %v1232 = vadd.f32 %v1190, 1.0
    %v1233 = vadd.f32 %v1192, 1.0
    %v1234 = vadd.f32 %v1194, 1.0
    %v1235 = vadd.f32 %v1196, 1.0
    %v1236 = vadd.f32 %v1198, 1.0
    %v1237 = vadd.f32 %v1200, 1.0
    %v1238 = vadd.f32 %v1202, 1.0
    %v1239 = vadd.f32 %v1204, 1.0
    %v1240 = vadd.f32 %v1206, 1.0
    %v1241 = vadd.f32 %v1208, 1.0
    %v1242 = vadd.f32 %v1210, 1.0
    %v1243 = vrcp.pop %v1211
    %v1244 = vmul.f32 %v1211, %v1243
    %v1245 = vsub.f32 1.0, %v1244
    %v1246 = vmul.f32 %v1243, %v1245
    %v1247 = vadd.f32 %v1243, %v1246
    %vm1248 = vweird.f32 %v1211
    %vm1249 = vweird.f32 %v1243
    %vm1250 = vmor %vm1248, %vm1249
    %v1251 = vsel %vm1250, %v1243, %v1247
    %v1252 = vand.u32 2147483647, %v1211
    %vm1253 = vcmp.eq.f32.partialorder %v1252, 8.507059e+37
    %v1254 = vand.u32 %v1211, 2147483648
    %v1255 = vor.u32 1.1754944e-38, %v1254
    %v1256 = vsel %vm1253, %v1255, %v1251
    %v1257 = vmul.f32 1.0, %v1256
    %v1258 = vrcp.pop %v1212
    %v1259 = vmul.f32 %v1212, %v1258
    %v1260 = vsub.f32 1.0, %v1259
    %v1261 = vmul.f32 %v1258, %v1260
    %v1262 = vadd.f32 %v1258, %v1261
    %vm1263 = vweird.f32 %v1212
    %vm1264 = vweird.f32 %v1258
    %vm1265 = vmor %vm1263, %vm1264
    %v1266 = vsel %vm1265, %v1258, %v1262
    %v1267 = vand.u32 2147483647, %v1212
    %vm1268 = vcmp.eq.f32.partialorder %v1267, 8.507059e+37
    %v1269 = vand.u32 %v1212, 2147483648
    %v1270 = vor.u32 1.1754944e-38, %v1269
    %v1271 = vsel %vm1268, %v1270, %v1266
    %v1272 = vmul.f32 1.0, %v1271
    %v1273 = vrcp.pop %v1213
    %v1274 = vmul.f32 %v1213, %v1273
    %v1275 = vsub.f32 1.0, %v1274
    %v1276 = vmul.f32 %v1273, %v1275
    %v1277 = vadd.f32 %v1273, %v1276
    %vm1278 = vweird.f32 %v1213
    %vm1279 = vweird.f32 %v1273
    %vm1280 = vmor %vm1278, %vm1279
    %v1281 = vsel %vm1280, %v1273, %v1277
    %v1282 = vand.u32 2147483647, %v1213
    %vm1283 = vcmp.eq.f32.partialorder %v1282, 8.507059e+37
    %v1284 = vand.u32 %v1213, 2147483648
    %v1285 = vor.u32 1.1754944e-38, %v1284
    %v1286 = vsel %vm1283, %v1285, %v1281
    %v1287 = vmul.f32 1.0, %v1286
    %v1288 = vrcp.pop %v1214
    %v1289 = vmul.f32 %v1214, %v1288
    %v1290 = vsub.f32 1.0, %v1289
    %v1291 = vmul.f32 %v1288, %v1290
    %v1292 = vadd.f32 %v1288, %v1291
    %vm1293 = vweird.f32 %v1214
    %vm1294 = vweird.f32 %v1288
    %vm1295 = vmor %vm1293, %vm1294
    %v1296 = vsel %vm1295, %v1288, %v1292
    %v1297 = vand.u32 2147483647, %v1214
    %vm1298 = vcmp.eq.f32.partialorder %v1297, 8.507059e+37
    %v1299 = vand.u32 %v1214, 2147483648
    %v1300 = vor.u32 1.1754944e-38, %v1299
    %v1301 = vsel %vm1298, %v1300, %v1296
    %v1302 = vmul.f32 1.0, %v1301
    %v1303 = vrcp.pop %v1215
    %v1304 = vmul.f32 %v1215, %v1303
    %v1305 = vsub.f32 1.0, %v1304
    %v1306 = vmul.f32 %v1303, %v1305
    %v1307 = vadd.f32 %v1303, %v1306
    %vm1308 = vweird.f32 %v1215
    %vm1309 = vweird.f32 %v1303
    %vm1310 = vmor %vm1308, %vm1309
    %v1311 = vsel %vm1310, %v1303, %v1307
    %v1312 = vand.u32 2147483647, %v1215
    %vm1313 = vcmp.eq.f32.partialorder %v1312, 8.507059e+37
    %v1314 = vand.u32 %v1215, 2147483648
    %v1315 = vor.u32 1.1754944e-38, %v1314
    %v1316 = vsel %vm1313, %v1315, %v1311
    %v1317 = vmul.f32 1.0, %v1316
    %v1318 = vrcp.pop %v1216
    %v1319 = vmul.f32 %v1216, %v1318
    %v1320 = vsub.f32 1.0, %v1319
    %v1321 = vmul.f32 %v1318, %v1320
    %v1322 = vadd.f32 %v1318, %v1321
    %vm1323 = vweird.f32 %v1216
    %vm1324 = vweird.f32 %v1318
    %vm1325 = vmor %vm1323, %vm1324
    %v1326 = vsel %vm1325, %v1318, %v1322
    %v1327 = vand.u32 2147483647, %v1216
    %vm1328 = vcmp.eq.f32.partialorder %v1327, 8.507059e+37
    %v1329 = vand.u32 %v1216, 2147483648
    %v1330 = vor.u32 1.1754944e-38, %v1329
    %v1331 = vsel %vm1328, %v1330, %v1326
    %v1332 = vmul.f32 1.0, %v1331
    %v1333 = vrcp.pop %v1217
    %v1334 = vmul.f32 %v1217, %v1333
    %v1335 = vsub.f32 1.0, %v1334
    %v1336 = vmul.f32 %v1333, %v1335
    %v1337 = vadd.f32 %v1333, %v1336
    %vm1338 = vweird.f32 %v1217
    %vm1339 = vweird.f32 %v1333
    %vm1340 = vmor %vm1338, %vm1339
    %v1341 = vsel %vm1340, %v1333, %v1337
    %v1342 = vand.u32 2147483647, %v1217
    %vm1343 = vcmp.eq.f32.partialorder %v1342, 8.507059e+37
    %v1344 = vand.u32 %v1217, 2147483648
    %v1345 = vor.u32 1.1754944e-38, %v1344
    %v1346 = vsel %vm1343, %v1345, %v1341
    %v1347 = vmul.f32 1.0, %v1346
    %v1348 = vrcp.pop %v1218
    %v1349 = vmul.f32 %v1218, %v1348
    %v1350 = vsub.f32 1.0, %v1349
    %v1351 = vmul.f32 %v1348, %v1350
    %v1352 = vadd.f32 %v1348, %v1351
    %vm1353 = vweird.f32 %v1218
    %vm1354 = vweird.f32 %v1348
    %vm1355 = vmor %vm1353, %vm1354
    %v1356 = vsel %vm1355, %v1348, %v1352
    %v1357 = vand.u32 2147483647, %v1218
    %vm1358 = vcmp.eq.f32.partialorder %v1357, 8.507059e+37
    %v1359 = vand.u32 %v1218, 2147483648
    %v1360 = vor.u32 1.1754944e-38, %v1359
    %v1361 = vsel %vm1358, %v1360, %v1356
    %v1362 = vmul.f32 1.0, %v1361
    %v1363 = vrcp.pop %v1219
    %v1364 = vmul.f32 %v1219, %v1363
    %v1365 = vsub.f32 1.0, %v1364
    %v1366 = vmul.f32 %v1363, %v1365
    %v1367 = vadd.f32 %v1363, %v1366
    %vm1368 = vweird.f32 %v1219
    %vm1369 = vweird.f32 %v1363
    %vm1370 = vmor %vm1368, %vm1369
    %v1371 = vsel %vm1370, %v1363, %v1367
    %v1372 = vand.u32 2147483647, %v1219
    %vm1373 = vcmp.eq.f32.partialorder %v1372, 8.507059e+37
    %v1374 = vand.u32 %v1219, 2147483648
    %v1375 = vor.u32 1.1754944e-38, %v1374
    %v1376 = vsel %vm1373, %v1375, %v1371
    %v1377 = vmul.f32 1.0, %v1376
    %v1378 = vrcp.pop %v1220
    %v1379 = vmul.f32 %v1220, %v1378
    %v1380 = vsub.f32 1.0, %v1379
    %v1381 = vmul.f32 %v1378, %v1380
    %v1382 = vadd.f32 %v1378, %v1381
    %vm1383 = vweird.f32 %v1220
    %vm1384 = vweird.f32 %v1378
    %vm1385 = vmor %vm1383, %vm1384
    %v1386 = vsel %vm1385, %v1378, %v1382
    %v1387 = vand.u32 2147483647, %v1220
    %vm1388 = vcmp.eq.f32.partialorder %v1387, 8.507059e+37
    %v1389 = vand.u32 %v1220, 2147483648
    %v1390 = vor.u32 1.1754944e-38, %v1389
    %v1391 = vsel %vm1388, %v1390, %v1386
    %v1392 = vmul.f32 1.0, %v1391
    %v1393 = vrcp.pop %v1221
    %v1394 = vmul.f32 %v1221, %v1393
    %v1395 = vsub.f32 1.0, %v1394
    %v1396 = vmul.f32 %v1393, %v1395
    %v1397 = vadd.f32 %v1393, %v1396
    %vm1398 = vweird.f32 %v1221
    %vm1399 = vweird.f32 %v1393
    %vm1400 = vmor %vm1398, %vm1399
    %v1401 = vsel %vm1400, %v1393, %v1397
    %v1402 = vand.u32 2147483647, %v1221
    %vm1403 = vcmp.eq.f32.partialorder %v1402, 8.507059e+37
    %v1404 = vand.u32 %v1221, 2147483648
    %v1405 = vor.u32 1.1754944e-38, %v1404
    %v1406 = vsel %vm1403, %v1405, %v1401
    %v1407 = vmul.f32 1.0, %v1406
    %v1408 = vrcp.pop %v1222
    %v1409 = vmul.f32 %v1222, %v1408
    %v1410 = vsub.f32 1.0, %v1409
    %v1411 = vmul.f32 %v1408, %v1410
    %v1412 = vadd.f32 %v1408, %v1411
    %vm1413 = vweird.f32 %v1222
    %vm1414 = vweird.f32 %v1408
    %vm1415 = vmor %vm1413, %vm1414
    %v1416 = vsel %vm1415, %v1408, %v1412
    %v1417 = vand.u32 2147483647, %v1222
    %vm1418 = vcmp.eq.f32.partialorder %v1417, 8.507059e+37
    %v1419 = vand.u32 %v1222, 2147483648
    %v1420 = vor.u32 1.1754944e-38, %v1419
    %v1421 = vsel %vm1418, %v1420, %v1416
    %v1422 = vmul.f32 1.0, %v1421
    %v1423 = vrcp.pop %v1223
    %v1424 = vmul.f32 %v1223, %v1423
    %v1425 = vsub.f32 1.0, %v1424
    %v1426 = vmul.f32 %v1423, %v1425
    %v1427 = vadd.f32 %v1423, %v1426
    %vm1428 = vweird.f32 %v1223
    %vm1429 = vweird.f32 %v1423
    %vm1430 = vmor %vm1428, %vm1429
    %v1431 = vsel %vm1430, %v1423, %v1427
    %v1432 = vand.u32 2147483647, %v1223
    %vm1433 = vcmp.eq.f32.partialorder %v1432, 8.507059e+37
    %v1434 = vand.u32 %v1223, 2147483648
    %v1435 = vor.u32 1.1754944e-38, %v1434
    %v1436 = vsel %vm1433, %v1435, %v1431
    %v1437 = vmul.f32 1.0, %v1436
    %v1438 = vrcp.pop %v1224
    %v1439 = vmul.f32 %v1224, %v1438
    %v1440 = vsub.f32 1.0, %v1439
    %v1441 = vmul.f32 %v1438, %v1440
    %v1442 = vadd.f32 %v1438, %v1441
    %vm1443 = vweird.f32 %v1224
    %vm1444 = vweird.f32 %v1438
    %vm1445 = vmor %vm1443, %vm1444
    %v1446 = vsel %vm1445, %v1438, %v1442
    %v1447 = vand.u32 2147483647, %v1224
    %vm1448 = vcmp.eq.f32.partialorder %v1447, 8.507059e+37
    %v1449 = vand.u32 %v1224, 2147483648
    %v1450 = vor.u32 1.1754944e-38, %v1449
    %v1451 = vsel %vm1448, %v1450, %v1446
    %v1452 = vmul.f32 1.0, %v1451
    %v1453 = vrcp.pop %v1225
    %v1454 = vmul.f32 %v1225, %v1453
    %v1455 = vsub.f32 1.0, %v1454
    %v1456 = vmul.f32 %v1453, %v1455
    %v1457 = vadd.f32 %v1453, %v1456
    %vm1458 = vweird.f32 %v1225
    %vm1459 = vweird.f32 %v1453
    %vm1460 = vmor %vm1458, %vm1459
    %v1461 = vsel %vm1460, %v1453, %v1457
    %v1462 = vand.u32 2147483647, %v1225
    %vm1463 = vcmp.eq.f32.partialorder %v1462, 8.507059e+37
    %v1464 = vand.u32 %v1225, 2147483648
    %v1465 = vor.u32 1.1754944e-38, %v1464
    %v1466 = vsel %vm1463, %v1465, %v1461
    %v1467 = vmul.f32 1.0, %v1466
    %v1468 = vrcp.pop %v1226
    %v1469 = vmul.f32 %v1226, %v1468
    %v1470 = vsub.f32 1.0, %v1469
    %v1471 = vmul.f32 %v1468, %v1470
    %v1472 = vadd.f32 %v1468, %v1471
    %vm1473 = vweird.f32 %v1226
    %vm1474 = vweird.f32 %v1468
    %vm1475 = vmor %vm1473, %vm1474
    %v1476 = vsel %vm1475, %v1468, %v1472
    %v1477 = vand.u32 2147483647, %v1226
    %vm1478 = vcmp.eq.f32.partialorder %v1477, 8.507059e+37
    %v1479 = vand.u32 %v1226, 2147483648
    %v1480 = vor.u32 1.1754944e-38, %v1479
    %v1481 = vsel %vm1478, %v1480, %v1476
    %v1482 = vmul.f32 1.0, %v1481
    %v1483 = vrcp.pop %v1227
    %v1484 = vmul.f32 %v1227, %v1483
    %v1485 = vsub.f32 1.0, %v1484
    %v1486 = vmul.f32 %v1483, %v1485
    %v1487 = vadd.f32 %v1483, %v1486
    %vm1488 = vweird.f32 %v1227
    %vm1489 = vweird.f32 %v1483
    %vm1490 = vmor %vm1488, %vm1489
    %v1491 = vsel %vm1490, %v1483, %v1487
    %v1492 = vand.u32 2147483647, %v1227
    %vm1493 = vcmp.eq.f32.partialorder %v1492, 8.507059e+37
    %v1494 = vand.u32 %v1227, 2147483648
    %v1495 = vor.u32 1.1754944e-38, %v1494
    %v1496 = vsel %vm1493, %v1495, %v1491
    %v1497 = vmul.f32 1.0, %v1496
    %v1498 = vrcp.pop %v1228
    %v1499 = vmul.f32 %v1228, %v1498
    %v1500 = vsub.f32 1.0, %v1499
    %v1501 = vmul.f32 %v1498, %v1500
    %v1502 = vadd.f32 %v1498, %v1501
    %vm1503 = vweird.f32 %v1228
    %vm1504 = vweird.f32 %v1498
    %vm1505 = vmor %vm1503, %vm1504
    %v1506 = vsel %vm1505, %v1498, %v1502
    %v1507 = vand.u32 2147483647, %v1228
    %vm1508 = vcmp.eq.f32.partialorder %v1507, 8.507059e+37
    %v1509 = vand.u32 %v1228, 2147483648
    %v1510 = vor.u32 1.1754944e-38, %v1509
    %v1511 = vsel %vm1508, %v1510, %v1506
    %v1512 = vmul.f32 1.0, %v1511
    %v1513 = vrcp.pop %v1229
    %v1514 = vmul.f32 %v1229, %v1513
    %v1515 = vsub.f32 1.0, %v1514
    %v1516 = vmul.f32 %v1513, %v1515
    %v1517 = vadd.f32 %v1513, %v1516
    %vm1518 = vweird.f32 %v1229
    %vm1519 = vweird.f32 %v1513
    %vm1520 = vmor %vm1518, %vm1519
    %v1521 = vsel %vm1520, %v1513, %v1517
    %v1522 = vand.u32 2147483647, %v1229
    %vm1523 = vcmp.eq.f32.partialorder %v1522, 8.507059e+37
    %v1524 = vand.u32 %v1229, 2147483648
    %v1525 = vor.u32 1.1754944e-38, %v1524
    %v1526 = vsel %vm1523, %v1525, %v1521
    %v1527 = vmul.f32 1.0, %v1526
    %v1528 = vrcp.pop %v1230
    %v1529 = vmul.f32 %v1230, %v1528
    %v1530 = vsub.f32 1.0, %v1529
    %v1531 = vmul.f32 %v1528, %v1530
    %v1532 = vadd.f32 %v1528, %v1531
    %vm1533 = vweird.f32 %v1230
    %vm1534 = vweird.f32 %v1528
    %vm1535 = vmor %vm1533, %vm1534
    %v1536 = vsel %vm1535, %v1528, %v1532
    %v1537 = vand.u32 2147483647, %v1230
    %vm1538 = vcmp.eq.f32.partialorder %v1537, 8.507059e+37
    %v1539 = vand.u32 %v1230, 2147483648
    %v1540 = vor.u32 1.1754944e-38, %v1539
    %v1541 = vsel %vm1538, %v1540, %v1536
    %v1542 = vmul.f32 1.0, %v1541
    %v1543 = vrcp.pop %v1231
    %v1544 = vmul.f32 %v1231, %v1543
    %v1545 = vsub.f32 1.0, %v1544
    %v1546 = vmul.f32 %v1543, %v1545
    %v1547 = vadd.f32 %v1543, %v1546
    %vm1548 = vweird.f32 %v1231
    %vm1549 = vweird.f32 %v1543
    %vm1550 = vmor %vm1548, %vm1549
    %v1551 = vsel %vm1550, %v1543, %v1547
    %v1552 = vand.u32 2147483647, %v1231
    %vm1553 = vcmp.eq.f32.partialorder %v1552, 8.507059e+37
    %v1554 = vand.u32 %v1231, 2147483648
    %v1555 = vor.u32 1.1754944e-38, %v1554
    %v1556 = vsel %vm1553, %v1555, %v1551
    %v1557 = vmul.f32 1.0, %v1556
    %v1558 = vrcp.pop %v1232
    %v1559 = vmul.f32 %v1232, %v1558
    %v1560 = vsub.f32 1.0, %v1559
    %v1561 = vmul.f32 %v1558, %v1560
    %v1562 = vadd.f32 %v1558, %v1561
    %vm1563 = vweird.f32 %v1232
    %vm1564 = vweird.f32 %v1558
    %vm1565 = vmor %vm1563, %vm1564
    %v1566 = vsel %vm1565, %v1558, %v1562
    %v1567 = vand.u32 2147483647, %v1232
    %vm1568 = vcmp.eq.f32.partialorder %v1567, 8.507059e+37
    %v1569 = vand.u32 %v1232, 2147483648
    %v1570 = vor.u32 1.1754944e-38, %v1569
    %v1571 = vsel %vm1568, %v1570, %v1566
    %v1572 = vmul.f32 1.0, %v1571
    %v1573 = vrcp.pop %v1233
    %v1574 = vmul.f32 %v1233, %v1573
    %v1575 = vsub.f32 1.0, %v1574
    %v1576 = vmul.f32 %v1573, %v1575
    %v1577 = vadd.f32 %v1573, %v1576
    %vm1578 = vweird.f32 %v1233
    %vm1579 = vweird.f32 %v1573
    %vm1580 = vmor %vm1578, %vm1579
    %v1581 = vsel %vm1580, %v1573, %v1577
    %v1582 = vand.u32 2147483647, %v1233
    %vm1583 = vcmp.eq.f32.partialorder %v1582, 8.507059e+37
    %v1584 = vand.u32 %v1233, 2147483648
    %v1585 = vor.u32 1.1754944e-38, %v1584
    %v1586 = vsel %vm1583, %v1585, %v1581
    %v1587 = vmul.f32 1.0, %v1586
    %v1588 = vrcp.pop %v1234
    %v1589 = vmul.f32 %v1234, %v1588
    %v1590 = vsub.f32 1.0, %v1589
    %v1591 = vmul.f32 %v1588, %v1590
    %v1592 = vadd.f32 %v1588, %v1591
    %vm1593 = vweird.f32 %v1234
    %vm1594 = vweird.f32 %v1588
    %vm1595 = vmor %vm1593, %vm1594
    %v1596 = vsel %vm1595, %v1588, %v1592
    %v1597 = vand.u32 2147483647, %v1234
    %vm1598 = vcmp.eq.f32.partialorder %v1597, 8.507059e+37
    %v1599 = vand.u32 %v1234, 2147483648
    %v1600 = vor.u32 1.1754944e-38, %v1599
    %v1601 = vsel %vm1598, %v1600, %v1596
    %v1602 = vmul.f32 1.0, %v1601
    %v1603 = vrcp.pop %v1235
    %v1604 = vmul.f32 %v1235, %v1603
    %v1605 = vsub.f32 1.0, %v1604
    %v1606 = vmul.f32 %v1603, %v1605
    %v1607 = vadd.f32 %v1603, %v1606
    %vm1608 = vweird.f32 %v1235
    %vm1609 = vweird.f32 %v1603
    %vm1610 = vmor %vm1608, %vm1609
    %v1611 = vsel %vm1610, %v1603, %v1607
    %v1612 = vand.u32 2147483647, %v1235
    %vm1613 = vcmp.eq.f32.partialorder %v1612, 8.507059e+37
    %v1614 = vand.u32 %v1235, 2147483648
    %v1615 = vor.u32 1.1754944e-38, %v1614
    %v1616 = vsel %vm1613, %v1615, %v1611
    %v1617 = vmul.f32 1.0, %v1616
    %v1618 = vrcp.pop %v1236
    %v1619 = vmul.f32 %v1236, %v1618
    %v1620 = vsub.f32 1.0, %v1619
    %v1621 = vmul.f32 %v1618, %v1620
    %v1622 = vadd.f32 %v1618, %v1621
    %vm1623 = vweird.f32 %v1236
    %vm1624 = vweird.f32 %v1618
    %vm1625 = vmor %vm1623, %vm1624
    %v1626 = vsel %vm1625, %v1618, %v1622
    %v1627 = vand.u32 2147483647, %v1236
    %vm1628 = vcmp.eq.f32.partialorder %v1627, 8.507059e+37
    %v1629 = vand.u32 %v1236, 2147483648
    %v1630 = vor.u32 1.1754944e-38, %v1629
    %v1631 = vsel %vm1628, %v1630, %v1626
    %v1632 = vmul.f32 1.0, %v1631
    %v1633 = vrcp.pop %v1237
    %v1634 = vmul.f32 %v1237, %v1633
    %v1635 = vsub.f32 1.0, %v1634
    %v1636 = vmul.f32 %v1633, %v1635
    %v1637 = vadd.f32 %v1633, %v1636
    %vm1638 = vweird.f32 %v1237
    %vm1639 = vweird.f32 %v1633
    %vm1640 = vmor %vm1638, %vm1639
    %v1641 = vsel %vm1640, %v1633, %v1637
    %v1642 = vand.u32 2147483647, %v1237
    %vm1643 = vcmp.eq.f32.partialorder %v1642, 8.507059e+37
    %v1644 = vand.u32 %v1237, 2147483648
    %v1645 = vor.u32 1.1754944e-38, %v1644
    %v1646 = vsel %vm1643, %v1645, %v1641
    %v1647 = vmul.f32 1.0, %v1646
    %v1648 = vrcp.pop %v1238
    %v1649 = vmul.f32 %v1238, %v1648
    %v1650 = vsub.f32 1.0, %v1649
    %v1651 = vmul.f32 %v1648, %v1650
    %v1652 = vadd.f32 %v1648, %v1651
    %vm1653 = vweird.f32 %v1238
    %vm1654 = vweird.f32 %v1648
    %vm1655 = vmor %vm1653, %vm1654
    %v1656 = vsel %vm1655, %v1648, %v1652
    %v1657 = vand.u32 2147483647, %v1238
    %vm1658 = vcmp.eq.f32.partialorder %v1657, 8.507059e+37
    %v1659 = vand.u32 %v1238, 2147483648
    %v1660 = vor.u32 1.1754944e-38, %v1659
    %v1661 = vsel %vm1658, %v1660, %v1656
    %v1662 = vmul.f32 1.0, %v1661
    %v1663 = vrcp.pop %v1239
    %v1664 = vmul.f32 %v1239, %v1663
    %v1665 = vsub.f32 1.0, %v1664
    %v1666 = vmul.f32 %v1663, %v1665
    %v1667 = vadd.f32 %v1663, %v1666
    %vm1668 = vweird.f32 %v1239
    %vm1669 = vweird.f32 %v1663
    %vm1670 = vmor %vm1668, %vm1669
    %v1671 = vsel %vm1670, %v1663, %v1667
    %v1672 = vand.u32 2147483647, %v1239
    %vm1673 = vcmp.eq.f32.partialorder %v1672, 8.507059e+37
    %v1674 = vand.u32 %v1239, 2147483648
    %v1675 = vor.u32 1.1754944e-38, %v1674
    %v1676 = vsel %vm1673, %v1675, %v1671
    %v1677 = vmul.f32 1.0, %v1676
    %v1678 = vrcp.pop %v1240
    %v1679 = vmul.f32 %v1240, %v1678
    %v1680 = vsub.f32 1.0, %v1679
    %v1681 = vmul.f32 %v1678, %v1680
    %v1682 = vadd.f32 %v1678, %v1681
    %vm1683 = vweird.f32 %v1240
    %vm1684 = vweird.f32 %v1678
    %vm1685 = vmor %vm1683, %vm1684
    %v1686 = vsel %vm1685, %v1678, %v1682
    %v1687 = vand.u32 2147483647, %v1240
    %vm1688 = vcmp.eq.f32.partialorder %v1687, 8.507059e+37
    %v1689 = vand.u32 %v1240, 2147483648
    %v1690 = vor.u32 1.1754944e-38, %v1689
    %v1691 = vsel %vm1688, %v1690, %v1686
    %v1692 = vmul.f32 1.0, %v1691
    %v1693 = vrcp.pop %v1241
    %v1694 = vmul.f32 %v1241, %v1693
    %v1695 = vsub.f32 1.0, %v1694
    %v1696 = vmul.f32 %v1693, %v1695
    %v1697 = vadd.f32 %v1693, %v1696
    %vm1698 = vweird.f32 %v1241
    %vm1699 = vweird.f32 %v1693
    %vm1700 = vmor %vm1698, %vm1699
    %v1701 = vsel %vm1700, %v1693, %v1697
    %v1702 = vand.u32 2147483647, %v1241
    %vm1703 = vcmp.eq.f32.partialorder %v1702, 8.507059e+37
    %v1704 = vand.u32 %v1241, 2147483648
    %v1705 = vor.u32 1.1754944e-38, %v1704
    %v1706 = vsel %vm1703, %v1705, %v1701
    %v1707 = vmul.f32 1.0, %v1706
    %v1708 = vrcp.pop %v1242
    %v1709 = vmul.f32 %v1242, %v1708
    %v1710 = vsub.f32 1.0, %v1709
    %v1711 = vmul.f32 %v1708, %v1710
    %v1712 = vadd.f32 %v1708, %v1711
    %vm1713 = vweird.f32 %v1242
    %vm1714 = vweird.f32 %v1708
    %vm1715 = vmor %vm1713, %vm1714
    %v1716 = vsel %vm1715, %v1708, %v1712
    %v1717 = vand.u32 2147483647, %v1242
    %vm1718 = vcmp.eq.f32.partialorder %v1717, 8.507059e+37
    %v1719 = vand.u32 %v1242, 2147483648
    %v1720 = vor.u32 1.1754944e-38, %v1719
    %v1721 = vsel %vm1718, %v1720, %v1716
    %v1722 = vmul.f32 1.0, %v1721
    %v1723 = vmul.f32 %v1036, %v1257
    %v1724 = vmul.f32 %v1038, %v1272
    %v1725 = vmul.f32 %v1041, %v1287
    %v1726 = vmul.f32 %v1043, %v1302
    %v1727 = vmul.f32 %v1046, %v1317
    %v1728 = vmul.f32 %v1048, %v1332
    %v1729 = vmul.f32 %v1051, %v1347
    %v1730 = vmul.f32 %v1053, %v1362
    %v1731 = vmul.f32 %v1056, %v1377
    %v1732 = vmul.f32 %v1058, %v1392
    %v1733 = vmul.f32 %v1061, %v1407
    %v1734 = vmul.f32 %v1063, %v1422
    %v1735 = vmul.f32 %v1066, %v1437
    %v1736 = vmul.f32 %v1068, %v1452
    %v1737 = vmul.f32 %v1071, %v1467
    %v1738 = vmul.f32 %v1073, %v1482
    %v1739 = vmul.f32 %v1076, %v1497
    %v1740 = vmul.f32 %v1078, %v1512
    %v1741 = vmul.f32 %v1081, %v1527
    %v1742 = vmul.f32 %v1083, %v1542
    %v1743 = vmul.f32 %v1086, %v1557
    %v1744 = vmul.f32 %v1088, %v1572
    %v1745 = vmul.f32 %v1091, %v1587
    %v1746 = vmul.f32 %v1093, %v1602
    %v1747 = vmul.f32 %v1096, %v1617
    %v1748 = vmul.f32 %v1098, %v1632
    %v1749 = vmul.f32 %v1101, %v1647
    %v1750 = vmul.f32 %v1103, %v1662
    %v1751 = vmul.f32 %v1106, %v1677
    %v1752 = vmul.f32 %v1108, %v1692
    %v1753 = vmul.f32 %v1111, %v1707
    %v1754 = vmul.f32 %v1113, %v1722
    %v1755 = vpack.c.bf16 %v1724, %v1723
    %v1756 = vpack.c.bf16 %v1726, %v1725
    %v1757 = vpack.c.bf16 %v1728, %v1727
    %v1758 = vpack.c.bf16 %v1730, %v1729
    %v1759 = vpack.c.bf16 %v1732, %v1731
    %v1760 = vpack.c.bf16 %v1734, %v1733
    %v1761 = vpack.c.bf16 %v1736, %v1735
    %v1762 = vpack.c.bf16 %v1738, %v1737
    %v1763 = vpack.c.bf16 %v1740, %v1739
    %v1764 = vpack.c.bf16 %v1742, %v1741
    %v1765 = vpack.c.bf16 %v1744, %v1743
    %v1766 = vpack.c.bf16 %v1746, %v1745
    %v1767 = vpack.c.bf16 %v1748, %v1747
    %v1768 = vpack.c.bf16 %v1750, %v1749
    %v1769 = vpack.c.bf16 %v1752, %v1751
    %v1770 = vpack.c.bf16 %v1754, %v1753
    %s1771 = scalar_lea.vmem [#allocation7], 128
    %v1772 = vld [vmem:[%s1771] sm:$0xf]
    %v1773 = vld [vmem:[%s1771 + $0x4] sm:$0xf]
    %v1774 = vld [vmem:[%s1771 + $0x8] sm:$0xf]
    %v1775 = vld [vmem:[%s1771 + $0xc] sm:$0xf]
    %v1776 = vld [vmem:[%s1771 + $0x10] sm:$0xf]
    %v1777 = vld [vmem:[%s1771 + $0x14] sm:$0xf]
    %v1778 = vld [vmem:[%s1771 + $0x18] sm:$0xf]
    %v1779 = vld [vmem:[%s1771 + $0x1c] sm:$0xf]
    %v1780 = vld [vmem:[%s1771 + $0x20] sm:$0xf]
    %v1781 = vld [vmem:[%s1771 + $0x24] sm:$0xf]
    %v1782 = vld [vmem:[%s1771 + $0x28] sm:$0xf]
    %v1783 = vld [vmem:[%s1771 + $0x2c] sm:$0xf]
    %v1784 = vld [vmem:[%s1771 + $0x30] sm:$0xf]
    %v1785 = vld [vmem:[%s1771 + $0x34] sm:$0xf]
    %v1786 = vld [vmem:[%s1771 + $0x38] sm:$0xf]
    %v1787 = vld [vmem:[%s1771 + $0x3c] sm:$0xf]
    %v1788 = vld [vmem:[#allocation8 + $0x2] sm:$0x1]
    %v1789 = vperm.slane %v1788, 0
    %v1806 = vunpack.c.l.b16 %v1772
    %v1807 = vunpack.c.l.b16 %v1773
    %v1808 = vunpack.c.l.b16 %v1774
    %v1809 = vunpack.c.l.b16 %v1775
    %v1810 = vunpack.c.l.b16 %v1776
    %v1811 = vunpack.c.l.b16 %v1777
    %v1812 = vunpack.c.l.b16 %v1778
    %v1813 = vunpack.c.l.b16 %v1779
    %v1814 = vunpack.c.l.b16 %v1780
    %v1815 = vunpack.c.l.b16 %v1781
    %v1816 = vunpack.c.l.b16 %v1782
    %v1817 = vunpack.c.l.b16 %v1783
    %v1818 = vunpack.c.l.b16 %v1784
    %v1819 = vunpack.c.l.b16 %v1785
    %v1820 = vunpack.c.l.b16 %v1786
    %v1821 = vunpack.c.l.b16 %v1787
    %v1822 = vpack.c.b16 %v1807, %v1806
    %v1823 = vpack.c.b16 %v1809, %v1808
    %v1824 = vpack.c.b16 %v1811, %v1810
    %v1825 = vpack.c.b16 %v1813, %v1812
    %v1826 = vpack.c.b16 %v1815, %v1814
    %v1827 = vpack.c.b16 %v1817, %v1816
    %v1828 = vpack.c.b16 %v1819, %v1818
    %v1829 = vpack.c.b16 %v1821, %v1820
    %1838 = vmatpush.bf16.msra.mxu0 %v1829
    %1839 = vmatpush.bf16.msra.mxu0 %v1828
    %1840 = vmatpush.bf16.msra.mxu0 %v1827
    %1841 = vmatpush.bf16.msra.mxu0 %v1826
    %1842 = vmatpush.bf16.msra.mxu0 %v1825
    %1843 = vmatpush.bf16.msra.mxu0 %v1824
    %1844 = vmatpush.bf16.msra.mxu0 %v1823
    %1845 = vmatpush.bf16.msra.mxu0 %v1822
    %1846 = vmatmul.bf16.gmra.mxu0 %v1755
    %v1847 = vpop.f32.mrf.mxu0
    %v1848 = vadd.f32 %v1789, %v1847
    %v1849 = vpop.f32.mrf.mxu0
    %v1850 = vadd.f32 %v1789, %v1849
    %1851 = vmatmul.bf16.gmra.mxu0 %v1756
    %v1852 = vpop.f32.mrf.mxu0
    %v1853 = vadd.f32 %v1789, %v1852
    %v1854 = vpop.f32.mrf.mxu0
    %v1855 = vadd.f32 %v1789, %v1854
    %1856 = vmatmul.bf16.gmra.mxu0 %v1757
    %v1857 = vpop.f32.mrf.mxu0
    %v1858 = vadd.f32 %v1789, %v1857
    %v1859 = vpop.f32.mrf.mxu0
    %v1860 = vadd.f32 %v1789, %v1859
    %1861 = vmatmul.bf16.gmra.mxu0 %v1758
    %v1862 = vpop.f32.mrf.mxu0
    %v1863 = vadd.f32 %v1789, %v1862
    %v1864 = vpop.f32.mrf.mxu0
    %v1865 = vadd.f32 %v1789, %v1864
    %1866 = vmatmul.bf16.gmra.mxu0 %v1759
    %v1867 = vpop.f32.mrf.mxu0
    %v1868 = vadd.f32 %v1789, %v1867
    %v1869 = vpop.f32.mrf.mxu0
    %v1870 = vadd.f32 %v1789, %v1869
    %1871 = vmatmul.bf16.gmra.mxu0 %v1760
    %v1872 = vpop.f32.mrf.mxu0
    %v1873 = vadd.f32 %v1789, %v1872
    %v1874 = vpop.f32.mrf.mxu0
    %v1875 = vadd.f32 %v1789, %v1874
    %1876 = vmatmul.bf16.gmra.mxu0 %v1761
    %v1877 = vpop.f32.mrf.mxu0
    %v1878 = vadd.f32 %v1789, %v1877
    %v1879 = vpop.f32.mrf.mxu0
    %v1880 = vadd.f32 %v1789, %v1879
    %1881 = vmatmul.bf16.gmra.mxu0 %v1762
    %v1882 = vpop.f32.mrf.mxu0
    %v1883 = vadd.f32 %v1789, %v1882
    %v1884 = vpop.f32.mrf.mxu0
    %v1885 = vadd.f32 %v1789, %v1884
    %1886 = vmatmul.bf16.gmra.mxu0 %v1763
    %v1887 = vpop.f32.mrf.mxu0
    %v1888 = vadd.f32 %v1789, %v1887
    %v1889 = vpop.f32.mrf.mxu0
    %v1890 = vadd.f32 %v1789, %v1889
    %1891 = vmatmul.bf16.gmra.mxu0 %v1764
    %v1892 = vpop.f32.mrf.mxu0
    %v1893 = vadd.f32 %v1789, %v1892
    %v1894 = vpop.f32.mrf.mxu0
    %v1895 = vadd.f32 %v1789, %v1894
    %1896 = vmatmul.bf16.gmra.mxu0 %v1765
    %v1897 = vpop.f32.mrf.mxu0
    %v1898 = vadd.f32 %v1789, %v1897
    %v1899 = vpop.f32.mrf.mxu0
    %v1900 = vadd.f32 %v1789, %v1899
    %1901 = vmatmul.bf16.gmra.mxu0 %v1766
    %v1902 = vpop.f32.mrf.mxu0
    %v1903 = vadd.f32 %v1789, %v1902
    %v1904 = vpop.f32.mrf.mxu0
    %v1905 = vadd.f32 %v1789, %v1904
    %1906 = vmatmul.bf16.gmra.mxu0 %v1767
    %v1907 = vpop.f32.mrf.mxu0
    %v1908 = vadd.f32 %v1789, %v1907
    %v1909 = vpop.f32.mrf.mxu0
    %v1910 = vadd.f32 %v1789, %v1909
    %1911 = vmatmul.bf16.gmra.mxu0 %v1768
    %v1912 = vpop.f32.mrf.mxu0
    %v1913 = vadd.f32 %v1789, %v1912
    %v1914 = vpop.f32.mrf.mxu0
    %v1915 = vadd.f32 %v1789, %v1914
    %1916 = vmatmul.bf16.gmra.mxu0 %v1769
    %v1917 = vpop.f32.mrf.mxu0
    %v1918 = vadd.f32 %v1789, %v1917
    %v1919 = vpop.f32.mrf.mxu0
    %v1920 = vadd.f32 %v1789, %v1919
    %1921 = vmatmul.bf16.gmra.mxu0 %v1770
    %v1922 = vpop.f32.mrf.mxu0
    %v1923 = vadd.f32 %v1789, %v1922
    %v1924 = vpop.f32.mrf.mxu0
    %v1925 = vadd.f32 %v1789, %v1924
    %1926 = vdwg.mxu0
    %v1927 = vxor.u32 %v1848, 2147483648
    %v1928 = vxor.u32 %v1850, 2147483648
    %v1929 = vxor.u32 %v1853, 2147483648
    %v1930 = vxor.u32 %v1855, 2147483648
    %v1931 = vxor.u32 %v1858, 2147483648
    %v1932 = vxor.u32 %v1860, 2147483648
    %v1933 = vxor.u32 %v1863, 2147483648
    %v1934 = vxor.u32 %v1865, 2147483648
    %v1935 = vxor.u32 %v1868, 2147483648
    %v1936 = vxor.u32 %v1870, 2147483648
    %v1937 = vxor.u32 %v1873, 2147483648
    %v1938 = vxor.u32 %v1875, 2147483648
    %v1939 = vxor.u32 %v1878, 2147483648
    %v1940 = vxor.u32 %v1880, 2147483648
    %v1941 = vxor.u32 %v1883, 2147483648
    %v1942 = vxor.u32 %v1885, 2147483648
    %v1943 = vxor.u32 %v1888, 2147483648
    %v1944 = vxor.u32 %v1890, 2147483648
    %v1945 = vxor.u32 %v1893, 2147483648
    %v1946 = vxor.u32 %v1895, 2147483648
    %v1947 = vxor.u32 %v1898, 2147483648
    %v1948 = vxor.u32 %v1900, 2147483648
    %v1949 = vxor.u32 %v1903, 2147483648
    %v1950 = vxor.u32 %v1905, 2147483648
    %v1951 = vxor.u32 %v1908, 2147483648
    %v1952 = vxor.u32 %v1910, 2147483648
    %v1953 = vxor.u32 %v1913, 2147483648
    %v1954 = vxor.u32 %v1915, 2147483648
    %v1955 = vxor.u32 %v1918, 2147483648
    %v1956 = vxor.u32 %v1920, 2147483648
    %v1957 = vxor.u32 %v1923, 2147483648
    %v1958 = vxor.u32 %v1925, 2147483648
    %v1959 = vmul.f32 %v1927, 1.442695
    %v1960 = vpow.pop %v1959
    %v1961 = vmul.f32 %v1928, 1.442695
    %v1962 = vpow.pop %v1961
    %v1963 = vmul.f32 %v1929, 1.442695
    %v1964 = vpow.pop %v1963
    %v1965 = vmul.f32 %v1930, 1.442695
    %v1966 = vpow.pop %v1965
    %v1967 = vmul.f32 %v1931, 1.442695
    %v1968 = vpow.pop %v1967
    %v1969 = vmul.f32 %v1932, 1.442695
    %v1970 = vpow.pop %v1969
    %v1971 = vmul.f32 %v1933, 1.442695
    %v1972 = vpow.pop %v1971
    %v1973 = vmul.f32 %v1934, 1.442695
    %v1974 = vpow.pop %v1973
    %v1975 = vmul.f32 %v1935, 1.442695
    %v1976 = vpow.pop %v1975
    %v1977 = vmul.f32 %v1936, 1.442695
    %v1978 = vpow.pop %v1977
    %v1979 = vmul.f32 %v1937, 1.442695
    %v1980 = vpow.pop %v1979
    %v1981 = vmul.f32 %v1938, 1.442695
    %v1982 = vpow.pop %v1981
    %v1983 = vmul.f32 %v1939, 1.442695
    %v1984 = vpow.pop %v1983
    %v1985 = vmul.f32 %v1940, 1.442695
    %v1986 = vpow.pop %v1985
    %v1987 = vmul.f32 %v1941, 1.442695
    %v1988 = vpow.pop %v1987
    %v1989 = vmul.f32 %v1942, 1.442695
    %v1990 = vpow.pop %v1989
    %v1991 = vmul.f32 %v1943, 1.442695
    %v1992 = vpow.pop %v1991
    %v1993 = vmul.f32 %v1944, 1.442695
    %v1994 = vpow.pop %v1993
    %v1995 = vmul.f32 %v1945, 1.442695
    %v1996 = vpow.pop %v1995
    %v1997 = vmul.f32 %v1946, 1.442695
    %v1998 = vpow.pop %v1997
    %v1999 = vmul.f32 %v1947, 1.442695
    %v2000 = vpow.pop %v1999
    %v2001 = vmul.f32 %v1948, 1.442695
    %v2002 = vpow.pop %v2001
    %v2003 = vmul.f32 %v1949, 1.442695
    %v2004 = vpow.pop %v2003
    %v2005 = vmul.f32 %v1950, 1.442695
    %v2006 = vpow.pop %v2005
    %v2007 = vmul.f32 %v1951, 1.442695
    %v2008 = vpow.pop %v2007
    %v2009 = vmul.f32 %v1952, 1.442695
    %v2010 = vpow.pop %v2009
    %v2011 = vmul.f32 %v1953, 1.442695
    %v2012 = vpow.pop %v2011
    %v2013 = vmul.f32 %v1954, 1.442695
    %v2014 = vpow.pop %v2013
    %v2015 = vmul.f32 %v1955, 1.442695
    %v2016 = vpow.pop %v2015
    %v2017 = vmul.f32 %v1956, 1.442695
    %v2018 = vpow.pop %v2017
    %v2019 = vmul.f32 %v1957, 1.442695
    %v2020 = vpow.pop %v2019
    %v2021 = vmul.f32 %v1958, 1.442695
    %v2022 = vpow.pop %v2021
    %v2023 = vadd.f32 %v1960, 1.0
    %v2024 = vadd.f32 %v1962, 1.0
    %v2025 = vadd.f32 %v1964, 1.0
    %v2026 = vadd.f32 %v1966, 1.0
    %v2027 = vadd.f32 %v1968, 1.0
    %v2028 = vadd.f32 %v1970, 1.0
    %v2029 = vadd.f32 %v1972, 1.0
    %v2030 = vadd.f32 %v1974, 1.0
    %v2031 = vadd.f32 %v1976, 1.0
    %v2032 = vadd.f32 %v1978, 1.0
    %v2033 = vadd.f32 %v1980, 1.0
    %v2034 = vadd.f32 %v1982, 1.0
    %v2035 = vadd.f32 %v1984, 1.0
    %v2036 = vadd.f32 %v1986, 1.0
    %v2037 = vadd.f32 %v1988, 1.0
    %v2038 = vadd.f32 %v1990, 1.0
    %v2039 = vadd.f32 %v1992, 1.0
    %v2040 = vadd.f32 %v1994, 1.0
    %v2041 = vadd.f32 %v1996, 1.0
    %v2042 = vadd.f32 %v1998, 1.0
    %v2043 = vadd.f32 %v2000, 1.0
    %v2044 = vadd.f32 %v2002, 1.0
    %v2045 = vadd.f32 %v2004, 1.0
    %v2046 = vadd.f32 %v2006, 1.0
    %v2047 = vadd.f32 %v2008, 1.0
    %v2048 = vadd.f32 %v2010, 1.0
    %v2049 = vadd.f32 %v2012, 1.0
    %v2050 = vadd.f32 %v2014, 1.0
    %v2051 = vadd.f32 %v2016, 1.0
    %v2052 = vadd.f32 %v2018, 1.0
    %v2053 = vadd.f32 %v2020, 1.0
    %v2054 = vadd.f32 %v2022, 1.0
    %v2055 = vrcp.pop %v2023
    %v2056 = vmul.f32 %v2023, %v2055
    %v2057 = vsub.f32 1.0, %v2056
    %v2058 = vmul.f32 %v2055, %v2057
    %v2059 = vadd.f32 %v2055, %v2058
    %vm2060 = vweird.f32 %v2023
    %vm2061 = vweird.f32 %v2055
    %vm2062 = vmor %vm2060, %vm2061
    %v2063 = vsel %vm2062, %v2055, %v2059
    %v2064 = vand.u32 2147483647, %v2023
    %vm2065 = vcmp.eq.f32.partialorder %v2064, 8.507059e+37
    %v2066 = vand.u32 %v2023, 2147483648
    %v2067 = vor.u32 1.1754944e-38, %v2066
    %v2068 = vsel %vm2065, %v2067, %v2063
    %v2069 = vmul.f32 1.0, %v2068
    %v2070 = vrcp.pop %v2024
    %v2071 = vmul.f32 %v2024, %v2070
    %v2072 = vsub.f32 1.0, %v2071
    %v2073 = vmul.f32 %v2070, %v2072
    %v2074 = vadd.f32 %v2070, %v2073
    %vm2075 = vweird.f32 %v2024
    %vm2076 = vweird.f32 %v2070
    %vm2077 = vmor %vm2075, %vm2076
    %v2078 = vsel %vm2077, %v2070, %v2074
    %v2079 = vand.u32 2147483647, %v2024
    %vm2080 = vcmp.eq.f32.partialorder %v2079, 8.507059e+37
    %v2081 = vand.u32 %v2024, 2147483648
    %v2082 = vor.u32 1.1754944e-38, %v2081
    %v2083 = vsel %vm2080, %v2082, %v2078
    %v2084 = vmul.f32 1.0, %v2083
    %v2085 = vrcp.pop %v2025
    %v2086 = vmul.f32 %v2025, %v2085
    %v2087 = vsub.f32 1.0, %v2086
    %v2088 = vmul.f32 %v2085, %v2087
    %v2089 = vadd.f32 %v2085, %v2088
    %vm2090 = vweird.f32 %v2025
    %vm2091 = vweird.f32 %v2085
    %vm2092 = vmor %vm2090, %vm2091
    %v2093 = vsel %vm2092, %v2085, %v2089
    %v2094 = vand.u32 2147483647, %v2025
    %vm2095 = vcmp.eq.f32.partialorder %v2094, 8.507059e+37
    %v2096 = vand.u32 %v2025, 2147483648
    %v2097 = vor.u32 1.1754944e-38, %v2096
    %v2098 = vsel %vm2095, %v2097, %v2093
    %v2099 = vmul.f32 1.0, %v2098
    %v2100 = vrcp.pop %v2026
    %v2101 = vmul.f32 %v2026, %v2100
    %v2102 = vsub.f32 1.0, %v2101
    %v2103 = vmul.f32 %v2100, %v2102
    %v2104 = vadd.f32 %v2100, %v2103
    %vm2105 = vweird.f32 %v2026
    %vm2106 = vweird.f32 %v2100
    %vm2107 = vmor %vm2105, %vm2106
    %v2108 = vsel %vm2107, %v2100, %v2104
    %v2109 = vand.u32 2147483647, %v2026
    %vm2110 = vcmp.eq.f32.partialorder %v2109, 8.507059e+37
    %v2111 = vand.u32 %v2026, 2147483648
    %v2112 = vor.u32 1.1754944e-38, %v2111
    %v2113 = vsel %vm2110, %v2112, %v2108
    %v2114 = vmul.f32 1.0, %v2113
    %v2115 = vrcp.pop %v2027
    %v2116 = vmul.f32 %v2027, %v2115
    %v2117 = vsub.f32 1.0, %v2116
    %v2118 = vmul.f32 %v2115, %v2117
    %v2119 = vadd.f32 %v2115, %v2118
    %vm2120 = vweird.f32 %v2027
    %vm2121 = vweird.f32 %v2115
    %vm2122 = vmor %vm2120, %vm2121
    %v2123 = vsel %vm2122, %v2115, %v2119
    %v2124 = vand.u32 2147483647, %v2027
    %vm2125 = vcmp.eq.f32.partialorder %v2124, 8.507059e+37
    %v2126 = vand.u32 %v2027, 2147483648
    %v2127 = vor.u32 1.1754944e-38, %v2126
    %v2128 = vsel %vm2125, %v2127, %v2123
    %v2129 = vmul.f32 1.0, %v2128
    %v2130 = vrcp.pop %v2028
    %v2131 = vmul.f32 %v2028, %v2130
    %v2132 = vsub.f32 1.0, %v2131
    %v2133 = vmul.f32 %v2130, %v2132
    %v2134 = vadd.f32 %v2130, %v2133
    %vm2135 = vweird.f32 %v2028
    %vm2136 = vweird.f32 %v2130
    %vm2137 = vmor %vm2135, %vm2136
    %v2138 = vsel %vm2137, %v2130, %v2134
    %v2139 = vand.u32 2147483647, %v2028
    %vm2140 = vcmp.eq.f32.partialorder %v2139, 8.507059e+37
    %v2141 = vand.u32 %v2028, 2147483648
    %v2142 = vor.u32 1.1754944e-38, %v2141
    %v2143 = vsel %vm2140, %v2142, %v2138
    %v2144 = vmul.f32 1.0, %v2143
    %v2145 = vrcp.pop %v2029
    %v2146 = vmul.f32 %v2029, %v2145
    %v2147 = vsub.f32 1.0, %v2146
    %v2148 = vmul.f32 %v2145, %v2147
    %v2149 = vadd.f32 %v2145, %v2148
    %vm2150 = vweird.f32 %v2029
    %vm2151 = vweird.f32 %v2145
    %vm2152 = vmor %vm2150, %vm2151
    %v2153 = vsel %vm2152, %v2145, %v2149
    %v2154 = vand.u32 2147483647, %v2029
    %vm2155 = vcmp.eq.f32.partialorder %v2154, 8.507059e+37
    %v2156 = vand.u32 %v2029, 2147483648
    %v2157 = vor.u32 1.1754944e-38, %v2156
    %v2158 = vsel %vm2155, %v2157, %v2153
    %v2159 = vmul.f32 1.0, %v2158
    %v2160 = vrcp.pop %v2030
    %v2161 = vmul.f32 %v2030, %v2160
    %v2162 = vsub.f32 1.0, %v2161
    %v2163 = vmul.f32 %v2160, %v2162
    %v2164 = vadd.f32 %v2160, %v2163
    %vm2165 = vweird.f32 %v2030
    %vm2166 = vweird.f32 %v2160
    %vm2167 = vmor %vm2165, %vm2166
    %v2168 = vsel %vm2167, %v2160, %v2164
    %v2169 = vand.u32 2147483647, %v2030
    %vm2170 = vcmp.eq.f32.partialorder %v2169, 8.507059e+37
    %v2171 = vand.u32 %v2030, 2147483648
    %v2172 = vor.u32 1.1754944e-38, %v2171
    %v2173 = vsel %vm2170, %v2172, %v2168
    %v2174 = vmul.f32 1.0, %v2173
    %v2175 = vrcp.pop %v2031
    %v2176 = vmul.f32 %v2031, %v2175
    %v2177 = vsub.f32 1.0, %v2176
    %v2178 = vmul.f32 %v2175, %v2177
    %v2179 = vadd.f32 %v2175, %v2178
    %vm2180 = vweird.f32 %v2031
    %vm2181 = vweird.f32 %v2175
    %vm2182 = vmor %vm2180, %vm2181
    %v2183 = vsel %vm2182, %v2175, %v2179
    %v2184 = vand.u32 2147483647, %v2031
    %vm2185 = vcmp.eq.f32.partialorder %v2184, 8.507059e+37
    %v2186 = vand.u32 %v2031, 2147483648
    %v2187 = vor.u32 1.1754944e-38, %v2186
    %v2188 = vsel %vm2185, %v2187, %v2183
    %v2189 = vmul.f32 1.0, %v2188
    %v2190 = vrcp.pop %v2032
    %v2191 = vmul.f32 %v2032, %v2190
    %v2192 = vsub.f32 1.0, %v2191
    %v2193 = vmul.f32 %v2190, %v2192
    %v2194 = vadd.f32 %v2190, %v2193
    %vm2195 = vweird.f32 %v2032
    %vm2196 = vweird.f32 %v2190
    %vm2197 = vmor %vm2195, %vm2196
    %v2198 = vsel %vm2197, %v2190, %v2194
    %v2199 = vand.u32 2147483647, %v2032
    %vm2200 = vcmp.eq.f32.partialorder %v2199, 8.507059e+37
    %v2201 = vand.u32 %v2032, 2147483648
    %v2202 = vor.u32 1.1754944e-38, %v2201
    %v2203 = vsel %vm2200, %v2202, %v2198
    %v2204 = vmul.f32 1.0, %v2203
    %v2205 = vrcp.pop %v2033
    %v2206 = vmul.f32 %v2033, %v2205
    %v2207 = vsub.f32 1.0, %v2206
    %v2208 = vmul.f32 %v2205, %v2207
    %v2209 = vadd.f32 %v2205, %v2208
    %vm2210 = vweird.f32 %v2033
    %vm2211 = vweird.f32 %v2205
    %vm2212 = vmor %vm2210, %vm2211
    %v2213 = vsel %vm2212, %v2205, %v2209
    %v2214 = vand.u32 2147483647, %v2033
    %vm2215 = vcmp.eq.f32.partialorder %v2214, 8.507059e+37
    %v2216 = vand.u32 %v2033, 2147483648
    %v2217 = vor.u32 1.1754944e-38, %v2216
    %v2218 = vsel %vm2215, %v2217, %v2213
    %v2219 = vmul.f32 1.0, %v2218
    %v2220 = vrcp.pop %v2034
    %v2221 = vmul.f32 %v2034, %v2220
    %v2222 = vsub.f32 1.0, %v2221
    %v2223 = vmul.f32 %v2220, %v2222
    %v2224 = vadd.f32 %v2220, %v2223
    %vm2225 = vweird.f32 %v2034
    %vm2226 = vweird.f32 %v2220
    %vm2227 = vmor %vm2225, %vm2226
    %v2228 = vsel %vm2227, %v2220, %v2224
    %v2229 = vand.u32 2147483647, %v2034
    %vm2230 = vcmp.eq.f32.partialorder %v2229, 8.507059e+37
    %v2231 = vand.u32 %v2034, 2147483648
    %v2232 = vor.u32 1.1754944e-38, %v2231
    %v2233 = vsel %vm2230, %v2232, %v2228
    %v2234 = vmul.f32 1.0, %v2233
    %v2235 = vrcp.pop %v2035
    %v2236 = vmul.f32 %v2035, %v2235
    %v2237 = vsub.f32 1.0, %v2236
    %v2238 = vmul.f32 %v2235, %v2237
    %v2239 = vadd.f32 %v2235, %v2238
    %vm2240 = vweird.f32 %v2035
    %vm2241 = vweird.f32 %v2235
    %vm2242 = vmor %vm2240, %vm2241
    %v2243 = vsel %vm2242, %v2235, %v2239
    %v2244 = vand.u32 2147483647, %v2035
    %vm2245 = vcmp.eq.f32.partialorder %v2244, 8.507059e+37
    %v2246 = vand.u32 %v2035, 2147483648
    %v2247 = vor.u32 1.1754944e-38, %v2246
    %v2248 = vsel %vm2245, %v2247, %v2243
    %v2249 = vmul.f32 1.0, %v2248
    %v2250 = vrcp.pop %v2036
    %v2251 = vmul.f32 %v2036, %v2250
    %v2252 = vsub.f32 1.0, %v2251
    %v2253 = vmul.f32 %v2250, %v2252
    %v2254 = vadd.f32 %v2250, %v2253
    %vm2255 = vweird.f32 %v2036
    %vm2256 = vweird.f32 %v2250
    %vm2257 = vmor %vm2255, %vm2256
    %v2258 = vsel %vm2257, %v2250, %v2254
    %v2259 = vand.u32 2147483647, %v2036
    %vm2260 = vcmp.eq.f32.partialorder %v2259, 8.507059e+37
    %v2261 = vand.u32 %v2036, 2147483648
    %v2262 = vor.u32 1.1754944e-38, %v2261
    %v2263 = vsel %vm2260, %v2262, %v2258
    %v2264 = vmul.f32 1.0, %v2263
    %v2265 = vrcp.pop %v2037
    %v2266 = vmul.f32 %v2037, %v2265
    %v2267 = vsub.f32 1.0, %v2266
    %v2268 = vmul.f32 %v2265, %v2267
    %v2269 = vadd.f32 %v2265, %v2268
    %vm2270 = vweird.f32 %v2037
    %vm2271 = vweird.f32 %v2265
    %vm2272 = vmor %vm2270, %vm2271
    %v2273 = vsel %vm2272, %v2265, %v2269
    %v2274 = vand.u32 2147483647, %v2037
    %vm2275 = vcmp.eq.f32.partialorder %v2274, 8.507059e+37
    %v2276 = vand.u32 %v2037, 2147483648
    %v2277 = vor.u32 1.1754944e-38, %v2276
    %v2278 = vsel %vm2275, %v2277, %v2273
    %v2279 = vmul.f32 1.0, %v2278
    %v2280 = vrcp.pop %v2038
    %v2281 = vmul.f32 %v2038, %v2280
    %v2282 = vsub.f32 1.0, %v2281
    %v2283 = vmul.f32 %v2280, %v2282
    %v2284 = vadd.f32 %v2280, %v2283
    %vm2285 = vweird.f32 %v2038
    %vm2286 = vweird.f32 %v2280
    %vm2287 = vmor %vm2285, %vm2286
    %v2288 = vsel %vm2287, %v2280, %v2284
    %v2289 = vand.u32 2147483647, %v2038
    %vm2290 = vcmp.eq.f32.partialorder %v2289, 8.507059e+37
    %v2291 = vand.u32 %v2038, 2147483648
    %v2292 = vor.u32 1.1754944e-38, %v2291
    %v2293 = vsel %vm2290, %v2292, %v2288
    %v2294 = vmul.f32 1.0, %v2293
    %v2295 = vrcp.pop %v2039
    %v2296 = vmul.f32 %v2039, %v2295
    %v2297 = vsub.f32 1.0, %v2296
    %v2298 = vmul.f32 %v2295, %v2297
    %v2299 = vadd.f32 %v2295, %v2298
    %vm2300 = vweird.f32 %v2039
    %vm2301 = vweird.f32 %v2295
    %vm2302 = vmor %vm2300, %vm2301
    %v2303 = vsel %vm2302, %v2295, %v2299
    %v2304 = vand.u32 2147483647, %v2039
    %vm2305 = vcmp.eq.f32.partialorder %v2304, 8.507059e+37
    %v2306 = vand.u32 %v2039, 2147483648
    %v2307 = vor.u32 1.1754944e-38, %v2306
    %v2308 = vsel %vm2305, %v2307, %v2303
    %v2309 = vmul.f32 1.0, %v2308
    %v2310 = vrcp.pop %v2040
    %v2311 = vmul.f32 %v2040, %v2310
    %v2312 = vsub.f32 1.0, %v2311
    %v2313 = vmul.f32 %v2310, %v2312
    %v2314 = vadd.f32 %v2310, %v2313
    %vm2315 = vweird.f32 %v2040
    %vm2316 = vweird.f32 %v2310
    %vm2317 = vmor %vm2315, %vm2316
    %v2318 = vsel %vm2317, %v2310, %v2314
    %v2319 = vand.u32 2147483647, %v2040
    %vm2320 = vcmp.eq.f32.partialorder %v2319, 8.507059e+37
    %v2321 = vand.u32 %v2040, 2147483648
    %v2322 = vor.u32 1.1754944e-38, %v2321
    %v2323 = vsel %vm2320, %v2322, %v2318
    %v2324 = vmul.f32 1.0, %v2323
    %v2325 = vrcp.pop %v2041
    %v2326 = vmul.f32 %v2041, %v2325
    %v2327 = vsub.f32 1.0, %v2326
    %v2328 = vmul.f32 %v2325, %v2327
    %v2329 = vadd.f32 %v2325, %v2328
    %vm2330 = vweird.f32 %v2041
    %vm2331 = vweird.f32 %v2325
    %vm2332 = vmor %vm2330, %vm2331
    %v2333 = vsel %vm2332, %v2325, %v2329
    %v2334 = vand.u32 2147483647, %v2041
    %vm2335 = vcmp.eq.f32.partialorder %v2334, 8.507059e+37
    %v2336 = vand.u32 %v2041, 2147483648
    %v2337 = vor.u32 1.1754944e-38, %v2336
    %v2338 = vsel %vm2335, %v2337, %v2333
    %v2339 = vmul.f32 1.0, %v2338
    %v2340 = vrcp.pop %v2042
    %v2341 = vmul.f32 %v2042, %v2340
    %v2342 = vsub.f32 1.0, %v2341
    %v2343 = vmul.f32 %v2340, %v2342
    %v2344 = vadd.f32 %v2340, %v2343
    %vm2345 = vweird.f32 %v2042
    %vm2346 = vweird.f32 %v2340
    %vm2347 = vmor %vm2345, %vm2346
    %v2348 = vsel %vm2347, %v2340, %v2344
    %v2349 = vand.u32 2147483647, %v2042
    %vm2350 = vcmp.eq.f32.partialorder %v2349, 8.507059e+37
    %v2351 = vand.u32 %v2042, 2147483648
    %v2352 = vor.u32 1.1754944e-38, %v2351
    %v2353 = vsel %vm2350, %v2352, %v2348
    %v2354 = vmul.f32 1.0, %v2353
    %v2355 = vrcp.pop %v2043
    %v2356 = vmul.f32 %v2043, %v2355
    %v2357 = vsub.f32 1.0, %v2356
    %v2358 = vmul.f32 %v2355, %v2357
    %v2359 = vadd.f32 %v2355, %v2358
    %vm2360 = vweird.f32 %v2043
    %vm2361 = vweird.f32 %v2355
    %vm2362 = vmor %vm2360, %vm2361
    %v2363 = vsel %vm2362, %v2355, %v2359
    %v2364 = vand.u32 2147483647, %v2043
    %vm2365 = vcmp.eq.f32.partialorder %v2364, 8.507059e+37
    %v2366 = vand.u32 %v2043, 2147483648
    %v2367 = vor.u32 1.1754944e-38, %v2366
    %v2368 = vsel %vm2365, %v2367, %v2363
    %v2369 = vmul.f32 1.0, %v2368
    %v2370 = vrcp.pop %v2044
    %v2371 = vmul.f32 %v2044, %v2370
    %v2372 = vsub.f32 1.0, %v2371
    %v2373 = vmul.f32 %v2370, %v2372
    %v2374 = vadd.f32 %v2370, %v2373
    %vm2375 = vweird.f32 %v2044
    %vm2376 = vweird.f32 %v2370
    %vm2377 = vmor %vm2375, %vm2376
    %v2378 = vsel %vm2377, %v2370, %v2374
    %v2379 = vand.u32 2147483647, %v2044
    %vm2380 = vcmp.eq.f32.partialorder %v2379, 8.507059e+37
    %v2381 = vand.u32 %v2044, 2147483648
    %v2382 = vor.u32 1.1754944e-38, %v2381
    %v2383 = vsel %vm2380, %v2382, %v2378
    %v2384 = vmul.f32 1.0, %v2383
    %v2385 = vrcp.pop %v2045
    %v2386 = vmul.f32 %v2045, %v2385
    %v2387 = vsub.f32 1.0, %v2386
    %v2388 = vmul.f32 %v2385, %v2387
    %v2389 = vadd.f32 %v2385, %v2388
    %vm2390 = vweird.f32 %v2045
    %vm2391 = vweird.f32 %v2385
    %vm2392 = vmor %vm2390, %vm2391
    %v2393 = vsel %vm2392, %v2385, %v2389
    %v2394 = vand.u32 2147483647, %v2045
    %vm2395 = vcmp.eq.f32.partialorder %v2394, 8.507059e+37
    %v2396 = vand.u32 %v2045, 2147483648
    %v2397 = vor.u32 1.1754944e-38, %v2396
    %v2398 = vsel %vm2395, %v2397, %v2393
    %v2399 = vmul.f32 1.0, %v2398
    %v2400 = vrcp.pop %v2046
    %v2401 = vmul.f32 %v2046, %v2400
    %v2402 = vsub.f32 1.0, %v2401
    %v2403 = vmul.f32 %v2400, %v2402
    %v2404 = vadd.f32 %v2400, %v2403
    %vm2405 = vweird.f32 %v2046
    %vm2406 = vweird.f32 %v2400
    %vm2407 = vmor %vm2405, %vm2406
    %v2408 = vsel %vm2407, %v2400, %v2404
    %v2409 = vand.u32 2147483647, %v2046
    %vm2410 = vcmp.eq.f32.partialorder %v2409, 8.507059e+37
    %v2411 = vand.u32 %v2046, 2147483648
    %v2412 = vor.u32 1.1754944e-38, %v2411
    %v2413 = vsel %vm2410, %v2412, %v2408
    %v2414 = vmul.f32 1.0, %v2413
    %v2415 = vrcp.pop %v2047
    %v2416 = vmul.f32 %v2047, %v2415
    %v2417 = vsub.f32 1.0, %v2416
    %v2418 = vmul.f32 %v2415, %v2417
    %v2419 = vadd.f32 %v2415, %v2418
    %vm2420 = vweird.f32 %v2047
    %vm2421 = vweird.f32 %v2415
    %vm2422 = vmor %vm2420, %vm2421
    %v2423 = vsel %vm2422, %v2415, %v2419
    %v2424 = vand.u32 2147483647, %v2047
    %vm2425 = vcmp.eq.f32.partialorder %v2424, 8.507059e+37
    %v2426 = vand.u32 %v2047, 2147483648
    %v2427 = vor.u32 1.1754944e-38, %v2426
    %v2428 = vsel %vm2425, %v2427, %v2423
    %v2429 = vmul.f32 1.0, %v2428
    %v2430 = vrcp.pop %v2048
    %v2431 = vmul.f32 %v2048, %v2430
    %v2432 = vsub.f32 1.0, %v2431
    %v2433 = vmul.f32 %v2430, %v2432
    %v2434 = vadd.f32 %v2430, %v2433
    %vm2435 = vweird.f32 %v2048
    %vm2436 = vweird.f32 %v2430
    %vm2437 = vmor %vm2435, %vm2436
    %v2438 = vsel %vm2437, %v2430, %v2434
    %v2439 = vand.u32 2147483647, %v2048
    %vm2440 = vcmp.eq.f32.partialorder %v2439, 8.507059e+37
    %v2441 = vand.u32 %v2048, 2147483648
    %v2442 = vor.u32 1.1754944e-38, %v2441
    %v2443 = vsel %vm2440, %v2442, %v2438
    %v2444 = vmul.f32 1.0, %v2443
    %v2445 = vrcp.pop %v2049
    %v2446 = vmul.f32 %v2049, %v2445
    %v2447 = vsub.f32 1.0, %v2446
    %v2448 = vmul.f32 %v2445, %v2447
    %v2449 = vadd.f32 %v2445, %v2448
    %vm2450 = vweird.f32 %v2049
    %vm2451 = vweird.f32 %v2445
    %vm2452 = vmor %vm2450, %vm2451
    %v2453 = vsel %vm2452, %v2445, %v2449
    %v2454 = vand.u32 2147483647, %v2049
    %vm2455 = vcmp.eq.f32.partialorder %v2454, 8.507059e+37
    %v2456 = vand.u32 %v2049, 2147483648
    %v2457 = vor.u32 1.1754944e-38, %v2456
    %v2458 = vsel %vm2455, %v2457, %v2453
    %v2459 = vmul.f32 1.0, %v2458
    %v2460 = vrcp.pop %v2050
    %v2461 = vmul.f32 %v2050, %v2460
    %v2462 = vsub.f32 1.0, %v2461
    %v2463 = vmul.f32 %v2460, %v2462
    %v2464 = vadd.f32 %v2460, %v2463
    %vm2465 = vweird.f32 %v2050
    %vm2466 = vweird.f32 %v2460
    %vm2467 = vmor %vm2465, %vm2466
    %v2468 = vsel %vm2467, %v2460, %v2464
    %v2469 = vand.u32 2147483647, %v2050
    %vm2470 = vcmp.eq.f32.partialorder %v2469, 8.507059e+37
    %v2471 = vand.u32 %v2050, 2147483648
    %v2472 = vor.u32 1.1754944e-38, %v2471
    %v2473 = vsel %vm2470, %v2472, %v2468
    %v2474 = vmul.f32 1.0, %v2473
    %v2475 = vrcp.pop %v2051
    %v2476 = vmul.f32 %v2051, %v2475
    %v2477 = vsub.f32 1.0, %v2476
    %v2478 = vmul.f32 %v2475, %v2477
    %v2479 = vadd.f32 %v2475, %v2478
    %vm2480 = vweird.f32 %v2051
    %vm2481 = vweird.f32 %v2475
    %vm2482 = vmor %vm2480, %vm2481
    %v2483 = vsel %vm2482, %v2475, %v2479
    %v2484 = vand.u32 2147483647, %v2051
    %vm2485 = vcmp.eq.f32.partialorder %v2484, 8.507059e+37
    %v2486 = vand.u32 %v2051, 2147483648
    %v2487 = vor.u32 1.1754944e-38, %v2486
    %v2488 = vsel %vm2485, %v2487, %v2483
    %v2489 = vmul.f32 1.0, %v2488
    %v2490 = vrcp.pop %v2052
    %v2491 = vmul.f32 %v2052, %v2490
    %v2492 = vsub.f32 1.0, %v2491
    %v2493 = vmul.f32 %v2490, %v2492
    %v2494 = vadd.f32 %v2490, %v2493
    %vm2495 = vweird.f32 %v2052
    %vm2496 = vweird.f32 %v2490
    %vm2497 = vmor %vm2495, %vm2496
    %v2498 = vsel %vm2497, %v2490, %v2494
    %v2499 = vand.u32 2147483647, %v2052
    %vm2500 = vcmp.eq.f32.partialorder %v2499, 8.507059e+37
    %v2501 = vand.u32 %v2052, 2147483648
    %v2502 = vor.u32 1.1754944e-38, %v2501
    %v2503 = vsel %vm2500, %v2502, %v2498
    %v2504 = vmul.f32 1.0, %v2503
    %v2505 = vrcp.pop %v2053
    %v2506 = vmul.f32 %v2053, %v2505
    %v2507 = vsub.f32 1.0, %v2506
    %v2508 = vmul.f32 %v2505, %v2507
    %v2509 = vadd.f32 %v2505, %v2508
    %vm2510 = vweird.f32 %v2053
    %vm2511 = vweird.f32 %v2505
    %vm2512 = vmor %vm2510, %vm2511
    %v2513 = vsel %vm2512, %v2505, %v2509
    %v2514 = vand.u32 2147483647, %v2053
    %vm2515 = vcmp.eq.f32.partialorder %v2514, 8.507059e+37
    %v2516 = vand.u32 %v2053, 2147483648
    %v2517 = vor.u32 1.1754944e-38, %v2516
    %v2518 = vsel %vm2515, %v2517, %v2513
    %v2519 = vmul.f32 1.0, %v2518
    %v2520 = vrcp.pop %v2054
    %v2521 = vmul.f32 %v2054, %v2520
    %v2522 = vsub.f32 1.0, %v2521
    %v2523 = vmul.f32 %v2520, %v2522
    %v2524 = vadd.f32 %v2520, %v2523
    %vm2525 = vweird.f32 %v2054
    %vm2526 = vweird.f32 %v2520
    %vm2527 = vmor %vm2525, %vm2526
    %v2528 = vsel %vm2527, %v2520, %v2524
    %v2529 = vand.u32 2147483647, %v2054
    %vm2530 = vcmp.eq.f32.partialorder %v2529, 8.507059e+37
    %v2531 = vand.u32 %v2054, 2147483648
    %v2532 = vor.u32 1.1754944e-38, %v2531
    %v2533 = vsel %vm2530, %v2532, %v2528
    %v2534 = vmul.f32 1.0, %v2533
    %v2535 = vmul.f32 %v1848, %v2069
    %v2536 = vmul.f32 %v1850, %v2084
    %v2537 = vmul.f32 %v1853, %v2099
    %v2538 = vmul.f32 %v1855, %v2114
    %v2539 = vmul.f32 %v1858, %v2129
    %v2540 = vmul.f32 %v1860, %v2144
    %v2541 = vmul.f32 %v1863, %v2159
    %v2542 = vmul.f32 %v1865, %v2174
    %v2543 = vmul.f32 %v1868, %v2189
    %v2544 = vmul.f32 %v1870, %v2204
    %v2545 = vmul.f32 %v1873, %v2219
    %v2546 = vmul.f32 %v1875, %v2234
    %v2547 = vmul.f32 %v1878, %v2249
    %v2548 = vmul.f32 %v1880, %v2264
    %v2549 = vmul.f32 %v1883, %v2279
    %v2550 = vmul.f32 %v1885, %v2294
    %v2551 = vmul.f32 %v1888, %v2309
    %v2552 = vmul.f32 %v1890, %v2324
    %v2553 = vmul.f32 %v1893, %v2339
    %v2554 = vmul.f32 %v1895, %v2354
    %v2555 = vmul.f32 %v1898, %v2369
    %v2556 = vmul.f32 %v1900, %v2384
    %v2557 = vmul.f32 %v1903, %v2399
    %v2558 = vmul.f32 %v1905, %v2414
    %v2559 = vmul.f32 %v1908, %v2429
    %v2560 = vmul.f32 %v1910, %v2444
    %v2561 = vmul.f32 %v1913, %v2459
    %v2562 = vmul.f32 %v1915, %v2474
    %v2563 = vmul.f32 %v1918, %v2489
    %v2564 = vmul.f32 %v1920, %v2504
    %v2565 = vmul.f32 %v1923, %v2519
    %v2566 = vmul.f32 %v1925, %v2534
    %v2567 = vpack.c.bf16 %v2536, %v2535
    %v2568 = vpack.c.bf16 %v2538, %v2537
    %v2569 = vpack.c.bf16 %v2540, %v2539
    %v2570 = vpack.c.bf16 %v2542, %v2541
    %v2571 = vpack.c.bf16 %v2544, %v2543
    %v2572 = vpack.c.bf16 %v2546, %v2545
    %v2573 = vpack.c.bf16 %v2548, %v2547
    %v2574 = vpack.c.bf16 %v2550, %v2549
    %v2575 = vpack.c.bf16 %v2552, %v2551
    %v2576 = vpack.c.bf16 %v2554, %v2553
    %v2577 = vpack.c.bf16 %v2556, %v2555
    %v2578 = vpack.c.bf16 %v2558, %v2557
    %v2579 = vpack.c.bf16 %v2560, %v2559
    %v2580 = vpack.c.bf16 %v2562, %v2561
    %v2581 = vpack.c.bf16 %v2564, %v2563
    %v2582 = vpack.c.bf16 %v2566, %v2565
    %s2583 = scalar_lea.vmem [#allocation7], 192
    %v2584 = vld [vmem:[%s2583] sm:$0xf]
    %v2585 = vld [vmem:[%s2583 + $0x4] sm:$0xf]
    %v2586 = vld [vmem:[%s2583 + $0x8] sm:$0xf]
    %v2587 = vld [vmem:[%s2583 + $0xc] sm:$0xf]
    %v2588 = vld [vmem:[%s2583 + $0x10] sm:$0xf]
    %v2589 = vld [vmem:[%s2583 + $0x14] sm:$0xf]
    %v2590 = vld [vmem:[%s2583 + $0x18] sm:$0xf]
    %v2591 = vld [vmem:[%s2583 + $0x1c] sm:$0xf]
    %v2592 = vld [vmem:[%s2583 + $0x20] sm:$0xf]
    %v2593 = vld [vmem:[%s2583 + $0x24] sm:$0xf]
    %v2594 = vld [vmem:[%s2583 + $0x28] sm:$0xf]
    %v2595 = vld [vmem:[%s2583 + $0x2c] sm:$0xf]
    %v2596 = vld [vmem:[%s2583 + $0x30] sm:$0xf]
    %v2597 = vld [vmem:[%s2583 + $0x34] sm:$0xf]
    %v2598 = vld [vmem:[%s2583 + $0x38] sm:$0xf]
    %v2599 = vld [vmem:[%s2583 + $0x3c] sm:$0xf]
    %v2600 = vld [vmem:[#allocation8 + $0x3] sm:$0x1]
    %v2601 = vperm.slane %v2600, 0
    %v2618 = vunpack.c.l.b16 %v2584
    %v2619 = vunpack.c.l.b16 %v2585
    %v2620 = vunpack.c.l.b16 %v2586
    %v2621 = vunpack.c.l.b16 %v2587
    %v2622 = vunpack.c.l.b16 %v2588
    %v2623 = vunpack.c.l.b16 %v2589
    %v2624 = vunpack.c.l.b16 %v2590
    %v2625 = vunpack.c.l.b16 %v2591
    %v2626 = vunpack.c.l.b16 %v2592
    %v2627 = vunpack.c.l.b16 %v2593
    %v2628 = vunpack.c.l.b16 %v2594
    %v2629 = vunpack.c.l.b16 %v2595
    %v2630 = vunpack.c.l.b16 %v2596
    %v2631 = vunpack.c.l.b16 %v2597
    %v2632 = vunpack.c.l.b16 %v2598
    %v2633 = vunpack.c.l.b16 %v2599
    %v2634 = vpack.c.b16 %v2619, %v2618
    %v2635 = vpack.c.b16 %v2621, %v2620
    %v2636 = vpack.c.b16 %v2623, %v2622
    %v2637 = vpack.c.b16 %v2625, %v2624
    %v2638 = vpack.c.b16 %v2627, %v2626
    %v2639 = vpack.c.b16 %v2629, %v2628
    %v2640 = vpack.c.b16 %v2631, %v2630
    %v2641 = vpack.c.b16 %v2633, %v2632
    %2650 = vmatpush.bf16.msra.mxu0 %v2641
    %2651 = vmatpush.bf16.msra.mxu0 %v2640
    %2652 = vmatpush.bf16.msra.mxu0 %v2639
    %2653 = vmatpush.bf16.msra.mxu0 %v2638
    %2654 = vmatpush.bf16.msra.mxu0 %v2637
    %2655 = vmatpush.bf16.msra.mxu0 %v2636
    %2656 = vmatpush.bf16.msra.mxu0 %v2635
    %2657 = vmatpush.bf16.msra.mxu0 %v2634
    %2658 = vmatmul.bf16.gmra.mxu0 %v2567
    %v2659 = vpop.f32.mrf.mxu0
    %v2660 = vadd.f32 %v2601, %v2659
    %v2661 = vpop.f32.mrf.mxu0
    %v2662 = vadd.f32 %v2601, %v2661
    %2663 = vmatmul.bf16.gmra.mxu0 %v2568
    %v2664 = vpop.f32.mrf.mxu0
    %v2665 = vadd.f32 %v2601, %v2664
    %v2666 = vpop.f32.mrf.mxu0
    %v2667 = vadd.f32 %v2601, %v2666
    %2668 = vmatmul.bf16.gmra.mxu0 %v2569
    %v2669 = vpop.f32.mrf.mxu0
    %v2670 = vadd.f32 %v2601, %v2669
    %v2671 = vpop.f32.mrf.mxu0
    %v2672 = vadd.f32 %v2601, %v2671
    %2673 = vmatmul.bf16.gmra.mxu0 %v2570
    %v2674 = vpop.f32.mrf.mxu0
    %v2675 = vadd.f32 %v2601, %v2674
    %v2676 = vpop.f32.mrf.mxu0
    %v2677 = vadd.f32 %v2601, %v2676
    %2678 = vmatmul.bf16.gmra.mxu0 %v2571
    %v2679 = vpop.f32.mrf.mxu0
    %v2680 = vadd.f32 %v2601, %v2679
    %v2681 = vpop.f32.mrf.mxu0
    %v2682 = vadd.f32 %v2601, %v2681
    %2683 = vmatmul.bf16.gmra.mxu0 %v2572
    %v2684 = vpop.f32.mrf.mxu0
    %v2685 = vadd.f32 %v2601, %v2684
    %v2686 = vpop.f32.mrf.mxu0
    %v2687 = vadd.f32 %v2601, %v2686
    %2688 = vmatmul.bf16.gmra.mxu0 %v2573
    %v2689 = vpop.f32.mrf.mxu0
    %v2690 = vadd.f32 %v2601, %v2689
    %v2691 = vpop.f32.mrf.mxu0
    %v2692 = vadd.f32 %v2601, %v2691
    %2693 = vmatmul.bf16.gmra.mxu0 %v2574
    %v2694 = vpop.f32.mrf.mxu0
    %v2695 = vadd.f32 %v2601, %v2694
    %v2696 = vpop.f32.mrf.mxu0
    %v2697 = vadd.f32 %v2601, %v2696
    %2698 = vmatmul.bf16.gmra.mxu0 %v2575
    %v2699 = vpop.f32.mrf.mxu0
    %v2700 = vadd.f32 %v2601, %v2699
    %v2701 = vpop.f32.mrf.mxu0
    %v2702 = vadd.f32 %v2601, %v2701
    %2703 = vmatmul.bf16.gmra.mxu0 %v2576
    %v2704 = vpop.f32.mrf.mxu0
    %v2705 = vadd.f32 %v2601, %v2704
    %v2706 = vpop.f32.mrf.mxu0
    %v2707 = vadd.f32 %v2601, %v2706
    %2708 = vmatmul.bf16.gmra.mxu0 %v2577
    %v2709 = vpop.f32.mrf.mxu0
    %v2710 = vadd.f32 %v2601, %v2709
    %v2711 = vpop.f32.mrf.mxu0
    %v2712 = vadd.f32 %v2601, %v2711
    %2713 = vmatmul.bf16.gmra.mxu0 %v2578
    %v2714 = vpop.f32.mrf.mxu0
    %v2715 = vadd.f32 %v2601, %v2714
    %v2716 = vpop.f32.mrf.mxu0
    %v2717 = vadd.f32 %v2601, %v2716
    %2718 = vmatmul.bf16.gmra.mxu0 %v2579
    %v2719 = vpop.f32.mrf.mxu0
    %v2720 = vadd.f32 %v2601, %v2719
    %v2721 = vpop.f32.mrf.mxu0
    %v2722 = vadd.f32 %v2601, %v2721
    %2723 = vmatmul.bf16.gmra.mxu0 %v2580
    %v2724 = vpop.f32.mrf.mxu0
    %v2725 = vadd.f32 %v2601, %v2724
    %v2726 = vpop.f32.mrf.mxu0
    %v2727 = vadd.f32 %v2601, %v2726
    %2728 = vmatmul.bf16.gmra.mxu0 %v2581
    %v2729 = vpop.f32.mrf.mxu0
    %v2730 = vadd.f32 %v2601, %v2729
    %v2731 = vpop.f32.mrf.mxu0
    %v2732 = vadd.f32 %v2601, %v2731
    %2733 = vmatmul.bf16.gmra.mxu0 %v2582
    %v2734 = vpop.f32.mrf.mxu0
    %v2735 = vadd.f32 %v2601, %v2734
    %v2736 = vpop.f32.mrf.mxu0
    %v2737 = vadd.f32 %v2601, %v2736
    %2738 = vdwg.mxu0
    %v2739 = vxor.u32 %v2660, 2147483648
    %v2740 = vxor.u32 %v2662, 2147483648
    %v2741 = vxor.u32 %v2665, 2147483648
    %v2742 = vxor.u32 %v2667, 2147483648
    %v2743 = vxor.u32 %v2670, 2147483648
    %v2744 = vxor.u32 %v2672, 2147483648
    %v2745 = vxor.u32 %v2675, 2147483648
    %v2746 = vxor.u32 %v2677, 2147483648
    %v2747 = vxor.u32 %v2680, 2147483648
    %v2748 = vxor.u32 %v2682, 2147483648
    %v2749 = vxor.u32 %v2685, 2147483648
    %v2750 = vxor.u32 %v2687, 2147483648
    %v2751 = vxor.u32 %v2690, 2147483648
    %v2752 = vxor.u32 %v2692, 2147483648
    %v2753 = vxor.u32 %v2695, 2147483648
    %v2754 = vxor.u32 %v2697, 2147483648
    %v2755 = vxor.u32 %v2700, 2147483648
    %v2756 = vxor.u32 %v2702, 2147483648
    %v2757 = vxor.u32 %v2705, 2147483648
    %v2758 = vxor.u32 %v2707, 2147483648
    %v2759 = vxor.u32 %v2710, 2147483648
    %v2760 = vxor.u32 %v2712, 2147483648
    %v2761 = vxor.u32 %v2715, 2147483648
    %v2762 = vxor.u32 %v2717, 2147483648
    %v2763 = vxor.u32 %v2720, 2147483648
    %v2764 = vxor.u32 %v2722, 2147483648
    %v2765 = vxor.u32 %v2725, 2147483648
    %v2766 = vxor.u32 %v2727, 2147483648
    %v2767 = vxor.u32 %v2730, 2147483648
    %v2768 = vxor.u32 %v2732, 2147483648
    %v2769 = vxor.u32 %v2735, 2147483648
    %v2770 = vxor.u32 %v2737, 2147483648
    %v2771 = vmul.f32 %v2739, 1.442695
    %v2772 = vpow.pop %v2771
    %v2773 = vmul.f32 %v2740, 1.442695
    %v2774 = vpow.pop %v2773
    %v2775 = vmul.f32 %v2741, 1.442695
    %v2776 = vpow.pop %v2775
    %v2777 = vmul.f32 %v2742, 1.442695
    %v2778 = vpow.pop %v2777
    %v2779 = vmul.f32 %v2743, 1.442695
    %v2780 = vpow.pop %v2779
    %v2781 = vmul.f32 %v2744, 1.442695
    %v2782 = vpow.pop %v2781
    %v2783 = vmul.f32 %v2745, 1.442695
    %v2784 = vpow.pop %v2783
    %v2785 = vmul.f32 %v2746, 1.442695
    %v2786 = vpow.pop %v2785
    %v2787 = vmul.f32 %v2747, 1.442695
    %v2788 = vpow.pop %v2787
    %v2789 = vmul.f32 %v2748, 1.442695
    %v2790 = vpow.pop %v2789
    %v2791 = vmul.f32 %v2749, 1.442695
    %v2792 = vpow.pop %v2791
    %v2793 = vmul.f32 %v2750, 1.442695
    %v2794 = vpow.pop %v2793
    %v2795 = vmul.f32 %v2751, 1.442695
    %v2796 = vpow.pop %v2795
    %v2797 = vmul.f32 %v2752, 1.442695
    %v2798 = vpow.pop %v2797
    %v2799 = vmul.f32 %v2753, 1.442695
    %v2800 = vpow.pop %v2799
    %v2801 = vmul.f32 %v2754, 1.442695
    %v2802 = vpow.pop %v2801
    %v2803 = vmul.f32 %v2755, 1.442695
    %v2804 = vpow.pop %v2803
    %v2805 = vmul.f32 %v2756, 1.442695
    %v2806 = vpow.pop %v2805
    %v2807 = vmul.f32 %v2757, 1.442695
    %v2808 = vpow.pop %v2807
    %v2809 = vmul.f32 %v2758, 1.442695
    %v2810 = vpow.pop %v2809
    %v2811 = vmul.f32 %v2759, 1.442695
    %v2812 = vpow.pop %v2811
    %v2813 = vmul.f32 %v2760, 1.442695
    %v2814 = vpow.pop %v2813
    %v2815 = vmul.f32 %v2761, 1.442695
    %v2816 = vpow.pop %v2815
    %v2817 = vmul.f32 %v2762, 1.442695
    %v2818 = vpow.pop %v2817
    %v2819 = vmul.f32 %v2763, 1.442695
    %v2820 = vpow.pop %v2819
    %v2821 = vmul.f32 %v2764, 1.442695
    %v2822 = vpow.pop %v2821
    %v2823 = vmul.f32 %v2765, 1.442695
    %v2824 = vpow.pop %v2823
    %v2825 = vmul.f32 %v2766, 1.442695
    %v2826 = vpow.pop %v2825
    %v2827 = vmul.f32 %v2767, 1.442695
    %v2828 = vpow.pop %v2827
    %v2829 = vmul.f32 %v2768, 1.442695
    %v2830 = vpow.pop %v2829
    %v2831 = vmul.f32 %v2769, 1.442695
    %v2832 = vpow.pop %v2831
    %v2833 = vmul.f32 %v2770, 1.442695
    %v2834 = vpow.pop %v2833
    %v2835 = vadd.f32 %v2772, 1.0
    %v2836 = vadd.f32 %v2774, 1.0
    %v2837 = vadd.f32 %v2776, 1.0
    %v2838 = vadd.f32 %v2778, 1.0
    %v2839 = vadd.f32 %v2780, 1.0
    %v2840 = vadd.f32 %v2782, 1.0
    %v2841 = vadd.f32 %v2784, 1.0
    %v2842 = vadd.f32 %v2786, 1.0
    %v2843 = vadd.f32 %v2788, 1.0
    %v2844 = vadd.f32 %v2790, 1.0
    %v2845 = vadd.f32 %v2792, 1.0
    %v2846 = vadd.f32 %v2794, 1.0
    %v2847 = vadd.f32 %v2796, 1.0
    %v2848 = vadd.f32 %v2798, 1.0
    %v2849 = vadd.f32 %v2800, 1.0
    %v2850 = vadd.f32 %v2802, 1.0
    %v2851 = vadd.f32 %v2804, 1.0
    %v2852 = vadd.f32 %v2806, 1.0
    %v2853 = vadd.f32 %v2808, 1.0
    %v2854 = vadd.f32 %v2810, 1.0
    %v2855 = vadd.f32 %v2812, 1.0
    %v2856 = vadd.f32 %v2814, 1.0
    %v2857 = vadd.f32 %v2816, 1.0
    %v2858 = vadd.f32 %v2818, 1.0
    %v2859 = vadd.f32 %v2820, 1.0
    %v2860 = vadd.f32 %v2822, 1.0
    %v2861 = vadd.f32 %v2824, 1.0
    %v2862 = vadd.f32 %v2826, 1.0
    %v2863 = vadd.f32 %v2828, 1.0
    %v2864 = vadd.f32 %v2830, 1.0
    %v2865 = vadd.f32 %v2832, 1.0
    %v2866 = vadd.f32 %v2834, 1.0
    %v2867 = vrcp.pop %v2835
    %v2868 = vmul.f32 %v2835, %v2867
    %v2869 = vsub.f32 1.0, %v2868
    %v2870 = vmul.f32 %v2867, %v2869
    %v2871 = vadd.f32 %v2867, %v2870
    %vm2872 = vweird.f32 %v2835
    %vm2873 = vweird.f32 %v2867
    %vm2874 = vmor %vm2872, %vm2873
    %v2875 = vsel %vm2874, %v2867, %v2871
    %v2876 = vand.u32 2147483647, %v2835
    %vm2877 = vcmp.eq.f32.partialorder %v2876, 8.507059e+37
    %v2878 = vand.u32 %v2835, 2147483648
    %v2879 = vor.u32 1.1754944e-38, %v2878
    %v2880 = vsel %vm2877, %v2879, %v2875
    %v2881 = vmul.f32 1.0, %v2880
    %v2882 = vrcp.pop %v2836
    %v2883 = vmul.f32 %v2836, %v2882
    %v2884 = vsub.f32 1.0, %v2883
    %v2885 = vmul.f32 %v2882, %v2884
    %v2886 = vadd.f32 %v2882, %v2885
    %vm2887 = vweird.f32 %v2836
    %vm2888 = vweird.f32 %v2882
    %vm2889 = vmor %vm2887, %vm2888
    %v2890 = vsel %vm2889, %v2882, %v2886
    %v2891 = vand.u32 2147483647, %v2836
    %vm2892 = vcmp.eq.f32.partialorder %v2891, 8.507059e+37
    %v2893 = vand.u32 %v2836, 2147483648
    %v2894 = vor.u32 1.1754944e-38, %v2893
    %v2895 = vsel %vm2892, %v2894, %v2890
    %v2896 = vmul.f32 1.0, %v2895
    %v2897 = vrcp.pop %v2837
    %v2898 = vmul.f32 %v2837, %v2897
    %v2899 = vsub.f32 1.0, %v2898
    %v2900 = vmul.f32 %v2897, %v2899
    %v2901 = vadd.f32 %v2897, %v2900
    %vm2902 = vweird.f32 %v2837
    %vm2903 = vweird.f32 %v2897
    %vm2904 = vmor %vm2902, %vm2903
    %v2905 = vsel %vm2904, %v2897, %v2901
    %v2906 = vand.u32 2147483647, %v2837
    %vm2907 = vcmp.eq.f32.partialorder %v2906, 8.507059e+37
    %v2908 = vand.u32 %v2837, 2147483648
    %v2909 = vor.u32 1.1754944e-38, %v2908
    %v2910 = vsel %vm2907, %v2909, %v2905
    %v2911 = vmul.f32 1.0, %v2910
    %v2912 = vrcp.pop %v2838
    %v2913 = vmul.f32 %v2838, %v2912
    %v2914 = vsub.f32 1.0, %v2913
    %v2915 = vmul.f32 %v2912, %v2914
    %v2916 = vadd.f32 %v2912, %v2915
    %vm2917 = vweird.f32 %v2838
    %vm2918 = vweird.f32 %v2912
    %vm2919 = vmor %vm2917, %vm2918
    %v2920 = vsel %vm2919, %v2912, %v2916
    %v2921 = vand.u32 2147483647, %v2838
    %vm2922 = vcmp.eq.f32.partialorder %v2921, 8.507059e+37
    %v2923 = vand.u32 %v2838, 2147483648
    %v2924 = vor.u32 1.1754944e-38, %v2923
    %v2925 = vsel %vm2922, %v2924, %v2920
    %v2926 = vmul.f32 1.0, %v2925
    %v2927 = vrcp.pop %v2839
    %v2928 = vmul.f32 %v2839, %v2927
    %v2929 = vsub.f32 1.0, %v2928
    %v2930 = vmul.f32 %v2927, %v2929
    %v2931 = vadd.f32 %v2927, %v2930
    %vm2932 = vweird.f32 %v2839
    %vm2933 = vweird.f32 %v2927
    %vm2934 = vmor %vm2932, %vm2933
    %v2935 = vsel %vm2934, %v2927, %v2931
    %v2936 = vand.u32 2147483647, %v2839
    %vm2937 = vcmp.eq.f32.partialorder %v2936, 8.507059e+37
    %v2938 = vand.u32 %v2839, 2147483648
    %v2939 = vor.u32 1.1754944e-38, %v2938
    %v2940 = vsel %vm2937, %v2939, %v2935
    %v2941 = vmul.f32 1.0, %v2940
    %v2942 = vrcp.pop %v2840
    %v2943 = vmul.f32 %v2840, %v2942
    %v2944 = vsub.f32 1.0, %v2943
    %v2945 = vmul.f32 %v2942, %v2944
    %v2946 = vadd.f32 %v2942, %v2945
    %vm2947 = vweird.f32 %v2840
    %vm2948 = vweird.f32 %v2942
    %vm2949 = vmor %vm2947, %vm2948
    %v2950 = vsel %vm2949, %v2942, %v2946
    %v2951 = vand.u32 2147483647, %v2840
    %vm2952 = vcmp.eq.f32.partialorder %v2951, 8.507059e+37
    %v2953 = vand.u32 %v2840, 2147483648
    %v2954 = vor.u32 1.1754944e-38, %v2953
    %v2955 = vsel %vm2952, %v2954, %v2950
    %v2956 = vmul.f32 1.0, %v2955
    %v2957 = vrcp.pop %v2841
    %v2958 = vmul.f32 %v2841, %v2957
    %v2959 = vsub.f32 1.0, %v2958
    %v2960 = vmul.f32 %v2957, %v2959
    %v2961 = vadd.f32 %v2957, %v2960
    %vm2962 = vweird.f32 %v2841
    %vm2963 = vweird.f32 %v2957
    %vm2964 = vmor %vm2962, %vm2963
    %v2965 = vsel %vm2964, %v2957, %v2961
    %v2966 = vand.u32 2147483647, %v2841
    %vm2967 = vcmp.eq.f32.partialorder %v2966, 8.507059e+37
    %v2968 = vand.u32 %v2841, 2147483648
    %v2969 = vor.u32 1.1754944e-38, %v2968
    %v2970 = vsel %vm2967, %v2969, %v2965
    %v2971 = vmul.f32 1.0, %v2970
    %v2972 = vrcp.pop %v2842
    %v2973 = vmul.f32 %v2842, %v2972
    %v2974 = vsub.f32 1.0, %v2973
    %v2975 = vmul.f32 %v2972, %v2974
    %v2976 = vadd.f32 %v2972, %v2975
    %vm2977 = vweird.f32 %v2842
    %vm2978 = vweird.f32 %v2972
    %vm2979 = vmor %vm2977, %vm2978
    %v2980 = vsel %vm2979, %v2972, %v2976
    %v2981 = vand.u32 2147483647, %v2842
    %vm2982 = vcmp.eq.f32.partialorder %v2981, 8.507059e+37
    %v2983 = vand.u32 %v2842, 2147483648
    %v2984 = vor.u32 1.1754944e-38, %v2983
    %v2985 = vsel %vm2982, %v2984, %v2980
    %v2986 = vmul.f32 1.0, %v2985
    %v2987 = vrcp.pop %v2843
    %v2988 = vmul.f32 %v2843, %v2987
    %v2989 = vsub.f32 1.0, %v2988
    %v2990 = vmul.f32 %v2987, %v2989
    %v2991 = vadd.f32 %v2987, %v2990
    %vm2992 = vweird.f32 %v2843
    %vm2993 = vweird.f32 %v2987
    %vm2994 = vmor %vm2992, %vm2993
    %v2995 = vsel %vm2994, %v2987, %v2991
    %v2996 = vand.u32 2147483647, %v2843
    %vm2997 = vcmp.eq.f32.partialorder %v2996, 8.507059e+37
    %v2998 = vand.u32 %v2843, 2147483648
    %v2999 = vor.u32 1.1754944e-38, %v2998
    %v3000 = vsel %vm2997, %v2999, %v2995
    %v3001 = vmul.f32 1.0, %v3000
    %v3002 = vrcp.pop %v2844
    %v3003 = vmul.f32 %v2844, %v3002
    %v3004 = vsub.f32 1.0, %v3003
    %v3005 = vmul.f32 %v3002, %v3004
    %v3006 = vadd.f32 %v3002, %v3005
    %vm3007 = vweird.f32 %v2844
    %vm3008 = vweird.f32 %v3002
    %vm3009 = vmor %vm3007, %vm3008
    %v3010 = vsel %vm3009, %v3002, %v3006
    %v3011 = vand.u32 2147483647, %v2844
    %vm3012 = vcmp.eq.f32.partialorder %v3011, 8.507059e+37
    %v3013 = vand.u32 %v2844, 2147483648
    %v3014 = vor.u32 1.1754944e-38, %v3013
    %v3015 = vsel %vm3012, %v3014, %v3010
    %v3016 = vmul.f32 1.0, %v3015
    %v3017 = vrcp.pop %v2845
    %v3018 = vmul.f32 %v2845, %v3017
    %v3019 = vsub.f32 1.0, %v3018
    %v3020 = vmul.f32 %v3017, %v3019
    %v3021 = vadd.f32 %v3017, %v3020
    %vm3022 = vweird.f32 %v2845
    %vm3023 = vweird.f32 %v3017
    %vm3024 = vmor %vm3022, %vm3023
    %v3025 = vsel %vm3024, %v3017, %v3021
    %v3026 = vand.u32 2147483647, %v2845
    %vm3027 = vcmp.eq.f32.partialorder %v3026, 8.507059e+37
    %v3028 = vand.u32 %v2845, 2147483648
    %v3029 = vor.u32 1.1754944e-38, %v3028
    %v3030 = vsel %vm3027, %v3029, %v3025
    %v3031 = vmul.f32 1.0, %v3030
    %v3032 = vrcp.pop %v2846
    %v3033 = vmul.f32 %v2846, %v3032
    %v3034 = vsub.f32 1.0, %v3033
    %v3035 = vmul.f32 %v3032, %v3034
    %v3036 = vadd.f32 %v3032, %v3035
    %vm3037 = vweird.f32 %v2846
    %vm3038 = vweird.f32 %v3032
    %vm3039 = vmor %vm3037, %vm3038
    %v3040 = vsel %vm3039, %v3032, %v3036
    %v3041 = vand.u32 2147483647, %v2846
    %vm3042 = vcmp.eq.f32.partialorder %v3041, 8.507059e+37
    %v3043 = vand.u32 %v2846, 2147483648
    %v3044 = vor.u32 1.1754944e-38, %v3043
    %v3045 = vsel %vm3042, %v3044, %v3040
    %v3046 = vmul.f32 1.0, %v3045
    %v3047 = vrcp.pop %v2847
    %v3048 = vmul.f32 %v2847, %v3047
    %v3049 = vsub.f32 1.0, %v3048
    %v3050 = vmul.f32 %v3047, %v3049
    %v3051 = vadd.f32 %v3047, %v3050
    %vm3052 = vweird.f32 %v2847
    %vm3053 = vweird.f32 %v3047
    %vm3054 = vmor %vm3052, %vm3053
    %v3055 = vsel %vm3054, %v3047, %v3051
    %v3056 = vand.u32 2147483647, %v2847
    %vm3057 = vcmp.eq.f32.partialorder %v3056, 8.507059e+37
    %v3058 = vand.u32 %v2847, 2147483648
    %v3059 = vor.u32 1.1754944e-38, %v3058
    %v3060 = vsel %vm3057, %v3059, %v3055
    %v3061 = vmul.f32 1.0, %v3060
    %v3062 = vrcp.pop %v2848
    %v3063 = vmul.f32 %v2848, %v3062
    %v3064 = vsub.f32 1.0, %v3063
    %v3065 = vmul.f32 %v3062, %v3064
    %v3066 = vadd.f32 %v3062, %v3065
    %vm3067 = vweird.f32 %v2848
    %vm3068 = vweird.f32 %v3062
    %vm3069 = vmor %vm3067, %vm3068
    %v3070 = vsel %vm3069, %v3062, %v3066
    %v3071 = vand.u32 2147483647, %v2848
    %vm3072 = vcmp.eq.f32.partialorder %v3071, 8.507059e+37
    %v3073 = vand.u32 %v2848, 2147483648
    %v3074 = vor.u32 1.1754944e-38, %v3073
    %v3075 = vsel %vm3072, %v3074, %v3070
    %v3076 = vmul.f32 1.0, %v3075
    %v3077 = vrcp.pop %v2849
    %v3078 = vmul.f32 %v2849, %v3077
    %v3079 = vsub.f32 1.0, %v3078
    %v3080 = vmul.f32 %v3077, %v3079
    %v3081 = vadd.f32 %v3077, %v3080
    %vm3082 = vweird.f32 %v2849
    %vm3083 = vweird.f32 %v3077
    %vm3084 = vmor %vm3082, %vm3083
    %v3085 = vsel %vm3084, %v3077, %v3081
    %v3086 = vand.u32 2147483647, %v2849
    %vm3087 = vcmp.eq.f32.partialorder %v3086, 8.507059e+37
    %v3088 = vand.u32 %v2849, 2147483648
    %v3089 = vor.u32 1.1754944e-38, %v3088
    %v3090 = vsel %vm3087, %v3089, %v3085
    %v3091 = vmul.f32 1.0, %v3090
    %v3092 = vrcp.pop %v2850
    %v3093 = vmul.f32 %v2850, %v3092
    %v3094 = vsub.f32 1.0, %v3093
    %v3095 = vmul.f32 %v3092, %v3094
    %v3096 = vadd.f32 %v3092, %v3095
    %vm3097 = vweird.f32 %v2850
    %vm3098 = vweird.f32 %v3092
    %vm3099 = vmor %vm3097, %vm3098
    %v3100 = vsel %vm3099, %v3092, %v3096
    %v3101 = vand.u32 2147483647, %v2850
    %vm3102 = vcmp.eq.f32.partialorder %v3101, 8.507059e+37
    %v3103 = vand.u32 %v2850, 2147483648
    %v3104 = vor.u32 1.1754944e-38, %v3103
    %v3105 = vsel %vm3102, %v3104, %v3100
    %v3106 = vmul.f32 1.0, %v3105
    %v3107 = vrcp.pop %v2851
    %v3108 = vmul.f32 %v2851, %v3107
    %v3109 = vsub.f32 1.0, %v3108
    %v3110 = vmul.f32 %v3107, %v3109
    %v3111 = vadd.f32 %v3107, %v3110
    %vm3112 = vweird.f32 %v2851
    %vm3113 = vweird.f32 %v3107
    %vm3114 = vmor %vm3112, %vm3113
    %v3115 = vsel %vm3114, %v3107, %v3111
    %v3116 = vand.u32 2147483647, %v2851
    %vm3117 = vcmp.eq.f32.partialorder %v3116, 8.507059e+37
    %v3118 = vand.u32 %v2851, 2147483648
    %v3119 = vor.u32 1.1754944e-38, %v3118
    %v3120 = vsel %vm3117, %v3119, %v3115
    %v3121 = vmul.f32 1.0, %v3120
    %v3122 = vrcp.pop %v2852
    %v3123 = vmul.f32 %v2852, %v3122
    %v3124 = vsub.f32 1.0, %v3123
    %v3125 = vmul.f32 %v3122, %v3124
    %v3126 = vadd.f32 %v3122, %v3125
    %vm3127 = vweird.f32 %v2852
    %vm3128 = vweird.f32 %v3122
    %vm3129 = vmor %vm3127, %vm3128
    %v3130 = vsel %vm3129, %v3122, %v3126
    %v3131 = vand.u32 2147483647, %v2852
    %vm3132 = vcmp.eq.f32.partialorder %v3131, 8.507059e+37
    %v3133 = vand.u32 %v2852, 2147483648
    %v3134 = vor.u32 1.1754944e-38, %v3133
    %v3135 = vsel %vm3132, %v3134, %v3130
    %v3136 = vmul.f32 1.0, %v3135
    %v3137 = vrcp.pop %v2853
    %v3138 = vmul.f32 %v2853, %v3137
    %v3139 = vsub.f32 1.0, %v3138
    %v3140 = vmul.f32 %v3137, %v3139
    %v3141 = vadd.f32 %v3137, %v3140
    %vm3142 = vweird.f32 %v2853
    %vm3143 = vweird.f32 %v3137
    %vm3144 = vmor %vm3142, %vm3143
    %v3145 = vsel %vm3144, %v3137, %v3141
    %v3146 = vand.u32 2147483647, %v2853
    %vm3147 = vcmp.eq.f32.partialorder %v3146, 8.507059e+37
    %v3148 = vand.u32 %v2853, 2147483648
    %v3149 = vor.u32 1.1754944e-38, %v3148
    %v3150 = vsel %vm3147, %v3149, %v3145
    %v3151 = vmul.f32 1.0, %v3150
    %v3152 = vrcp.pop %v2854
    %v3153 = vmul.f32 %v2854, %v3152
    %v3154 = vsub.f32 1.0, %v3153
    %v3155 = vmul.f32 %v3152, %v3154
    %v3156 = vadd.f32 %v3152, %v3155
    %vm3157 = vweird.f32 %v2854
    %vm3158 = vweird.f32 %v3152
    %vm3159 = vmor %vm3157, %vm3158
    %v3160 = vsel %vm3159, %v3152, %v3156
    %v3161 = vand.u32 2147483647, %v2854
    %vm3162 = vcmp.eq.f32.partialorder %v3161, 8.507059e+37
    %v3163 = vand.u32 %v2854, 2147483648
    %v3164 = vor.u32 1.1754944e-38, %v3163
    %v3165 = vsel %vm3162, %v3164, %v3160
    %v3166 = vmul.f32 1.0, %v3165
    %v3167 = vrcp.pop %v2855
    %v3168 = vmul.f32 %v2855, %v3167
    %v3169 = vsub.f32 1.0, %v3168
    %v3170 = vmul.f32 %v3167, %v3169
    %v3171 = vadd.f32 %v3167, %v3170
    %vm3172 = vweird.f32 %v2855
    %vm3173 = vweird.f32 %v3167
    %vm3174 = vmor %vm3172, %vm3173
    %v3175 = vsel %vm3174, %v3167, %v3171
    %v3176 = vand.u32 2147483647, %v2855
    %vm3177 = vcmp.eq.f32.partialorder %v3176, 8.507059e+37
    %v3178 = vand.u32 %v2855, 2147483648
    %v3179 = vor.u32 1.1754944e-38, %v3178
    %v3180 = vsel %vm3177, %v3179, %v3175
    %v3181 = vmul.f32 1.0, %v3180
    %v3182 = vrcp.pop %v2856
    %v3183 = vmul.f32 %v2856, %v3182
    %v3184 = vsub.f32 1.0, %v3183
    %v3185 = vmul.f32 %v3182, %v3184
    %v3186 = vadd.f32 %v3182, %v3185
    %vm3187 = vweird.f32 %v2856
    %vm3188 = vweird.f32 %v3182
    %vm3189 = vmor %vm3187, %vm3188
    %v3190 = vsel %vm3189, %v3182, %v3186
    %v3191 = vand.u32 2147483647, %v2856
    %vm3192 = vcmp.eq.f32.partialorder %v3191, 8.507059e+37
    %v3193 = vand.u32 %v2856, 2147483648
    %v3194 = vor.u32 1.1754944e-38, %v3193
    %v3195 = vsel %vm3192, %v3194, %v3190
    %v3196 = vmul.f32 1.0, %v3195
    %v3197 = vrcp.pop %v2857
    %v3198 = vmul.f32 %v2857, %v3197
    %v3199 = vsub.f32 1.0, %v3198
    %v3200 = vmul.f32 %v3197, %v3199
    %v3201 = vadd.f32 %v3197, %v3200
    %vm3202 = vweird.f32 %v2857
    %vm3203 = vweird.f32 %v3197
    %vm3204 = vmor %vm3202, %vm3203
    %v3205 = vsel %vm3204, %v3197, %v3201
    %v3206 = vand.u32 2147483647, %v2857
    %vm3207 = vcmp.eq.f32.partialorder %v3206, 8.507059e+37
    %v3208 = vand.u32 %v2857, 2147483648
    %v3209 = vor.u32 1.1754944e-38, %v3208
    %v3210 = vsel %vm3207, %v3209, %v3205
    %v3211 = vmul.f32 1.0, %v3210
    %v3212 = vrcp.pop %v2858
    %v3213 = vmul.f32 %v2858, %v3212
    %v3214 = vsub.f32 1.0, %v3213
    %v3215 = vmul.f32 %v3212, %v3214
    %v3216 = vadd.f32 %v3212, %v3215
    %vm3217 = vweird.f32 %v2858
    %vm3218 = vweird.f32 %v3212
    %vm3219 = vmor %vm3217, %vm3218
    %v3220 = vsel %vm3219, %v3212, %v3216
    %v3221 = vand.u32 2147483647, %v2858
    %vm3222 = vcmp.eq.f32.partialorder %v3221, 8.507059e+37
    %v3223 = vand.u32 %v2858, 2147483648
    %v3224 = vor.u32 1.1754944e-38, %v3223
    %v3225 = vsel %vm3222, %v3224, %v3220
    %v3226 = vmul.f32 1.0, %v3225
    %v3227 = vrcp.pop %v2859
    %v3228 = vmul.f32 %v2859, %v3227
    %v3229 = vsub.f32 1.0, %v3228
    %v3230 = vmul.f32 %v3227, %v3229
    %v3231 = vadd.f32 %v3227, %v3230
    %vm3232 = vweird.f32 %v2859
    %vm3233 = vweird.f32 %v3227
    %vm3234 = vmor %vm3232, %vm3233
    %v3235 = vsel %vm3234, %v3227, %v3231
    %v3236 = vand.u32 2147483647, %v2859
    %vm3237 = vcmp.eq.f32.partialorder %v3236, 8.507059e+37
    %v3238 = vand.u32 %v2859, 2147483648
    %v3239 = vor.u32 1.1754944e-38, %v3238
    %v3240 = vsel %vm3237, %v3239, %v3235
    %v3241 = vmul.f32 1.0, %v3240
    %v3242 = vrcp.pop %v2860
    %v3243 = vmul.f32 %v2860, %v3242
    %v3244 = vsub.f32 1.0, %v3243
    %v3245 = vmul.f32 %v3242, %v3244
    %v3246 = vadd.f32 %v3242, %v3245
    %vm3247 = vweird.f32 %v2860
    %vm3248 = vweird.f32 %v3242
    %vm3249 = vmor %vm3247, %vm3248
    %v3250 = vsel %vm3249, %v3242, %v3246
    %v3251 = vand.u32 2147483647, %v2860
    %vm3252 = vcmp.eq.f32.partialorder %v3251, 8.507059e+37
    %v3253 = vand.u32 %v2860, 2147483648
    %v3254 = vor.u32 1.1754944e-38, %v3253
    %v3255 = vsel %vm3252, %v3254, %v3250
    %v3256 = vmul.f32 1.0, %v3255
    %v3257 = vrcp.pop %v2861
    %v3258 = vmul.f32 %v2861, %v3257
    %v3259 = vsub.f32 1.0, %v3258
    %v3260 = vmul.f32 %v3257, %v3259
    %v3261 = vadd.f32 %v3257, %v3260
    %vm3262 = vweird.f32 %v2861
    %vm3263 = vweird.f32 %v3257
    %vm3264 = vmor %vm3262, %vm3263
    %v3265 = vsel %vm3264, %v3257, %v3261
    %v3266 = vand.u32 2147483647, %v2861
    %vm3267 = vcmp.eq.f32.partialorder %v3266, 8.507059e+37
    %v3268 = vand.u32 %v2861, 2147483648
    %v3269 = vor.u32 1.1754944e-38, %v3268
    %v3270 = vsel %vm3267, %v3269, %v3265
    %v3271 = vmul.f32 1.0, %v3270
    %v3272 = vrcp.pop %v2862
    %v3273 = vmul.f32 %v2862, %v3272
    %v3274 = vsub.f32 1.0, %v3273
    %v3275 = vmul.f32 %v3272, %v3274
    %v3276 = vadd.f32 %v3272, %v3275
    %vm3277 = vweird.f32 %v2862
    %vm3278 = vweird.f32 %v3272
    %vm3279 = vmor %vm3277, %vm3278
    %v3280 = vsel %vm3279, %v3272, %v3276
    %v3281 = vand.u32 2147483647, %v2862
    %vm3282 = vcmp.eq.f32.partialorder %v3281, 8.507059e+37
    %v3283 = vand.u32 %v2862, 2147483648
    %v3284 = vor.u32 1.1754944e-38, %v3283
    %v3285 = vsel %vm3282, %v3284, %v3280
    %v3286 = vmul.f32 1.0, %v3285
    %v3287 = vrcp.pop %v2863
    %v3288 = vmul.f32 %v2863, %v3287
    %v3289 = vsub.f32 1.0, %v3288
    %v3290 = vmul.f32 %v3287, %v3289
    %v3291 = vadd.f32 %v3287, %v3290
    %vm3292 = vweird.f32 %v2863
    %vm3293 = vweird.f32 %v3287
    %vm3294 = vmor %vm3292, %vm3293
    %v3295 = vsel %vm3294, %v3287, %v3291
    %v3296 = vand.u32 2147483647, %v2863
    %vm3297 = vcmp.eq.f32.partialorder %v3296, 8.507059e+37
    %v3298 = vand.u32 %v2863, 2147483648
    %v3299 = vor.u32 1.1754944e-38, %v3298
    %v3300 = vsel %vm3297, %v3299, %v3295
    %v3301 = vmul.f32 1.0, %v3300
    %v3302 = vrcp.pop %v2864
    %v3303 = vmul.f32 %v2864, %v3302
    %v3304 = vsub.f32 1.0, %v3303
    %v3305 = vmul.f32 %v3302, %v3304
    %v3306 = vadd.f32 %v3302, %v3305
    %vm3307 = vweird.f32 %v2864
    %vm3308 = vweird.f32 %v3302
    %vm3309 = vmor %vm3307, %vm3308
    %v3310 = vsel %vm3309, %v3302, %v3306
    %v3311 = vand.u32 2147483647, %v2864
    %vm3312 = vcmp.eq.f32.partialorder %v3311, 8.507059e+37
    %v3313 = vand.u32 %v2864, 2147483648
    %v3314 = vor.u32 1.1754944e-38, %v3313
    %v3315 = vsel %vm3312, %v3314, %v3310
    %v3316 = vmul.f32 1.0, %v3315
    %v3317 = vrcp.pop %v2865
    %v3318 = vmul.f32 %v2865, %v3317
    %v3319 = vsub.f32 1.0, %v3318
    %v3320 = vmul.f32 %v3317, %v3319
    %v3321 = vadd.f32 %v3317, %v3320
    %vm3322 = vweird.f32 %v2865
    %vm3323 = vweird.f32 %v3317
    %vm3324 = vmor %vm3322, %vm3323
    %v3325 = vsel %vm3324, %v3317, %v3321
    %v3326 = vand.u32 2147483647, %v2865
    %vm3327 = vcmp.eq.f32.partialorder %v3326, 8.507059e+37
    %v3328 = vand.u32 %v2865, 2147483648
    %v3329 = vor.u32 1.1754944e-38, %v3328
    %v3330 = vsel %vm3327, %v3329, %v3325
    %v3331 = vmul.f32 1.0, %v3330
    %v3332 = vrcp.pop %v2866
    %v3333 = vmul.f32 %v2866, %v3332
    %v3334 = vsub.f32 1.0, %v3333
    %v3335 = vmul.f32 %v3332, %v3334
    %v3336 = vadd.f32 %v3332, %v3335
    %vm3337 = vweird.f32 %v2866
    %vm3338 = vweird.f32 %v3332
    %vm3339 = vmor %vm3337, %vm3338
    %v3340 = vsel %vm3339, %v3332, %v3336
    %v3341 = vand.u32 2147483647, %v2866
    %vm3342 = vcmp.eq.f32.partialorder %v3341, 8.507059e+37
    %v3343 = vand.u32 %v2866, 2147483648
    %v3344 = vor.u32 1.1754944e-38, %v3343
    %v3345 = vsel %vm3342, %v3344, %v3340
    %v3346 = vmul.f32 1.0, %v3345
    %v3347 = vmul.f32 %v2660, %v2881
    %v3348 = vmul.f32 %v2662, %v2896
    %v3349 = vmul.f32 %v2665, %v2911
    %v3350 = vmul.f32 %v2667, %v2926
    %v3351 = vmul.f32 %v2670, %v2941
    %v3352 = vmul.f32 %v2672, %v2956
    %v3353 = vmul.f32 %v2675, %v2971
    %v3354 = vmul.f32 %v2677, %v2986
    %v3355 = vmul.f32 %v2680, %v3001
    %v3356 = vmul.f32 %v2682, %v3016
    %v3357 = vmul.f32 %v2685, %v3031
    %v3358 = vmul.f32 %v2687, %v3046
    %v3359 = vmul.f32 %v2690, %v3061
    %v3360 = vmul.f32 %v2692, %v3076
    %v3361 = vmul.f32 %v2695, %v3091
    %v3362 = vmul.f32 %v2697, %v3106
    %v3363 = vmul.f32 %v2700, %v3121
    %v3364 = vmul.f32 %v2702, %v3136
    %v3365 = vmul.f32 %v2705, %v3151
    %v3366 = vmul.f32 %v2707, %v3166
    %v3367 = vmul.f32 %v2710, %v3181
    %v3368 = vmul.f32 %v2712, %v3196
    %v3369 = vmul.f32 %v2715, %v3211
    %v3370 = vmul.f32 %v2717, %v3226
    %v3371 = vmul.f32 %v2720, %v3241
    %v3372 = vmul.f32 %v2722, %v3256
    %v3373 = vmul.f32 %v2725, %v3271
    %v3374 = vmul.f32 %v2727, %v3286
    %v3375 = vmul.f32 %v2730, %v3301
    %v3376 = vmul.f32 %v2732, %v3316
    %v3377 = vmul.f32 %v2735, %v3331
    %v3378 = vmul.f32 %v2737, %v3346
    %v3379 = vpack.c.bf16 %v3348, %v3347
    %v3380 = vpack.c.bf16 %v3350, %v3349
    %v3381 = vpack.c.bf16 %v3352, %v3351
    %v3382 = vpack.c.bf16 %v3354, %v3353
    %v3383 = vpack.c.bf16 %v3356, %v3355
    %v3384 = vpack.c.bf16 %v3358, %v3357
    %v3385 = vpack.c.bf16 %v3360, %v3359
    %v3386 = vpack.c.bf16 %v3362, %v3361
    %v3387 = vpack.c.bf16 %v3364, %v3363
    %v3388 = vpack.c.bf16 %v3366, %v3365
    %v3389 = vpack.c.bf16 %v3368, %v3367
    %v3390 = vpack.c.bf16 %v3370, %v3369
    %v3391 = vpack.c.bf16 %v3372, %v3371
    %v3392 = vpack.c.bf16 %v3374, %v3373
    %v3393 = vpack.c.bf16 %v3376, %v3375
    %v3394 = vpack.c.bf16 %v3378, %v3377
    %s3395 = scalar_lea.vmem [#allocation7], 256
    %v3396 = vld [vmem:[%s3395] sm:$0xf]
    %v3397 = vld [vmem:[%s3395 + $0x4] sm:$0xf]
    %v3398 = vld [vmem:[%s3395 + $0x8] sm:$0xf]
    %v3399 = vld [vmem:[%s3395 + $0xc] sm:$0xf]
    %v3400 = vld [vmem:[%s3395 + $0x10] sm:$0xf]
    %v3401 = vld [vmem:[%s3395 + $0x14] sm:$0xf]
    %v3402 = vld [vmem:[%s3395 + $0x18] sm:$0xf]
    %v3403 = vld [vmem:[%s3395 + $0x1c] sm:$0xf]
    %v3404 = vld [vmem:[%s3395 + $0x20] sm:$0xf]
    %v3405 = vld [vmem:[%s3395 + $0x24] sm:$0xf]
    %v3406 = vld [vmem:[%s3395 + $0x28] sm:$0xf]
    %v3407 = vld [vmem:[%s3395 + $0x2c] sm:$0xf]
    %v3408 = vld [vmem:[%s3395 + $0x30] sm:$0xf]
    %v3409 = vld [vmem:[%s3395 + $0x34] sm:$0xf]
    %v3410 = vld [vmem:[%s3395 + $0x38] sm:$0xf]
    %v3411 = vld [vmem:[%s3395 + $0x3c] sm:$0xf]
    %v3412 = vld [vmem:[#allocation8 + $0x4] sm:$0x1]
    %v3413 = vperm.slane %v3412, 0
    %v3430 = vunpack.c.l.b16 %v3396
    %v3431 = vunpack.c.l.b16 %v3397
    %v3432 = vunpack.c.l.b16 %v3398
    %v3433 = vunpack.c.l.b16 %v3399
    %v3434 = vunpack.c.l.b16 %v3400
    %v3435 = vunpack.c.l.b16 %v3401
    %v3436 = vunpack.c.l.b16 %v3402
    %v3437 = vunpack.c.l.b16 %v3403
    %v3438 = vunpack.c.l.b16 %v3404
    %v3439 = vunpack.c.l.b16 %v3405
    %v3440 = vunpack.c.l.b16 %v3406
    %v3441 = vunpack.c.l.b16 %v3407
    %v3442 = vunpack.c.l.b16 %v3408
    %v3443 = vunpack.c.l.b16 %v3409
    %v3444 = vunpack.c.l.b16 %v3410
    %v3445 = vunpack.c.l.b16 %v3411
    %v3446 = vpack.c.b16 %v3431, %v3430
    %v3447 = vpack.c.b16 %v3433, %v3432
    %v3448 = vpack.c.b16 %v3435, %v3434
    %v3449 = vpack.c.b16 %v3437, %v3436
    %v3450 = vpack.c.b16 %v3439, %v3438
    %v3451 = vpack.c.b16 %v3441, %v3440
    %v3452 = vpack.c.b16 %v3443, %v3442
    %v3453 = vpack.c.b16 %v3445, %v3444
    %3462 = vmatpush.bf16.msra.mxu0 %v3453
    %3463 = vmatpush.bf16.msra.mxu0 %v3452
    %3464 = vmatpush.bf16.msra.mxu0 %v3451
    %3465 = vmatpush.bf16.msra.mxu0 %v3450
    %3466 = vmatpush.bf16.msra.mxu0 %v3449
    %3467 = vmatpush.bf16.msra.mxu0 %v3448
    %3468 = vmatpush.bf16.msra.mxu0 %v3447
    %3469 = vmatpush.bf16.msra.mxu0 %v3446
    %3470 = vmatmul.bf16.gmra.mxu0 %v3379
    %v3471 = vpop.f32.mrf.mxu0
    %v3472 = vadd.f32 %v3413, %v3471
    %v3473 = vpop.f32.mrf.mxu0
    %v3474 = vadd.f32 %v3413, %v3473
    %3475 = vmatmul.bf16.gmra.mxu0 %v3380
    %v3476 = vpop.f32.mrf.mxu0
    %v3477 = vadd.f32 %v3413, %v3476
    %v3478 = vpop.f32.mrf.mxu0
    %v3479 = vadd.f32 %v3413, %v3478
    %3480 = vmatmul.bf16.gmra.mxu0 %v3381
    %v3481 = vpop.f32.mrf.mxu0
    %v3482 = vadd.f32 %v3413, %v3481
    %v3483 = vpop.f32.mrf.mxu0
    %v3484 = vadd.f32 %v3413, %v3483
    %3485 = vmatmul.bf16.gmra.mxu0 %v3382
    %v3486 = vpop.f32.mrf.mxu0
    %v3487 = vadd.f32 %v3413, %v3486
    %v3488 = vpop.f32.mrf.mxu0
    %v3489 = vadd.f32 %v3413, %v3488
    %3490 = vmatmul.bf16.gmra.mxu0 %v3383
    %v3491 = vpop.f32.mrf.mxu0
    %v3492 = vadd.f32 %v3413, %v3491
    %v3493 = vpop.f32.mrf.mxu0
    %v3494 = vadd.f32 %v3413, %v3493
    %3495 = vmatmul.bf16.gmra.mxu0 %v3384
    %v3496 = vpop.f32.mrf.mxu0
    %v3497 = vadd.f32 %v3413, %v3496
    %v3498 = vpop.f32.mrf.mxu0
    %v3499 = vadd.f32 %v3413, %v3498
    %3500 = vmatmul.bf16.gmra.mxu0 %v3385
    %v3501 = vpop.f32.mrf.mxu0
    %v3502 = vadd.f32 %v3413, %v3501
    %v3503 = vpop.f32.mrf.mxu0
    %v3504 = vadd.f32 %v3413, %v3503
    %3505 = vmatmul.bf16.gmra.mxu0 %v3386
    %v3506 = vpop.f32.mrf.mxu0
    %v3507 = vadd.f32 %v3413, %v3506
    %v3508 = vpop.f32.mrf.mxu0
    %v3509 = vadd.f32 %v3413, %v3508
    %3510 = vmatmul.bf16.gmra.mxu0 %v3387
    %v3511 = vpop.f32.mrf.mxu0
    %v3512 = vadd.f32 %v3413, %v3511
    %v3513 = vpop.f32.mrf.mxu0
    %v3514 = vadd.f32 %v3413, %v3513
    %3515 = vmatmul.bf16.gmra.mxu0 %v3388
    %v3516 = vpop.f32.mrf.mxu0
    %v3517 = vadd.f32 %v3413, %v3516
    %v3518 = vpop.f32.mrf.mxu0
    %v3519 = vadd.f32 %v3413, %v3518
    %3520 = vmatmul.bf16.gmra.mxu0 %v3389
    %v3521 = vpop.f32.mrf.mxu0
    %v3522 = vadd.f32 %v3413, %v3521
    %v3523 = vpop.f32.mrf.mxu0
    %v3524 = vadd.f32 %v3413, %v3523
    %3525 = vmatmul.bf16.gmra.mxu0 %v3390
    %v3526 = vpop.f32.mrf.mxu0
    %v3527 = vadd.f32 %v3413, %v3526
    %v3528 = vpop.f32.mrf.mxu0
    %v3529 = vadd.f32 %v3413, %v3528
    %3530 = vmatmul.bf16.gmra.mxu0 %v3391
    %v3531 = vpop.f32.mrf.mxu0
    %v3532 = vadd.f32 %v3413, %v3531
    %v3533 = vpop.f32.mrf.mxu0
    %v3534 = vadd.f32 %v3413, %v3533
    %3535 = vmatmul.bf16.gmra.mxu0 %v3392
    %v3536 = vpop.f32.mrf.mxu0
    %v3537 = vadd.f32 %v3413, %v3536
    %v3538 = vpop.f32.mrf.mxu0
    %v3539 = vadd.f32 %v3413, %v3538
    %3540 = vmatmul.bf16.gmra.mxu0 %v3393
    %v3541 = vpop.f32.mrf.mxu0
    %v3542 = vadd.f32 %v3413, %v3541
    %v3543 = vpop.f32.mrf.mxu0
    %v3544 = vadd.f32 %v3413, %v3543
    %3545 = vmatmul.bf16.gmra.mxu0 %v3394
    %v3546 = vpop.f32.mrf.mxu0
    %v3547 = vadd.f32 %v3413, %v3546
    %v3548 = vpop.f32.mrf.mxu0
    %v3549 = vadd.f32 %v3413, %v3548
    %3550 = vdwg.mxu0
    %v3551 = vpack.c.bf16 %v3472, %v3472
    %v3552 = vpack.c.bf16 %v3474, %v3474
    %v3553 = vpack.c.bf16 %v3477, %v3477
    %v3554 = vpack.c.bf16 %v3479, %v3479
    %v3555 = vpack.c.bf16 %v3482, %v3482
    %v3556 = vpack.c.bf16 %v3484, %v3484
    %v3557 = vpack.c.bf16 %v3487, %v3487
    %v3558 = vpack.c.bf16 %v3489, %v3489
    %v3559 = vpack.c.bf16 %v3492, %v3492
    %v3560 = vpack.c.bf16 %v3494, %v3494
    %v3561 = vpack.c.bf16 %v3497, %v3497
    %v3562 = vpack.c.bf16 %v3499, %v3499
    %v3563 = vpack.c.bf16 %v3502, %v3502
    %v3564 = vpack.c.bf16 %v3504, %v3504
    %v3565 = vpack.c.bf16 %v3507, %v3507
    %v3566 = vpack.c.bf16 %v3509, %v3509
    %v3567 = vpack.c.bf16 %v3512, %v3512
    %v3568 = vpack.c.bf16 %v3514, %v3514
    %v3569 = vpack.c.bf16 %v3517, %v3517
    %v3570 = vpack.c.bf16 %v3519, %v3519
    %v3571 = vpack.c.bf16 %v3522, %v3522
    %v3572 = vpack.c.bf16 %v3524, %v3524
    %v3573 = vpack.c.bf16 %v3527, %v3527
    %v3574 = vpack.c.bf16 %v3529, %v3529
    %v3575 = vpack.c.bf16 %v3532, %v3532
    %v3576 = vpack.c.bf16 %v3534, %v3534
    %v3577 = vpack.c.bf16 %v3537, %v3537
    %v3578 = vpack.c.bf16 %v3539, %v3539
    %v3579 = vpack.c.bf16 %v3542, %v3542
    %v3580 = vpack.c.bf16 %v3544, %v3544
    %v3581 = vpack.c.bf16 %v3547, %v3547
    %v3582 = vpack.c.bf16 %v3549, %v3549
    %v3583 = vld [vmem:[#allocation5] sm:$0xff]
    %v3584 = vld [vmem:[#allocation5 + $0x8] sm:$0xff]
    %v3585 = vld [vmem:[#allocation5 + $0x10] sm:$0xff]
    %v3586 = vld [vmem:[#allocation5 + $0x18] sm:$0xff]
    %v3587 = vld [vmem:[#allocation5 + $0x20] sm:$0xff]
    %v3588 = vld [vmem:[#allocation5 + $0x28] sm:$0xff]
    %v3589 = vld [vmem:[#allocation5 + $0x30] sm:$0xff]
    %v3590 = vld [vmem:[#allocation5 + $0x38] sm:$0xff]
    %v3591 = vld [vmem:[#allocation5 + $0x40] sm:$0xff]
    %v3592 = vld [vmem:[#allocation5 + $0x48] sm:$0xff]
    %v3593 = vld [vmem:[#allocation5 + $0x50] sm:$0xff]
    %v3594 = vld [vmem:[#allocation5 + $0x58] sm:$0xff]
    %v3595 = vld [vmem:[#allocation5 + $0x60] sm:$0xff]
    %v3596 = vld [vmem:[#allocation5 + $0x68] sm:$0xff]
    %v3597 = vld [vmem:[#allocation5 + $0x70] sm:$0xff]
    %v3598 = vld [vmem:[#allocation5 + $0x78] sm:$0xff]
    %v3599 = vld [vmem:[#allocation5 + $0x80] sm:$0xff]
    %v3600 = vld [vmem:[#allocation5 + $0x88] sm:$0xff]
    %v3601 = vld [vmem:[#allocation5 + $0x90] sm:$0xff]
    %v3602 = vld [vmem:[#allocation5 + $0x98] sm:$0xff]
    %v3603 = vld [vmem:[#allocation5 + $0xa0] sm:$0xff]
    %v3604 = vld [vmem:[#allocation5 + $0xa8] sm:$0xff]
    %v3605 = vld [vmem:[#allocation5 + $0xb0] sm:$0xff]
    %v3606 = vld [vmem:[#allocation5 + $0xb8] sm:$0xff]
    %v3607 = vld [vmem:[#allocation5 + $0xc0] sm:$0xff]
    %v3608 = vld [vmem:[#allocation5 + $0xc8] sm:$0xff]
    %v3609 = vld [vmem:[#allocation5 + $0xd0] sm:$0xff]
    %v3610 = vld [vmem:[#allocation5 + $0xd8] sm:$0xff]
    %v3611 = vld [vmem:[#allocation5 + $0xe0] sm:$0xff]
    %v3612 = vld [vmem:[#allocation5 + $0xe8] sm:$0xff]
    %v3613 = vld [vmem:[#allocation5 + $0xf0] sm:$0xff]
    %v3614 = vld [vmem:[#allocation5 + $0xf8] sm:$0xff]
    %v3647 = vunpack.c.l.b16 %v3583
    %v3648 = vunpack.c.h.b16 %v3583
    %v3649 = vunpack.c.l.b16 %v3584
    %v3650 = vunpack.c.h.b16 %v3584
    %v3651 = vunpack.c.l.b16 %v3585
    %v3652 = vunpack.c.h.b16 %v3585
    %v3653 = vunpack.c.l.b16 %v3586
    %v3654 = vunpack.c.h.b16 %v3586
    %v3655 = vunpack.c.l.b16 %v3587
    %v3656 = vunpack.c.h.b16 %v3587
    %v3657 = vunpack.c.l.b16 %v3588
    %v3658 = vunpack.c.h.b16 %v3588
    %v3659 = vunpack.c.l.b16 %v3589
    %v3660 = vunpack.c.h.b16 %v3589
    %v3661 = vunpack.c.l.b16 %v3590
    %v3662 = vunpack.c.h.b16 %v3590
    %v3663 = vunpack.c.l.b16 %v3591
    %v3664 = vunpack.c.h.b16 %v3591
    %v3665 = vunpack.c.l.b16 %v3592
    %v3666 = vunpack.c.h.b16 %v3592
    %v3667 = vunpack.c.l.b16 %v3593
    %v3668 = vunpack.c.h.b16 %v3593
    %v3669 = vunpack.c.l.b16 %v3594
    %v3670 = vunpack.c.h.b16 %v3594
    %v3671 = vunpack.c.l.b16 %v3595
    %v3672 = vunpack.c.h.b16 %v3595
    %v3673 = vunpack.c.l.b16 %v3596
    %v3674 = vunpack.c.h.b16 %v3596
    %v3675 = vunpack.c.l.b16 %v3597
    %v3676 = vunpack.c.h.b16 %v3597
    %v3677 = vunpack.c.l.b16 %v3598
    %v3678 = vunpack.c.h.b16 %v3598
    %v3679 = vunpack.c.l.b16 %v3599
    %v3680 = vunpack.c.h.b16 %v3599
    %v3681 = vunpack.c.l.b16 %v3600
    %v3682 = vunpack.c.h.b16 %v3600
    %v3683 = vunpack.c.l.b16 %v3601
    %v3684 = vunpack.c.h.b16 %v3601
    %v3685 = vunpack.c.l.b16 %v3602
    %v3686 = vunpack.c.h.b16 %v3602
    %v3687 = vunpack.c.l.b16 %v3603
    %v3688 = vunpack.c.h.b16 %v3603
    %v3689 = vunpack.c.l.b16 %v3604
    %v3690 = vunpack.c.h.b16 %v3604
    %v3691 = vunpack.c.l.b16 %v3605
    %v3692 = vunpack.c.h.b16 %v3605
    %v3693 = vunpack.c.l.b16 %v3606
    %v3694 = vunpack.c.h.b16 %v3606
    %v3695 = vunpack.c.l.b16 %v3607
    %v3696 = vunpack.c.h.b16 %v3607
    %v3697 = vunpack.c.l.b16 %v3608
    %v3698 = vunpack.c.h.b16 %v3608
    %v3699 = vunpack.c.l.b16 %v3609
    %v3700 = vunpack.c.h.b16 %v3609
    %v3701 = vunpack.c.l.b16 %v3610
    %v3702 = vunpack.c.h.b16 %v3610
    %v3703 = vunpack.c.l.b16 %v3611
    %v3704 = vunpack.c.h.b16 %v3611
    %v3705 = vunpack.c.l.b16 %v3612
    %v3706 = vunpack.c.h.b16 %v3612
    %v3707 = vunpack.c.l.b16 %v3613
    %v3708 = vunpack.c.h.b16 %v3613
    %v3709 = vunpack.c.l.b16 %v3614
    %v3710 = vunpack.c.h.b16 %v3614
    %v3711 = vpack.c.b16 %v3649, %v3647
    %v3712 = vpack.c.b16 %v3650, %v3648
    %v3713 = vpack.c.b16 %v3653, %v3651
    %v3714 = vpack.c.b16 %v3654, %v3652
    %v3715 = vpack.c.b16 %v3657, %v3655
    %v3716 = vpack.c.b16 %v3658, %v3656
    %v3717 = vpack.c.b16 %v3661, %v3659
    %v3718 = vpack.c.b16 %v3662, %v3660
    %v3719 = vpack.c.b16 %v3665, %v3663
    %v3720 = vpack.c.b16 %v3666, %v3664
    %v3721 = vpack.c.b16 %v3669, %v3667
    %v3722 = vpack.c.b16 %v3670, %v3668
    %v3723 = vpack.c.b16 %v3673, %v3671
    %v3724 = vpack.c.b16 %v3674, %v3672
    %v3725 = vpack.c.b16 %v3677, %v3675
    %v3726 = vpack.c.b16 %v3678, %v3676
    %v3727 = vpack.c.b16 %v3681, %v3679
    %v3728 = vpack.c.b16 %v3682, %v3680
    %v3729 = vpack.c.b16 %v3685, %v3683
    %v3730 = vpack.c.b16 %v3686, %v3684
    %v3731 = vpack.c.b16 %v3689, %v3687
    %v3732 = vpack.c.b16 %v3690, %v3688
    %v3733 = vpack.c.b16 %v3693, %v3691
    %v3734 = vpack.c.b16 %v3694, %v3692
    %v3735 = vpack.c.b16 %v3697, %v3695
    %v3736 = vpack.c.b16 %v3698, %v3696
    %v3737 = vpack.c.b16 %v3701, %v3699
    %v3738 = vpack.c.b16 %v3702, %v3700
    %v3739 = vpack.c.b16 %v3705, %v3703
    %v3740 = vpack.c.b16 %v3706, %v3704
    %v3741 = vpack.c.b16 %v3709, %v3707
    %v3742 = vpack.c.b16 %v3710, %v3708
    %v3807 = vunpack.c.l.b16 %v3551
    %v3808 = vunpack.c.l.b16 %v3552
    %v3809 = vunpack.c.l.b16 %v3553
    %v3810 = vunpack.c.l.b16 %v3554
    %v3811 = vunpack.c.l.b16 %v3555
    %v3812 = vunpack.c.l.b16 %v3556
    %v3813 = vunpack.c.l.b16 %v3557
    %v3814 = vunpack.c.l.b16 %v3558
    %v3815 = vunpack.c.l.b16 %v3559
    %v3816 = vunpack.c.l.b16 %v3560
    %v3817 = vunpack.c.l.b16 %v3561
    %v3818 = vunpack.c.l.b16 %v3562
    %v3819 = vunpack.c.l.b16 %v3563
    %v3820 = vunpack.c.l.b16 %v3564
    %v3821 = vunpack.c.l.b16 %v3565
    %v3822 = vunpack.c.l.b16 %v3566
    %v3823 = vunpack.c.l.b16 %v3567
    %v3824 = vunpack.c.l.b16 %v3568
    %v3825 = vunpack.c.l.b16 %v3569
    %v3826 = vunpack.c.l.b16 %v3570
    %v3827 = vunpack.c.l.b16 %v3571
    %v3828 = vunpack.c.l.b16 %v3572
    %v3829 = vunpack.c.l.b16 %v3573
    %v3830 = vunpack.c.l.b16 %v3574
    %v3831 = vunpack.c.l.b16 %v3575
    %v3832 = vunpack.c.l.b16 %v3576
    %v3833 = vunpack.c.l.b16 %v3577
    %v3834 = vunpack.c.l.b16 %v3578
    %v3835 = vunpack.c.l.b16 %v3579
    %v3836 = vunpack.c.l.b16 %v3580
    %v3837 = vunpack.c.l.b16 %v3581
    %v3838 = vunpack.c.l.b16 %v3582
    %v3839 = vpack.c.b16 %v3808, %v3807
    %v3840 = vpack.c.b16 %v3810, %v3809
    %v3841 = vpack.c.b16 %v3812, %v3811
    %v3842 = vpack.c.b16 %v3814, %v3813
    %v3843 = vpack.c.b16 %v3816, %v3815
    %v3844 = vpack.c.b16 %v3818, %v3817
    %v3845 = vpack.c.b16 %v3820, %v3819
    %v3846 = vpack.c.b16 %v3822, %v3821
    %v3847 = vpack.c.b16 %v3824, %v3823
    %v3848 = vpack.c.b16 %v3826, %v3825
    %v3849 = vpack.c.b16 %v3828, %v3827
    %v3850 = vpack.c.b16 %v3830, %v3829
    %v3851 = vpack.c.b16 %v3832, %v3831
    %v3852 = vpack.c.b16 %v3834, %v3833
    %v3853 = vpack.c.b16 %v3836, %v3835
    %v3854 = vpack.c.b16 %v3838, %v3837
    %3871 = vmatpush.bf16.msra.mxu0 %v3846
    %3872 = vmatpush.bf16.msra.mxu0 %v3845
    %3873 = vmatpush.bf16.msra.mxu0 %v3844
    %3874 = vmatpush.bf16.msra.mxu0 %v3843
    %3875 = vmatpush.bf16.msra.mxu0 %v3842
    %3876 = vmatpush.bf16.msra.mxu0 %v3841
    %3877 = vmatpush.bf16.msra.mxu0 %v3840
    %3878 = vmatpush.bf16.msra.mxu0 %v3839
    %3879 = vmatmul.bf16.gmra.mxu0 %v3711
    %v3880 = vpop.f32.mrf.mxu0
    %v3881 = vadd.f32 0.0, %v3880
    %v3882 = vpop.f32.mrf.mxu0
    %v3883 = vadd.f32 0.0, %v3882
    %3884 = vmatmul.bf16.gmra.mxu0 %v3713
    %v3885 = vpop.f32.mrf.mxu0
    %v3886 = vadd.f32 0.0, %v3885
    %v3887 = vpop.f32.mrf.mxu0
    %v3888 = vadd.f32 0.0, %v3887
    %3889 = vmatmul.bf16.gmra.mxu0 %v3715
    %v3890 = vpop.f32.mrf.mxu0
    %v3891 = vadd.f32 0.0, %v3890
    %v3892 = vpop.f32.mrf.mxu0
    %v3893 = vadd.f32 0.0, %v3892
    %3894 = vmatmul.bf16.gmra.mxu0 %v3717
    %v3895 = vpop.f32.mrf.mxu0
    %v3896 = vadd.f32 0.0, %v3895
    %v3897 = vpop.f32.mrf.mxu0
    %v3898 = vadd.f32 0.0, %v3897
    %3899 = vmatmul.bf16.gmra.mxu0 %v3719
    %v3900 = vpop.f32.mrf.mxu0
    %v3901 = vadd.f32 0.0, %v3900
    %v3902 = vpop.f32.mrf.mxu0
    %v3903 = vadd.f32 0.0, %v3902
    %3904 = vmatmul.bf16.gmra.mxu0 %v3721
    %v3905 = vpop.f32.mrf.mxu0
    %v3906 = vadd.f32 0.0, %v3905
    %v3907 = vpop.f32.mrf.mxu0
    %v3908 = vadd.f32 0.0, %v3907
    %3909 = vmatmul.bf16.gmra.mxu0 %v3723
    %v3910 = vpop.f32.mrf.mxu0
    %v3911 = vadd.f32 0.0, %v3910
    %v3912 = vpop.f32.mrf.mxu0
    %v3913 = vadd.f32 0.0, %v3912
    %3914 = vmatmul.bf16.gmra.mxu0 %v3725
    %v3915 = vpop.f32.mrf.mxu0
    %v3916 = vadd.f32 0.0, %v3915
    %v3917 = vpop.f32.mrf.mxu0
    %v3918 = vadd.f32 0.0, %v3917
    %3919 = vmatmul.bf16.gmra.mxu0 %v3727
    %v3920 = vpop.f32.mrf.mxu0
    %v3921 = vadd.f32 0.0, %v3920
    %v3922 = vpop.f32.mrf.mxu0
    %v3923 = vadd.f32 0.0, %v3922
    %3924 = vmatmul.bf16.gmra.mxu0 %v3729
    %v3925 = vpop.f32.mrf.mxu0
    %v3926 = vadd.f32 0.0, %v3925
    %v3927 = vpop.f32.mrf.mxu0
    %v3928 = vadd.f32 0.0, %v3927
    %3929 = vmatmul.bf16.gmra.mxu0 %v3731
    %v3930 = vpop.f32.mrf.mxu0
    %v3931 = vadd.f32 0.0, %v3930
    %v3932 = vpop.f32.mrf.mxu0
    %v3933 = vadd.f32 0.0, %v3932
    %3934 = vmatmul.bf16.gmra.mxu0 %v3733
    %v3935 = vpop.f32.mrf.mxu0
    %v3936 = vadd.f32 0.0, %v3935
    %v3937 = vpop.f32.mrf.mxu0
    %v3938 = vadd.f32 0.0, %v3937
    %3939 = vmatmul.bf16.gmra.mxu0 %v3735
    %v3940 = vpop.f32.mrf.mxu0
    %v3941 = vadd.f32 0.0, %v3940
    %v3942 = vpop.f32.mrf.mxu0
    %v3943 = vadd.f32 0.0, %v3942
    %3944 = vmatmul.bf16.gmra.mxu0 %v3737
    %v3945 = vpop.f32.mrf.mxu0
    %v3946 = vadd.f32 0.0, %v3945
    %v3947 = vpop.f32.mrf.mxu0
    %v3948 = vadd.f32 0.0, %v3947
    %3949 = vmatmul.bf16.gmra.mxu0 %v3739
    %v3950 = vpop.f32.mrf.mxu0
    %v3951 = vadd.f32 0.0, %v3950
    %v3952 = vpop.f32.mrf.mxu0
    %v3953 = vadd.f32 0.0, %v3952
    %3954 = vmatmul.bf16.gmra.mxu0 %v3741
    %v3955 = vpop.f32.mrf.mxu0
    %v3956 = vadd.f32 0.0, %v3955
    %v3957 = vpop.f32.mrf.mxu0
    %v3958 = vadd.f32 0.0, %v3957
    %3959 = vdwg.mxu0
    %3960 = vmatpush.bf16.msra.mxu0 %v3854
    %3961 = vmatpush.bf16.msra.mxu0 %v3853
    %3962 = vmatpush.bf16.msra.mxu0 %v3852
    %3963 = vmatpush.bf16.msra.mxu0 %v3851
    %3964 = vmatpush.bf16.msra.mxu0 %v3850
    %3965 = vmatpush.bf16.msra.mxu0 %v3849
    %3966 = vmatpush.bf16.msra.mxu0 %v3848
    %3967 = vmatpush.bf16.msra.mxu0 %v3847
    %3968 = vmatmul.bf16.gmra.mxu0 %v3712
    %v3969 = vpop.f32.mrf.mxu0
    %v3970 = vadd.f32 %v3881, %v3969
    %v3971 = vpop.f32.mrf.mxu0
    %v3972 = vadd.f32 %v3883, %v3971
    %3973 = vmatmul.bf16.gmra.mxu0 %v3714
    %v3974 = vpop.f32.mrf.mxu0
    %v3975 = vadd.f32 %v3886, %v3974
    %v3976 = vpop.f32.mrf.mxu0
    %v3977 = vadd.f32 %v3888, %v3976
    %3978 = vmatmul.bf16.gmra.mxu0 %v3716
    %v3979 = vpop.f32.mrf.mxu0
    %v3980 = vadd.f32 %v3891, %v3979
    %v3981 = vpop.f32.mrf.mxu0
    %v3982 = vadd.f32 %v3893, %v3981
    %3983 = vmatmul.bf16.gmra.mxu0 %v3718
    %v3984 = vpop.f32.mrf.mxu0
    %v3985 = vadd.f32 %v3896, %v3984
    %v3986 = vpop.f32.mrf.mxu0
    %v3987 = vadd.f32 %v3898, %v3986
    %3988 = vmatmul.bf16.gmra.mxu0 %v3720
    %v3989 = vpop.f32.mrf.mxu0
    %v3990 = vadd.f32 %v3901, %v3989
    %v3991 = vpop.f32.mrf.mxu0
    %v3992 = vadd.f32 %v3903, %v3991
    %3993 = vmatmul.bf16.gmra.mxu0 %v3722
    %v3994 = vpop.f32.mrf.mxu0
    %v3995 = vadd.f32 %v3906, %v3994
    %v3996 = vpop.f32.mrf.mxu0
    %v3997 = vadd.f32 %v3908, %v3996
    %3998 = vmatmul.bf16.gmra.mxu0 %v3724
    %v3999 = vpop.f32.mrf.mxu0
    %v4000 = vadd.f32 %v3911, %v3999
    %v4001 = vpop.f32.mrf.mxu0
    %v4002 = vadd.f32 %v3913, %v4001
    %4003 = vmatmul.bf16.gmra.mxu0 %v3726
    %v4004 = vpop.f32.mrf.mxu0
    %v4005 = vadd.f32 %v3916, %v4004
    %v4006 = vpop.f32.mrf.mxu0
    %v4007 = vadd.f32 %v3918, %v4006
    %4008 = vmatmul.bf16.gmra.mxu0 %v3728
    %v4009 = vpop.f32.mrf.mxu0
    %v4010 = vadd.f32 %v3921, %v4009
    %v4011 = vpop.f32.mrf.mxu0
    %v4012 = vadd.f32 %v3923, %v4011
    %4013 = vmatmul.bf16.gmra.mxu0 %v3730
    %v4014 = vpop.f32.mrf.mxu0
    %v4015 = vadd.f32 %v3926, %v4014
    %v4016 = vpop.f32.mrf.mxu0
    %v4017 = vadd.f32 %v3928, %v4016
    %4018 = vmatmul.bf16.gmra.mxu0 %v3732
    %v4019 = vpop.f32.mrf.mxu0
    %v4020 = vadd.f32 %v3931, %v4019
    %v4021 = vpop.f32.mrf.mxu0
    %v4022 = vadd.f32 %v3933, %v4021
    %4023 = vmatmul.bf16.gmra.mxu0 %v3734
    %v4024 = vpop.f32.mrf.mxu0
    %v4025 = vadd.f32 %v3936, %v4024
    %v4026 = vpop.f32.mrf.mxu0
    %v4027 = vadd.f32 %v3938, %v4026
    %4028 = vmatmul.bf16.gmra.mxu0 %v3736
    %v4029 = vpop.f32.mrf.mxu0
    %v4030 = vadd.f32 %v3941, %v4029
    %v4031 = vpop.f32.mrf.mxu0
    %v4032 = vadd.f32 %v3943, %v4031
    %4033 = vmatmul.bf16.gmra.mxu0 %v3738
    %v4034 = vpop.f32.mrf.mxu0
    %v4035 = vadd.f32 %v3946, %v4034
    %v4036 = vpop.f32.mrf.mxu0
    %v4037 = vadd.f32 %v3948, %v4036
    %4038 = vmatmul.bf16.gmra.mxu0 %v3740
    %v4039 = vpop.f32.mrf.mxu0
    %v4040 = vadd.f32 %v3951, %v4039
    %v4041 = vpop.f32.mrf.mxu0
    %v4042 = vadd.f32 %v3953, %v4041
    %4043 = vmatmul.bf16.gmra.mxu0 %v3742
    %v4044 = vpop.f32.mrf.mxu0
    %v4045 = vadd.f32 %v3956, %v4044
    %v4046 = vpop.f32.mrf.mxu0
    %v4047 = vadd.f32 %v3958, %v4046
    %4048 = vdwg.mxu0
    %v4049 = vpack.c.bf16 %v3970, %v3970
    %v4050 = vpack.c.bf16 %v3972, %v3972
    %v4051 = vpack.c.bf16 %v3975, %v3975
    %v4052 = vpack.c.bf16 %v3977, %v3977
    %v4053 = vpack.c.bf16 %v3980, %v3980
    %v4054 = vpack.c.bf16 %v3982, %v3982
    %v4055 = vpack.c.bf16 %v3985, %v3985
    %v4056 = vpack.c.bf16 %v3987, %v3987
    %v4057 = vpack.c.bf16 %v3990, %v3990
    %v4058 = vpack.c.bf16 %v3992, %v3992
    %v4059 = vpack.c.bf16 %v3995, %v3995
    %v4060 = vpack.c.bf16 %v3997, %v3997
    %v4061 = vpack.c.bf16 %v4000, %v4000
    %v4062 = vpack.c.bf16 %v4002, %v4002
    %v4063 = vpack.c.bf16 %v4005, %v4005
    %v4064 = vpack.c.bf16 %v4007, %v4007
    %v4065 = vpack.c.bf16 %v4010, %v4010
    %v4066 = vpack.c.bf16 %v4012, %v4012
    %v4067 = vpack.c.bf16 %v4015, %v4015
    %v4068 = vpack.c.bf16 %v4017, %v4017
    %v4069 = vpack.c.bf16 %v4020, %v4020
    %v4070 = vpack.c.bf16 %v4022, %v4022
    %v4071 = vpack.c.bf16 %v4025, %v4025
    %v4072 = vpack.c.bf16 %v4027, %v4027
    %v4073 = vpack.c.bf16 %v4030, %v4030
    %v4074 = vpack.c.bf16 %v4032, %v4032
    %v4075 = vpack.c.bf16 %v4035, %v4035
    %v4076 = vpack.c.bf16 %v4037, %v4037
    %v4077 = vpack.c.bf16 %v4040, %v4040
    %v4078 = vpack.c.bf16 %v4042, %v4042
    %v4079 = vpack.c.bf16 %v4045, %v4045
    %v4080 = vpack.c.bf16 %v4047, %v4047
    %v4113 = vunpack.c.l.b16 %v4049
    %v4114 = vunpack.c.l.b16 %v4050
    %v4115 = vunpack.c.l.b16 %v4051
    %v4116 = vunpack.c.l.b16 %v4052
    %v4117 = vunpack.c.l.b16 %v4053
    %v4118 = vunpack.c.l.b16 %v4054
    %v4119 = vunpack.c.l.b16 %v4055
    %v4120 = vunpack.c.l.b16 %v4056
    %v4121 = vunpack.c.l.b16 %v4057
    %v4122 = vunpack.c.l.b16 %v4058
    %v4123 = vunpack.c.l.b16 %v4059
    %v4124 = vunpack.c.l.b16 %v4060
    %v4125 = vunpack.c.l.b16 %v4061
    %v4126 = vunpack.c.l.b16 %v4062
    %v4127 = vunpack.c.l.b16 %v4063
    %v4128 = vunpack.c.l.b16 %v4064
    %v4129 = vunpack.c.l.b16 %v4065
    %v4130 = vunpack.c.l.b16 %v4066
    %v4131 = vunpack.c.l.b16 %v4067
    %v4132 = vunpack.c.l.b16 %v4068
    %v4133 = vunpack.c.l.b16 %v4069
    %v4134 = vunpack.c.l.b16 %v4070
    %v4135 = vunpack.c.l.b16 %v4071
    %v4136 = vunpack.c.l.b16 %v4072
    %v4137 = vunpack.c.l.b16 %v4073
    %v4138 = vunpack.c.l.b16 %v4074
    %v4139 = vunpack.c.l.b16 %v4075
    %v4140 = vunpack.c.l.b16 %v4076
    %v4141 = vunpack.c.l.b16 %v4077
    %v4142 = vunpack.c.l.b16 %v4078
    %v4143 = vunpack.c.l.b16 %v4079
    %v4144 = vunpack.c.l.b16 %v4080
    %v4145 = vpack.c.b16 %v4114, %v4113
    %v4146 = vpack.c.b16 %v4116, %v4115
    %v4147 = vpack.c.b16 %v4118, %v4117
    %v4148 = vpack.c.b16 %v4120, %v4119
    %v4149 = vpack.c.b16 %v4122, %v4121
    %v4150 = vpack.c.b16 %v4124, %v4123
    %v4151 = vpack.c.b16 %v4126, %v4125
    %v4152 = vpack.c.b16 %v4128, %v4127
    %v4153 = vpack.c.b16 %v4130, %v4129
    %v4154 = vpack.c.b16 %v4132, %v4131
    %v4155 = vpack.c.b16 %v4134, %v4133
    %v4156 = vpack.c.b16 %v4136, %v4135
    %v4157 = vpack.c.b16 %v4138, %v4137
    %v4158 = vpack.c.b16 %v4140, %v4139
    %v4159 = vpack.c.b16 %v4142, %v4141
    %v4160 = vpack.c.b16 %v4144, %v4143
    %v4177 = vld [vmem:[#allocation10] sm:$0xf]
    %v4178 = vld [vmem:[#allocation10 + $0x4] sm:$0xf]
    %v4179 = vld [vmem:[#allocation10 + $0x8] sm:$0xf]
    %v4180 = vld [vmem:[#allocation10 + $0xc] sm:$0xf]
    %v4181 = vld [vmem:[#allocation10 + $0x10] sm:$0xf]
    %v4182 = vld [vmem:[#allocation10 + $0x14] sm:$0xf]
    %v4183 = vld [vmem:[#allocation10 + $0x18] sm:$0xf]
    %v4184 = vld [vmem:[#allocation10 + $0x1c] sm:$0xf]
    %v4185 = vld [vmem:[#allocation10 + $0x20] sm:$0xf]
    %v4186 = vld [vmem:[#allocation10 + $0x24] sm:$0xf]
    %v4187 = vld [vmem:[#allocation10 + $0x28] sm:$0xf]
    %v4188 = vld [vmem:[#allocation10 + $0x2c] sm:$0xf]
    %v4189 = vld [vmem:[#allocation10 + $0x30] sm:$0xf]
    %v4190 = vld [vmem:[#allocation10 + $0x34] sm:$0xf]
    %v4191 = vld [vmem:[#allocation10 + $0x38] sm:$0xf]
    %v4192 = vld [vmem:[#allocation10 + $0x3c] sm:$0xf]
    %v4193 = vld [vmem:[#allocation10 + $0x40] sm:$0xf]
    %v4194 = vld [vmem:[#allocation10 + $0x44] sm:$0xf]
    %v4195 = vld [vmem:[#allocation10 + $0x48] sm:$0xf]
    %v4196 = vld [vmem:[#allocation10 + $0x4c] sm:$0xf]
    %v4197 = vld [vmem:[#allocation10 + $0x50] sm:$0xf]
    %v4198 = vld [vmem:[#allocation10 + $0x54] sm:$0xf]
    %v4199 = vld [vmem:[#allocation10 + $0x58] sm:$0xf]
    %v4200 = vld [vmem:[#allocation10 + $0x5c] sm:$0xf]
    %v4201 = vld [vmem:[#allocation10 + $0x60] sm:$0xf]
    %v4202 = vld [vmem:[#allocation10 + $0x64] sm:$0xf]
    %v4203 = vld [vmem:[#allocation10 + $0x68] sm:$0xf]
    %v4204 = vld [vmem:[#allocation10 + $0x6c] sm:$0xf]
    %v4205 = vld [vmem:[#allocation10 + $0x70] sm:$0xf]
    %v4206 = vld [vmem:[#allocation10 + $0x74] sm:$0xf]
    %v4207 = vld [vmem:[#allocation10 + $0x78] sm:$0xf]
    %v4208 = vld [vmem:[#allocation10 + $0x7c] sm:$0xf]
    %v4209 = vld [vmem:[%s5] sm:$0x1]
    %v4211 = vperm.slane %v4209, 0
    %v4245 = vunpack.c.l.b16 %v4177
    %v4246 = vunpack.c.l.b16 %v4178
    %v4247 = vunpack.c.l.b16 %v4179
    %v4248 = vunpack.c.l.b16 %v4180
    %v4249 = vunpack.c.l.b16 %v4181
    %v4250 = vunpack.c.l.b16 %v4182
    %v4251 = vunpack.c.l.b16 %v4183
    %v4252 = vunpack.c.l.b16 %v4184
    %v4253 = vunpack.c.l.b16 %v4185
    %v4254 = vunpack.c.l.b16 %v4186
    %v4255 = vunpack.c.l.b16 %v4187
    %v4256 = vunpack.c.l.b16 %v4188
    %v4257 = vunpack.c.l.b16 %v4189
    %v4258 = vunpack.c.l.b16 %v4190
    %v4259 = vunpack.c.l.b16 %v4191
    %v4260 = vunpack.c.l.b16 %v4192
    %v4261 = vunpack.c.l.b16 %v4193
    %v4262 = vunpack.c.l.b16 %v4194
    %v4263 = vunpack.c.l.b16 %v4195
    %v4264 = vunpack.c.l.b16 %v4196
    %v4265 = vunpack.c.l.b16 %v4197
    %v4266 = vunpack.c.l.b16 %v4198
    %v4267 = vunpack.c.l.b16 %v4199
    %v4268 = vunpack.c.l.b16 %v4200
    %v4269 = vunpack.c.l.b16 %v4201
    %v4270 = vunpack.c.l.b16 %v4202
    %v4271 = vunpack.c.l.b16 %v4203
    %v4272 = vunpack.c.l.b16 %v4204
    %v4273 = vunpack.c.l.b16 %v4205
    %v4274 = vunpack.c.l.b16 %v4206
    %v4275 = vunpack.c.l.b16 %v4207
    %v4276 = vunpack.c.l.b16 %v4208
    %v4277 = vpack.c.b16 %v4246, %v4245
    %v4278 = vpack.c.b16 %v4248, %v4247
    %v4279 = vpack.c.b16 %v4250, %v4249
    %v4280 = vpack.c.b16 %v4252, %v4251
    %v4281 = vpack.c.b16 %v4254, %v4253
    %v4282 = vpack.c.b16 %v4256, %v4255
    %v4283 = vpack.c.b16 %v4258, %v4257
    %v4284 = vpack.c.b16 %v4260, %v4259
    %v4285 = vpack.c.b16 %v4262, %v4261
    %v4286 = vpack.c.b16 %v4264, %v4263
    %v4287 = vpack.c.b16 %v4266, %v4265
    %v4288 = vpack.c.b16 %v4268, %v4267
    %v4289 = vpack.c.b16 %v4270, %v4269
    %v4290 = vpack.c.b16 %v4272, %v4271
    %v4291 = vpack.c.b16 %v4274, %v4273
    %v4292 = vpack.c.b16 %v4276, %v4275
    %4309 = vmatpush.bf16.msra.mxu0 %v4284
    %4310 = vmatpush.bf16.msra.mxu0 %v4283
    %4311 = vmatpush.bf16.msra.mxu0 %v4282
    %4312 = vmatpush.bf16.msra.mxu0 %v4281
    %4313 = vmatpush.bf16.msra.mxu0 %v4280
    %4314 = vmatpush.bf16.msra.mxu0 %v4279
    %4315 = vmatpush.bf16.msra.mxu0 %v4278
    %4316 = vmatpush.bf16.msra.mxu0 %v4277
    %4317 = vmatmul.bf16.gmra.mxu0 %v3839
    %v4318 = vpop.f32.mrf.mxu0
    %v4319 = vadd.f32 %v4211, %v4318
    %v4320 = vpop.f32.mrf.mxu0
    %v4321 = vadd.f32 %v4211, %v4320
    %4322 = vmatmul.bf16.gmra.mxu0 %v3840
    %v4323 = vpop.f32.mrf.mxu0
    %v4324 = vadd.f32 %v4211, %v4323
    %v4325 = vpop.f32.mrf.mxu0
    %v4326 = vadd.f32 %v4211, %v4325
    %4327 = vmatmul.bf16.gmra.mxu0 %v3841
    %v4328 = vpop.f32.mrf.mxu0
    %v4329 = vadd.f32 %v4211, %v4328
    %v4330 = vpop.f32.mrf.mxu0
    %v4331 = vadd.f32 %v4211, %v4330
    %4332 = vmatmul.bf16.gmra.mxu0 %v3842
    %v4333 = vpop.f32.mrf.mxu0
    %v4334 = vadd.f32 %v4211, %v4333
    %v4335 = vpop.f32.mrf.mxu0
    %v4336 = vadd.f32 %v4211, %v4335
    %4337 = vmatmul.bf16.gmra.mxu0 %v3843
    %v4338 = vpop.f32.mrf.mxu0
    %v4339 = vadd.f32 %v4211, %v4338
    %v4340 = vpop.f32.mrf.mxu0
    %v4341 = vadd.f32 %v4211, %v4340
    %4342 = vmatmul.bf16.gmra.mxu0 %v3844
    %v4343 = vpop.f32.mrf.mxu0
    %v4344 = vadd.f32 %v4211, %v4343
    %v4345 = vpop.f32.mrf.mxu0
    %v4346 = vadd.f32 %v4211, %v4345
    %4347 = vmatmul.bf16.gmra.mxu0 %v3845
    %v4348 = vpop.f32.mrf.mxu0
    %v4349 = vadd.f32 %v4211, %v4348
    %v4350 = vpop.f32.mrf.mxu0
    %v4351 = vadd.f32 %v4211, %v4350
    %4352 = vmatmul.bf16.gmra.mxu0 %v3846
    %v4353 = vpop.f32.mrf.mxu0
    %v4354 = vadd.f32 %v4211, %v4353
    %v4355 = vpop.f32.mrf.mxu0
    %v4356 = vadd.f32 %v4211, %v4355
    %4357 = vmatmul.bf16.gmra.mxu0 %v3847
    %v4358 = vpop.f32.mrf.mxu0
    %v4359 = vadd.f32 %v4211, %v4358
    %v4360 = vpop.f32.mrf.mxu0
    %v4361 = vadd.f32 %v4211, %v4360
    %4362 = vmatmul.bf16.gmra.mxu0 %v3848
    %v4363 = vpop.f32.mrf.mxu0
    %v4364 = vadd.f32 %v4211, %v4363
    %v4365 = vpop.f32.mrf.mxu0
    %v4366 = vadd.f32 %v4211, %v4365
    %4367 = vmatmul.bf16.gmra.mxu0 %v3849
    %v4368 = vpop.f32.mrf.mxu0
    %v4369 = vadd.f32 %v4211, %v4368
    %v4370 = vpop.f32.mrf.mxu0
    %v4371 = vadd.f32 %v4211, %v4370
    %4372 = vmatmul.bf16.gmra.mxu0 %v3850
    %v4373 = vpop.f32.mrf.mxu0
    %v4374 = vadd.f32 %v4211, %v4373
    %v4375 = vpop.f32.mrf.mxu0
    %v4376 = vadd.f32 %v4211, %v4375
    %4377 = vmatmul.bf16.gmra.mxu0 %v3851
    %v4378 = vpop.f32.mrf.mxu0
    %v4379 = vadd.f32 %v4211, %v4378
    %v4380 = vpop.f32.mrf.mxu0
    %v4381 = vadd.f32 %v4211, %v4380
    %4382 = vmatmul.bf16.gmra.mxu0 %v3852
    %v4383 = vpop.f32.mrf.mxu0
    %v4384 = vadd.f32 %v4211, %v4383
    %v4385 = vpop.f32.mrf.mxu0
    %v4386 = vadd.f32 %v4211, %v4385
    %4387 = vmatmul.bf16.gmra.mxu0 %v3853
    %v4388 = vpop.f32.mrf.mxu0
    %v4389 = vadd.f32 %v4211, %v4388
    %v4390 = vpop.f32.mrf.mxu0
    %v4391 = vadd.f32 %v4211, %v4390
    %4392 = vmatmul.bf16.gmra.mxu0 %v3854
    %v4393 = vpop.f32.mrf.mxu0
    %v4394 = vadd.f32 %v4211, %v4393
    %v4395 = vpop.f32.mrf.mxu0
    %v4396 = vadd.f32 %v4211, %v4395
    %4397 = vdwg.mxu0
    %4398 = vmatpush.bf16.msra.mxu0 %v4292
    %4399 = vmatpush.bf16.msra.mxu0 %v4291
    %4400 = vmatpush.bf16.msra.mxu0 %v4290
    %4401 = vmatpush.bf16.msra.mxu0 %v4289
    %4402 = vmatpush.bf16.msra.mxu0 %v4288
    %4403 = vmatpush.bf16.msra.mxu0 %v4287
    %4404 = vmatpush.bf16.msra.mxu0 %v4286
    %4405 = vmatpush.bf16.msra.mxu0 %v4285
    %4406 = vmatmul.bf16.gmra.mxu0 %v4145
    %v4407 = vpop.f32.mrf.mxu0
    %v4408 = vadd.f32 %v4319, %v4407
    %v4409 = vpop.f32.mrf.mxu0
    %v4410 = vadd.f32 %v4321, %v4409
    %4411 = vmatmul.bf16.gmra.mxu0 %v4146
    %v4412 = vpop.f32.mrf.mxu0
    %v4413 = vadd.f32 %v4324, %v4412
    %v4414 = vpop.f32.mrf.mxu0
    %v4415 = vadd.f32 %v4326, %v4414
    %4416 = vmatmul.bf16.gmra.mxu0 %v4147
    %v4417 = vpop.f32.mrf.mxu0
    %v4418 = vadd.f32 %v4329, %v4417
    %v4419 = vpop.f32.mrf.mxu0
    %v4420 = vadd.f32 %v4331, %v4419
    %4421 = vmatmul.bf16.gmra.mxu0 %v4148
    %v4422 = vpop.f32.mrf.mxu0
    %v4423 = vadd.f32 %v4334, %v4422
    %v4424 = vpop.f32.mrf.mxu0
    %v4425 = vadd.f32 %v4336, %v4424
    %4426 = vmatmul.bf16.gmra.mxu0 %v4149
    %v4427 = vpop.f32.mrf.mxu0
    %v4428 = vadd.f32 %v4339, %v4427
    %v4429 = vpop.f32.mrf.mxu0
    %v4430 = vadd.f32 %v4341, %v4429
    %4431 = vmatmul.bf16.gmra.mxu0 %v4150
    %v4432 = vpop.f32.mrf.mxu0
    %v4433 = vadd.f32 %v4344, %v4432
    %v4434 = vpop.f32.mrf.mxu0
    %v4435 = vadd.f32 %v4346, %v4434
    %4436 = vmatmul.bf16.gmra.mxu0 %v4151
    %v4437 = vpop.f32.mrf.mxu0
    %v4438 = vadd.f32 %v4349, %v4437
    %v4439 = vpop.f32.mrf.mxu0
    %v4440 = vadd.f32 %v4351, %v4439
    %4441 = vmatmul.bf16.gmra.mxu0 %v4152
    %v4442 = vpop.f32.mrf.mxu0
    %v4443 = vadd.f32 %v4354, %v4442
    %v4444 = vpop.f32.mrf.mxu0
    %v4445 = vadd.f32 %v4356, %v4444
    %4446 = vmatmul.bf16.gmra.mxu0 %v4153
    %v4447 = vpop.f32.mrf.mxu0
    %v4448 = vadd.f32 %v4359, %v4447
    %v4449 = vpop.f32.mrf.mxu0
    %v4450 = vadd.f32 %v4361, %v4449
    %4451 = vmatmul.bf16.gmra.mxu0 %v4154
    %v4452 = vpop.f32.mrf.mxu0
    %v4453 = vadd.f32 %v4364, %v4452
    %v4454 = vpop.f32.mrf.mxu0
    %v4455 = vadd.f32 %v4366, %v4454
    %4456 = vmatmul.bf16.gmra.mxu0 %v4155
    %v4457 = vpop.f32.mrf.mxu0
    %v4458 = vadd.f32 %v4369, %v4457
    %v4459 = vpop.f32.mrf.mxu0
    %v4460 = vadd.f32 %v4371, %v4459
    %4461 = vmatmul.bf16.gmra.mxu0 %v4156
    %v4462 = vpop.f32.mrf.mxu0
    %v4463 = vadd.f32 %v4374, %v4462
    %v4464 = vpop.f32.mrf.mxu0
    %v4465 = vadd.f32 %v4376, %v4464
    %4466 = vmatmul.bf16.gmra.mxu0 %v4157
    %v4467 = vpop.f32.mrf.mxu0
    %v4468 = vadd.f32 %v4379, %v4467
    %v4469 = vpop.f32.mrf.mxu0
    %v4470 = vadd.f32 %v4381, %v4469
    %4471 = vmatmul.bf16.gmra.mxu0 %v4158
    %v4472 = vpop.f32.mrf.mxu0
    %v4473 = vadd.f32 %v4384, %v4472
    %v4474 = vpop.f32.mrf.mxu0
    %v4475 = vadd.f32 %v4386, %v4474
    %4476 = vmatmul.bf16.gmra.mxu0 %v4159
    %v4477 = vpop.f32.mrf.mxu0
    %v4478 = vadd.f32 %v4389, %v4477
    %v4479 = vpop.f32.mrf.mxu0
    %v4480 = vadd.f32 %v4391, %v4479
    %4481 = vmatmul.bf16.gmra.mxu0 %v4160
    %v4482 = vpop.f32.mrf.mxu0
    %v4483 = vadd.f32 %v4394, %v4482
    %v4484 = vpop.f32.mrf.mxu0
    %v4485 = vadd.f32 %v4396, %v4484
    %4486 = vdwg.mxu0
    %vm4487 = vcmp.ge.f32.partialorder %v4408, 0.0
    %vm4488 = vcmp.ge.f32.partialorder %v4410, 0.0
    %vm4489 = vcmp.ge.f32.partialorder %v4413, 0.0
    %vm4490 = vcmp.ge.f32.partialorder %v4415, 0.0
    %vm4491 = vcmp.ge.f32.partialorder %v4418, 0.0
    %vm4492 = vcmp.ge.f32.partialorder %v4420, 0.0
    %vm4493 = vcmp.ge.f32.partialorder %v4423, 0.0
    %vm4494 = vcmp.ge.f32.partialorder %v4425, 0.0
    %vm4495 = vcmp.ge.f32.partialorder %v4428, 0.0
    %vm4496 = vcmp.ge.f32.partialorder %v4430, 0.0
    %vm4497 = vcmp.ge.f32.partialorder %v4433, 0.0
    %vm4498 = vcmp.ge.f32.partialorder %v4435, 0.0
    %vm4499 = vcmp.ge.f32.partialorder %v4438, 0.0
    %vm4500 = vcmp.ge.f32.partialorder %v4440, 0.0
    %vm4501 = vcmp.ge.f32.partialorder %v4443, 0.0
    %vm4502 = vcmp.ge.f32.partialorder %v4445, 0.0
    %vm4503 = vcmp.ge.f32.partialorder %v4448, 0.0
    %vm4504 = vcmp.ge.f32.partialorder %v4450, 0.0
    %vm4505 = vcmp.ge.f32.partialorder %v4453, 0.0
    %vm4506 = vcmp.ge.f32.partialorder %v4455, 0.0
    %vm4507 = vcmp.ge.f32.partialorder %v4458, 0.0
    %vm4508 = vcmp.ge.f32.partialorder %v4460, 0.0
    %vm4509 = vcmp.ge.f32.partialorder %v4463, 0.0
    %vm4510 = vcmp.ge.f32.partialorder %v4465, 0.0
    %vm4511 = vcmp.ge.f32.partialorder %v4468, 0.0
    %vm4512 = vcmp.ge.f32.partialorder %v4470, 0.0
    %vm4513 = vcmp.ge.f32.partialorder %v4473, 0.0
    %vm4514 = vcmp.ge.f32.partialorder %v4475, 0.0
    %vm4515 = vcmp.ge.f32.partialorder %v4478, 0.0
    %vm4516 = vcmp.ge.f32.partialorder %v4480, 0.0
    %vm4517 = vcmp.ge.f32.partialorder %v4483, 0.0
    %vm4518 = vcmp.ge.f32.partialorder %v4485, 0.0
    %v4519 = vmul.f32 %v4408, 0.01
    %v4520 = vmul.f32 %v4410, 0.01
    %v4521 = vmul.f32 %v4413, 0.01
    %v4522 = vmul.f32 %v4415, 0.01
    %v4523 = vmul.f32 %v4418, 0.01
    %v4524 = vmul.f32 %v4420, 0.01
    %v4525 = vmul.f32 %v4423, 0.01
    %v4526 = vmul.f32 %v4425, 0.01
    %v4527 = vmul.f32 %v4428, 0.01
    %v4528 = vmul.f32 %v4430, 0.01
    %v4529 = vmul.f32 %v4433, 0.01
    %v4530 = vmul.f32 %v4435, 0.01
    %v4531 = vmul.f32 %v4438, 0.01
    %v4532 = vmul.f32 %v4440, 0.01
    %v4533 = vmul.f32 %v4443, 0.01
    %v4534 = vmul.f32 %v4445, 0.01
    %v4535 = vmul.f32 %v4448, 0.01
    %v4536 = vmul.f32 %v4450, 0.01
    %v4537 = vmul.f32 %v4453, 0.01
    %v4538 = vmul.f32 %v4455, 0.01
    %v4539 = vmul.f32 %v4458, 0.01
    %v4540 = vmul.f32 %v4460, 0.01
    %v4541 = vmul.f32 %v4463, 0.01
    %v4542 = vmul.f32 %v4465, 0.01
    %v4543 = vmul.f32 %v4468, 0.01
    %v4544 = vmul.f32 %v4470, 0.01
    %v4545 = vmul.f32 %v4473, 0.01
    %v4546 = vmul.f32 %v4475, 0.01
    %v4547 = vmul.f32 %v4478, 0.01
    %v4548 = vmul.f32 %v4480, 0.01
    %v4549 = vmul.f32 %v4483, 0.01
    %v4550 = vmul.f32 %v4485, 0.01
    %v4551 = vsel %vm4487, %v4408, %v4519
    %v4552 = vsel %vm4488, %v4410, %v4520
    %v4553 = vsel %vm4489, %v4413, %v4521
    %v4554 = vsel %vm4490, %v4415, %v4522
    %v4555 = vsel %vm4491, %v4418, %v4523
    %v4556 = vsel %vm4492, %v4420, %v4524
    %v4557 = vsel %vm4493, %v4423, %v4525
    %v4558 = vsel %vm4494, %v4425, %v4526
    %v4559 = vsel %vm4495, %v4428, %v4527
    %v4560 = vsel %vm4496, %v4430, %v4528
    %v4561 = vsel %vm4497, %v4433, %v4529
    %v4562 = vsel %vm4498, %v4435, %v4530
    %v4563 = vsel %vm4499, %v4438, %v4531
    %v4564 = vsel %vm4500, %v4440, %v4532
    %v4565 = vsel %vm4501, %v4443, %v4533
    %v4566 = vsel %vm4502, %v4445, %v4534
    %v4567 = vsel %vm4503, %v4448, %v4535
    %v4568 = vsel %vm4504, %v4450, %v4536
    %v4569 = vsel %vm4505, %v4453, %v4537
    %v4570 = vsel %vm4506, %v4455, %v4538
    %v4571 = vsel %vm4507, %v4458, %v4539
    %v4572 = vsel %vm4508, %v4460, %v4540
    %v4573 = vsel %vm4509, %v4463, %v4541
    %v4574 = vsel %vm4510, %v4465, %v4542
    %v4575 = vsel %vm4511, %v4468, %v4543
    %v4576 = vsel %vm4512, %v4470, %v4544
    %v4577 = vsel %vm4513, %v4473, %v4545
    %v4578 = vsel %vm4514, %v4475, %v4546
    %v4579 = vsel %vm4515, %v4478, %v4547
    %v4580 = vsel %vm4516, %v4480, %v4548
    %v4581 = vsel %vm4517, %v4483, %v4549
    %v4582 = vsel %vm4518, %v4485, %v4550
    %4583 = vst [vmem:[#allocation11] sm:$0xff] %v4551
    %4584 = vst [vmem:[#allocation11 + $0x8] sm:$0xff] %v4552
    %4585 = vst [vmem:[#allocation11 + $0x10] sm:$0xff] %v4553
    %4586 = vst [vmem:[#allocation11 + $0x18] sm:$0xff] %v4554
    %4587 = vst [vmem:[#allocation11 + $0x20] sm:$0xff] %v4555
    %4588 = vst [vmem:[#allocation11 + $0x28] sm:$0xff] %v4556
    %4589 = vst [vmem:[#allocation11 + $0x30] sm:$0xff] %v4557
    %4590 = vst [vmem:[#allocation11 + $0x38] sm:$0xff] %v4558
    %4591 = vst [vmem:[#allocation11 + $0x40] sm:$0xff] %v4559
    %4592 = vst [vmem:[#allocation11 + $0x48] sm:$0xff] %v4560
    %4593 = vst [vmem:[#allocation11 + $0x50] sm:$0xff] %v4561
    %4594 = vst [vmem:[#allocation11 + $0x58] sm:$0xff] %v4562
    %4595 = vst [vmem:[#allocation11 + $0x60] sm:$0xff] %v4563
    %4596 = vst [vmem:[#allocation11 + $0x68] sm:$0xff] %v4564
    %4597 = vst [vmem:[#allocation11 + $0x70] sm:$0xff] %v4565
    %4598 = vst [vmem:[#allocation11 + $0x78] sm:$0xff] %v4566
    %4599 = vst [vmem:[#allocation11 + $0x80] sm:$0xff] %v4567
    %4600 = vst [vmem:[#allocation11 + $0x88] sm:$0xff] %v4568
    %4601 = vst [vmem:[#allocation11 + $0x90] sm:$0xff] %v4569
    %4602 = vst [vmem:[#allocation11 + $0x98] sm:$0xff] %v4570
    %4603 = vst [vmem:[#allocation11 + $0xa0] sm:$0xff] %v4571
    %4604 = vst [vmem:[#allocation11 + $0xa8] sm:$0xff] %v4572
    %4605 = vst [vmem:[#allocation11 + $0xb0] sm:$0xff] %v4573
    %4606 = vst [vmem:[#allocation11 + $0xb8] sm:$0xff] %v4574
    %4607 = vst [vmem:[#allocation11 + $0xc0] sm:$0xff] %v4575
    %4608 = vst [vmem:[#allocation11 + $0xc8] sm:$0xff] %v4576
    %4609 = vst [vmem:[#allocation11 + $0xd0] sm:$0xff] %v4577
    %4610 = vst [vmem:[#allocation11 + $0xd8] sm:$0xff] %v4578
    %4611 = vst [vmem:[#allocation11 + $0xe0] sm:$0xff] %v4579
    %4612 = vst [vmem:[#allocation11 + $0xe8] sm:$0xff] %v4580
    %4613 = vst [vmem:[#allocation11 + $0xf0] sm:$0xff] %v4581
    %4614 = vst [vmem:[#allocation11 + $0xf8] sm:$0xff] %v4582
    // Predicated region
    $region46: #{tpu_custom_call.1} parent=1 // pred_check
      _
    $region47: #{tpu_custom_call.1} parent=1 // pred_check_branch
      %4616 = sbr.rel (0) target = $region49
    $region48: #{tpu_custom_call.1} parent=1 // pred_region
      %4618 = vsyncadd [#allocation4], 0
      %s4619 = sshll.u32 [#allocation11], 4
      %s4620 = int_to_ptr.vmem [resolvable:$true] %s4619
      %s4621 = sshll.u32 %s6, 4
      %s4622 = int_to_ptr.hbm [resolvable:$true] %s4621
      %4627 = dma.vmem_to_hbm [thread:$0]  %s4620, 4096, %s4622, [#allocation4], 128, 128, 8
    $region49: #{tpu_custom_call.1} parent=1 // pred_fallthru
      _
    // Predicated region
    $region50: #{tpu_custom_call.1} parent=1 // pred_check
      _
    $region51: #{tpu_custom_call.1} parent=1 // pred_check_branch
      %4629 = sbr.rel (0) target = $region53
    $region52: #{tpu_custom_call.1} parent=1 // pred_region
      %4631 = dma.done [#allocation4], 4096
    $region53: #{tpu_custom_call.1} parent=1 // pred_fallthru
      _
    %4632 = vsyncpa [#allocation3], 1
    %4633 = vsyncpa [#allocation6], 1
    %4634 = vsyncpa [#allocation9], 1
    %4635 = vsyncpa [#allocation4], 1

</llo_original>
